<compile_context>
chip_gen: v6e
topology: v6e:2x2x1
jax: 0.10.0
libtpu: 0.0.40
codegen_flags: <defaults>
</compile_context>

<pallas_src>
import functools

import jax
import jax.numpy as jnp
from jax.experimental import pallas as pl
from jax.experimental.pallas import tpu as pltpu


def att_pooling_kernel(x_ref, wfc_ref, wmlp_ref, scale_ref, bias_ref, o_ref, *, K):
    """One block = tg point-groups (p points each) with all K neighbors.

    x_ref:     (tg*K, p*C)   rows=(group, neighbor), lanes=(point-in-group, channel)
    wfc_ref:   (p*C, p*C)    block-diag of w_fc.T   (p copies)
    wmlp_ref:  (p*C, p*dop)  block-diag of w_mlp.T  (p copies, d_out padded to dop)
    scale_ref: (1, p*dop)    folded eval-mode BN scale, tiled p times
    bias_ref:  (1, p*dop)    folded eval-mode BN bias,  tiled p times
    o_ref:     (tg, p*dop)   p points' outputs packed per lane-dense row
    """
    x2d = x_ref[...]                                        # (tg*K, 128) f32
    rows, lanes = x2d.shape
    tg = rows // K

    # fc 1x1 conv: one lane-dense MXU matmul (contraction dim = p*C = 128).
    att2d = jnp.dot(x2d, wfc_ref[...], preferred_element_type=jnp.float32)

    # Split the neighbor axis back out (K=16 is a multiple of 8, so these
    # reshapes are tiling-preserving: no data movement).
    att = att2d.reshape(tg, K, lanes)
    x3 = x2d.reshape(tg, K, lanes)

    # Softmax over K (PyTorch dim=3) with deferred normalization; reductions run
    # along the sublane direction, exp/mul stay fully lane-dense.
    m = jnp.max(att, axis=1, keepdims=True)                 # (tg, 1, p*C)
    e = jnp.exp(att - m)                                    # (tg, K, p*C)
    s = jnp.sum(e, axis=1)                                  # (tg, p*C)
    wsum = jnp.sum(x3 * e, axis=1)                          # (tg, p*C)
    f_agg = wsum / s                                        # exact divide

    # mlp 1x1 conv (bias-free) + folded eval-mode BatchNorm + ReLU.
    y = jnp.dot(f_agg, wmlp_ref[...], preferred_element_type=jnp.float32)
    y = y * scale_ref[...] + bias_ref[...]
    o_ref[...] = jnp.maximum(y, 0.0).astype(o_ref.dtype)


def _round_up(a, b):
    return -(-a // b) * b


def att_pooling(x_nchw, w_fc, w_mlp, gamma, beta, running_mean, running_var,
                eps=1e-5, tile_points=256):
    """PyTorch-equivalent forward: NCHW in -> (B, d_out, N, 1) out, eval-mode BN."""
    B, C, N, K = x_nchw.shape
    d_out = w_mlp.shape[0]
    x_nchw = x_nchw.astype(jnp.float32)

    # ---- lane-packing factor: p points share one 128-lane row ----------------
    if C <= 128 and 128 % C == 0:
        p, Cp = 128 // C, C                 # exact packing (C = 16/32/64/128)
    else:
        p, Cp = 1, _round_up(C, 128)        # fall back to channel zero-padding
    dop = _round_up(d_out, 128 // p)        # p*dop is a multiple of 128

    # ---- pad N so points group into p's, then ONE XLA copy performs the
    # ---- NCHW -> packed channels-last transpose (this IS the lane packing) ----
    Np = _round_up(N, p)
    if Np != N:
        x_nchw = jnp.pad(x_nchw, ((0, 0), (0, 0), (0, Np - N), (0, 0)))
    xg = x_nchw.reshape(B, C, Np // p, p, K)
    xg = jnp.transpose(xg, (0, 2, 4, 3, 1))                 # (B, G_b, K, p, C)
    if Cp != C:
        xg = jnp.pad(xg, ((0, 0),) * 4 + ((0, Cp - C),))
    G = B * (Np // p)                                       # total point-groups
    x_packed = xg.reshape(G * K, p * Cp)                    # rows=(g,k) lanes=(q,c)

    # ---- grid over point-groups (no tile-halving cliff; bounded zero pad) -----
    tg = max(8, (tile_points // p) // 16 * 16)              # groups per block
    steps = -(-G // tg)
    if steps == 1 and tg >= 16 and G > 8:                   # keep >=2 steps
        tg //= 2
        steps = -(-G // tg)
    if steps > 1 and steps % 2 == 1:                        # even grid for v7x
        steps += 1
    Gp = steps * tg
    if Gp != G:
        x_packed = jnp.pad(x_packed, ((0, (Gp - G) * K), (0, 0)))

    # ---- weights: pre-transposed, block-diagonal for the packed layout --------
    eye_p = jnp.eye(p, dtype=jnp.float32)
    wfc_t = jnp.pad(jnp.asarray(w_fc, jnp.float32).T, ((0, Cp - C), (0, Cp - C)))
    wfc_big = jnp.kron(eye_p, wfc_t)                        # (p*Cp, p*Cp)
    wmlp_t = jnp.pad(jnp.asarray(w_mlp, jnp.float32).T,
                     ((0, Cp - C), (0, dop - d_out)))
    wmlp_big = jnp.kron(eye_p, wmlp_t)                      # (p*Cp, p*dop)

    # ---- fold eval-mode BatchNorm into per-channel scale / bias ---------------
    inv_std = 1.0 / jnp.sqrt(running_var.astype(jnp.float32) + eps)
    bn_scale = gamma.astype(jnp.float32) * inv_std
    bn_bias = beta.astype(jnp.float32) - running_mean.astype(jnp.float32) * bn_scale
    bn_scale = jnp.tile(jnp.pad(bn_scale, (0, dop - d_out)), p).reshape(1, p * dop)
    bn_bias = jnp.tile(jnp.pad(bn_bias, (0, dop - d_out)), p).reshape(1, p * dop)

    out = pl.pallas_call(
        functools.partial(att_pooling_kernel, K=K),
        out_shape=jax.ShapeDtypeStruct((Gp, p * dop), jnp.float32),
        grid=(steps,),
        in_specs=[
            pl.BlockSpec((tg * K, p * Cp), lambda i: (i, 0)),
            pl.BlockSpec((p * Cp, p * Cp), lambda i: (0, 0)),
            pl.BlockSpec((p * Cp, p * dop), lambda i: (0, 0)),
            pl.BlockSpec((1, p * dop), lambda i: (0, 0)),
            pl.BlockSpec((1, p * dop), lambda i: (0, 0)),
        ],
        out_specs=pl.BlockSpec((tg, p * dop), lambda i: (i, 0)),
        compiler_params=pltpu.CompilerParams(
            dimension_semantics=("parallel",),   # v7x: split grid across both TCs
        ),
    )(x_packed, wfc_big, wmlp_big, bn_scale, bn_bias)

    # ---- unpack: (Gp, p*dop) -> (B, d_out, N, 1) -------------------------------
    out = out[:G].reshape(B, Np // p, p, dop)[..., :d_out]
    out = out.reshape(B, Np, d_out)[:, :N, :]
    return jnp.transpose(out, (0, 2, 1))[..., None]


def att_pooling_ref(x_nchw, w_fc, w_mlp, gamma, beta, running_mean, running_var,
                    eps=1e-5):
    # Pure-JAX reference mirroring the PyTorch forward exactly (NCHW, eval BN).
    hp = jax.lax.Precision.HIGHEST
    att = jnp.einsum("bcnk,oc->bonk", x_nchw, w_fc, precision=hp)
    scores = jax.nn.softmax(att, axis=3)
    f_agg = jnp.sum(x_nchw * scores, axis=3, keepdims=True)         # (B, C, N, 1)
    y = jnp.einsum("bcnk,oc->bonk", f_agg, w_mlp, precision=hp)     # (B, O, N, 1)
    inv_std = 1.0 / jnp.sqrt(running_var + eps)
    y = (y - running_mean[None, :, None, None]) * inv_std[None, :, None, None]
    y = y * gamma[None, :, None, None] + beta[None, :, None, None]
    return jnp.maximum(y, 0.0)


if __name__ == "__main__":
    # Small RandLA-Net-like shapes: 512 points, 16 neighbors, 32 -> 64 channels.
    B, d_in, d_out, N, K = 2, 32, 64, 512, 16

    key = jax.random.PRNGKey(0)
    k_x, k_wfc, k_wmlp, k_g, k_b, k_m, k_v = jax.random.split(key, 7)

    def bf16_exact(a):
        # Keep matmul operands exactly representable in bf16 so the comparison is
        # insensitive to MXU / XLA matmul pass-precision differences.
        return a.astype(jnp.bfloat16).astype(jnp.float32)

    x = bf16_exact(jax.random.normal(k_x, (B, d_in, N, K), dtype=jnp.float32))
    w_fc = bf16_exact(0.1 * jax.random.normal(k_wfc, (d_in, d_in), jnp.float32))
    w_mlp = bf16_exact(0.1 * jax.random.normal(k_wmlp, (d_out, d_in), jnp.float32))
    gamma = 1.0 + 0.1 * jax.random.normal(k_g, (d_out,), dtype=jnp.float32)
    beta = 0.1 * jax.random.normal(k_b, (d_out,), dtype=jnp.float32)
    running_mean = 0.1 * jax.random.normal(k_m, (d_out,), dtype=jnp.float32)
    running_var = 0.5 + jnp.abs(jax.random.normal(k_v, (d_out,), dtype=jnp.float32))

    fwd = jax.jit(att_pooling)
    out = jax.block_until_ready(
        fwd(x, w_fc, w_mlp, gamma, beta, running_mean, running_var))

    ref = att_pooling_ref(x, w_fc, w_mlp, gamma, beta, running_mean, running_var)
    assert out.shape == (B, d_out, N, 1), out.shape
    err = jnp.max(jnp.abs(out - ref))
    # 5e-3 headroom covers MXU vs XLA matmul pass-precision; with matched
    # precision the two paths agree to ~1e-6.
    assert jnp.allclose(out, ref, rtol=5e-3, atol=5e-3), f"max abs err {err}"

    print("KERNEL_OK")
</pallas_src>

<mosaic_0001>
module attributes {stable_mosaic.version = 11 : i64} {
  func.func @att_pooling_kernel(%arg0: i32, %arg1: memref<1024x128xf32, #tpu.memory_space<vmem>>, %arg2: memref<128x128xf32, #tpu.memory_space<vmem>>, %arg3: memref<128x256xf32, #tpu.memory_space<vmem>>, %arg4: memref<1x256xf32, #tpu.memory_space<vmem>>, %arg5: memref<1x256xf32, #tpu.memory_space<vmem>>, %arg6: memref<64x256xf32, #tpu.memory_space<vmem>>) attributes {dimension_semantics = [#tpu.dimension_semantics<parallel>], iteration_bounds = array<i64: 4>, scalar_prefetch = 0 : i64, scratch_operands = 0 : i64, tpu.core_type = #tpu.core_type<tc>, window_params = [{transform_indices = @transform_0, window_bounds = array<i64: 1024, 128>}, {pipeline_mode = #tpu.pipeline_mode<synchronous>, transform_indices = @transform_1, window_bounds = array<i64: 128, 128>}, {pipeline_mode = #tpu.pipeline_mode<synchronous>, transform_indices = @transform_2, window_bounds = array<i64: 128, 256>}, {pipeline_mode = #tpu.pipeline_mode<synchronous>, transform_indices = @transform_3, window_bounds = array<i64: 1, 256>}, {pipeline_mode = #tpu.pipeline_mode<synchronous>, transform_indices = @transform_4, window_bounds = array<i64: 1, 256>}, {transform_indices = @transform_5, window_bounds = array<i64: 64, 256>}]} {
    %c0 = arith.constant 0 : index
    %c0_0 = arith.constant 0 : index
    %0 = vector.load %arg1[%c0, %c0_0] : memref<1024x128xf32, #tpu.memory_space<vmem>>, vector<1024x128xf32>
    %c0_1 = arith.constant 0 : index
    %c0_2 = arith.constant 0 : index
    %1 = vector.load %arg2[%c0_1, %c0_2] : memref<128x128xf32, #tpu.memory_space<vmem>>, vector<128x128xf32>
    %cst = arith.constant dense<0.000000e+00> : vector<1024x128xf32>
    %2 = tpu.matmul %0, %1, %cst {dimension_numbers = #tpu.dot_dimension_numbers<[1], [0], [0], [1], [0, 0, 1, 1], [], []>} : vector<1024x128xf32>, vector<128x128xf32>, vector<1024x128xf32> -> vector<1024x128xf32>
    %3 = vector.shape_cast %2 : vector<1024x128xf32> to vector<64x16x128xf32>
    %4 = vector.shape_cast %0 : vector<1024x128xf32> to vector<64x16x128xf32>
    %cst_3 = arith.constant dense<0xFF800000> : vector<64x128xf32>
    %5 = vector.multi_reduction <maximumf>, %3, %cst_3 [1] : vector<64x16x128xf32> to vector<64x128xf32>
    %6 = vector.shape_cast %5 : vector<64x128xf32> to vector<64x1x128xf32>
    %7 = vector.broadcast %6 : vector<64x1x128xf32> to vector<64x16x128xf32>
    %8 = arith.subf %3, %7 : vector<64x16x128xf32>
    %9 = math.exp %8 : vector<64x16x128xf32>
    %cst_4 = arith.constant dense<0.000000e+00> : vector<64x128xf32>
    %10 = vector.multi_reduction <add>, %9, %cst_4 [1] : vector<64x16x128xf32> to vector<64x128xf32>
    %11 = arith.mulf %4, %9 : vector<64x16x128xf32>
    %cst_5 = arith.constant dense<0.000000e+00> : vector<64x128xf32>
    %12 = vector.multi_reduction <add>, %11, %cst_5 [1] : vector<64x16x128xf32> to vector<64x128xf32>
    %13 = arith.divf %12, %10 : vector<64x128xf32>
    %c0_6 = arith.constant 0 : index
    %c0_7 = arith.constant 0 : index
    %14 = vector.load %arg3[%c0_6, %c0_7] : memref<128x256xf32, #tpu.memory_space<vmem>>, vector<128x256xf32>
    %cst_8 = arith.constant dense<0.000000e+00> : vector<64x256xf32>
    %15 = tpu.matmul %13, %14, %cst_8 {dimension_numbers = #tpu.dot_dimension_numbers<[1], [0], [0], [1], [0, 0, 1, 1], [], []>} : vector<64x128xf32>, vector<128x256xf32>, vector<64x256xf32> -> vector<64x256xf32>
    %c0_9 = arith.constant 0 : index
    %c0_10 = arith.constant 0 : index
    %16 = vector.load %arg4[%c0_9, %c0_10] : memref<1x256xf32, #tpu.memory_space<vmem>>, vector<1x256xf32>
    %17 = vector.broadcast %16 : vector<1x256xf32> to vector<64x256xf32>
    %18 = arith.mulf %15, %17 : vector<64x256xf32>
    %c0_11 = arith.constant 0 : index
    %c0_12 = arith.constant 0 : index
    %19 = vector.load %arg5[%c0_11, %c0_12] : memref<1x256xf32, #tpu.memory_space<vmem>>, vector<1x256xf32>
    %20 = vector.broadcast %19 : vector<1x256xf32> to vector<64x256xf32>
    %21 = arith.addf %18, %20 : vector<64x256xf32>
    %cst_13 = arith.constant 0.000000e+00 : f32
    %22 = vector.broadcast %cst_13 : f32 to vector<64x256xf32>
    %23 = arith.maximumf %21, %22 : vector<64x256xf32>
    %c0_14 = arith.constant 0 : index
    %c0_15 = arith.constant 0 : index
    %24 = vector.load %arg6[%c0_14, %c0_15] : memref<64x256xf32, #tpu.memory_space<vmem>>, vector<64x256xf32>
    tpu.vector_store %arg6[%c0_14, %c0_15], %23 {strides = array<i32>} : memref<64x256xf32, #tpu.memory_space<vmem>>, vector<64x256xf32>,
    return
  }
  func.func @transform_0(%arg0: i32) -> (i32, i32) {
    %c0_i32 = arith.constant 0 : i32
    %c0_i32_0 = arith.constant 0 : i32
    return %arg0, %c0_i32 : i32, i32
  }
  func.func @transform_1(%arg0: i32) -> (i32, i32) {
    %c0_i32 = arith.constant 0 : i32
    %c0_i32_0 = arith.constant 0 : i32
    %c0_i32_1 = arith.constant 0 : i32
    return %c0_i32, %c0_i32_0 : i32, i32
  }
  func.func @transform_2(%arg0: i32) -> (i32, i32) {
    %c0_i32 = arith.constant 0 : i32
    %c0_i32_0 = arith.constant 0 : i32
    %c0_i32_1 = arith.constant 0 : i32
    return %c0_i32, %c0_i32_0 : i32, i32
  }
  func.func @transform_3(%arg0: i32) -> (i32, i32) {
    %c0_i32 = arith.constant 0 : i32
    %c0_i32_0 = arith.constant 0 : i32
    %c0_i32_1 = arith.constant 0 : i32
    return %c0_i32, %c0_i32_0 : i32, i32
  }
  func.func @transform_4(%arg0: i32) -> (i32, i32) {
    %c0_i32 = arith.constant 0 : i32
    %c0_i32_0 = arith.constant 0 : i32
    %c0_i32_1 = arith.constant 0 : i32
    return %c0_i32, %c0_i32_0 : i32, i32
  }
  func.func @transform_5(%arg0: i32) -> (i32, i32) {
    %c0_i32 = arith.constant 0 : i32
    %c0_i32_0 = arith.constant 0 : i32
    return %arg0, %c0_i32 : i32, i32
  }
}

</mosaic_0001>

<llo_original>
// kernel: tile.13
$region0: #{tile.13}
  #allocation0 [shape = 's32[1]{0}', space=sflag, size = 0x4, scoped, tag = 'scoped memory for tile.13']
  %s0 = inlined_call_operand.vmem [shape: f32[64], index: 0, kind: input, shape index: {}]
  %s1 = inlined_call_operand.vmem [shape: f32[4,64], index: 1, kind: output, shape index: {}]
  // Predicated region
  $region2: #{tile.13} parent=0 // pred_check
    _
  $region3: #{tile.13} parent=0 // pred_check_branch
    %3 = sbr.rel (0) target = $region5
  $region4: #{tile.13} parent=0 // pred_region
    _
  $region5: #{tile.13} parent=0 // pred_fallthru
    _
  %v4 = vld [vmem:[%s0] ss:$0 sm:$0xff]
  %5 = vst [vmem:[%s1] sm:$0xf] %v4

// kernel: tile.14
$region0: #{tile.14}
  %s0 = inlined_call_operand.vmem [shape: f32[4,64], index: 0, kind: input, shape index: {}]
  %s1 = inlined_call_operand.vmem [shape: f32[1,256], index: 1, kind: output, shape index: {}]
  $region1: #{tile.14} parent=0
    #allocation0 [shape = 'u8[8192]{0}', space=vmem, size = 0x2000, scoped, tag = 'scoped mem for output reshape']
    #allocation1 [shape = 'u8[4096]{0}', space=vmem, size = 0x1000, scoped, tag = 'scoped mem for input reshape']
    %s3 = sshll.u32 1, 4
    %s4 = ssub.s32 %s3, 1
    %v5 = vld [vmem:[%s0] sm:%s4]
    %6 = vst [vmem:[#allocation1] sm:%s4] %v5
    %s7 = smov 3
    %v8 = vld [vmem:[#allocation1] ss:$2 sm:%s7]
    %vm9 = vcmask 523264
    %10 = vst.msk [vmem:[#allocation0] ss:$8 sm:$0x3] %vm9, %v8
    %s11 = scalar_lea.vmem [#allocation1], 1
    %s12 = smov 3
    %v13 = vld [vmem:[%s11] ss:$2 sm:%s12]
    %14 = vrot.lane.b32.xlu0 %v13, 64
    %v15 = vpop.permute.xlu0 %14
    %vm16 = vcmask 1048064
    %17 = vst.msk [vmem:[#allocation0] ss:$8 sm:$0x3] %vm16, %v15
    %s19 = sshll.u32 1, 1
    %s20 = ssub.s32 %s19, 1
    %v22 = vld [vmem:[#allocation0] sm:%s20]
    %s23 = sshll.u32 1, 1
    %s24 = ssub.s32 %s23, 1
    %25 = vst [vmem:[%s1] sm:%s24] %v22
    %s26 = scalar_lea.vmem [#allocation0], 8
    %v27 = vld [vmem:[%s26] sm:%s20]
    %s28 = sshll.u32 1, 1
    %s29 = ssub.s32 %s28, 1
    %s30 = scalar_lea.vmem %s1, 1
    %31 = vst [vmem:[%s30] sm:%s29] %v27

// kernel: att_pooling.1
$region0: #{att_pooling.1}
  #allocation0 [shape = 'u32[]', space=smem, size = 0x4, offset = 0x4, fixed_abs, tag = 'smem constant byte address 0x4 - core index']
  #allocation1 [shape = 'u32[144,128]{1,0:T(1,128)}', space=vmem, size = 0x12000, scoped, tag = 'internal scratch']
  %s0 = inlined_call_operand.vmem [shape: f32[4096,128], index: 0, kind: input, shape index: {}]
  %s1 = inlined_call_operand.vmem [shape: f32[128,128], index: 1, kind: input, shape index: {}]
  %s2 = inlined_call_operand.vmem [shape: f32[128,256], index: 2, kind: input, shape index: {}]
  %s3 = inlined_call_operand.vmem [shape: f32[1,256], index: 3, kind: input, shape index: {}]
  %s4 = inlined_call_operand.vmem [shape: f32[1,256], index: 4, kind: input, shape index: {}]
  %s5 = inlined_call_operand.vmem [shape: f32[256,256], index: 5, kind: output, shape index: {}]
  %s6 = sld [smem:[#allocation0]]
  $region53: #{att_pooling.1} parent=0
    _
  %s8 = ssub.s32 1, %s6
  %s9 = scalar_select 0, %s8, %s6
  loop: start=0, step=1, limit=6
  $region2: #{att_pooling.1} parent=0 // loop_pre_header
    _
  $region3: #{att_pooling.1} parent=0 // loop_header
    %s11 = sphi 0, %s15
    %p12 = scmp.ge.s32.totalorder %s11, 6
    %s21 = sphi 0, %s23
    %s24 = sphi 0, %s21
    %s25 = sphi 0, %s24
    %s41 = sphi 0, %s25
    %s45 = sphi 0, %s45
    %s47 = sphi 0, %s45
    %s48 = sphi 0, %s47
    %s62 = sphi 0, %s48
    %s66 = sphi 0, %s66
    %s68 = sphi 0, %s66
    %s69 = sphi 0, %s68
    %s83 = sphi 0, %s69
    %s87 = sphi 0, %s87
    %s89 = sphi 0, %s87
    %s90 = sphi 0, %s89
    %s104 = sphi 0, %s90
    %s108 = sphi 0, %s108
    %s110 = sphi 0, %s108
    %s111 = sphi 0, %s110
    %s125 = sphi 0, %s111
    %s131 = sphi 0, %s133
    %s134 = sphi 0, %s131
    %s135 = sphi 0, %s134
    %s151 = sphi 0, %s135
  $region4: #{att_pooling.1} parent=0 // loop_header_branch
    %14 = sbr.rel (%p12) target = $region8
  $region5: #{att_pooling.1} parent=0 // loop_body
    %s16 = ssub.s32 %s11, 1
    %s17 = ssub.s32 %s11, 2
    %s18 = sadd.s32 %s11, 1
    %s19 = ssub.s32 %s11, %s18
    %p20 = scmp.eq.s32.totalorder %s19, 0
    %s22 = sadd.s32 %s21, 1
    %s23 = scalar_select %p20, %s21, %s22
    %p26 = pneg %p20
    %p27 = scmp.eq.s32.totalorder %s11, 3
    %p28 = por %p26, %p27
    %p29 = scmp.ne.s32.totalorder %s21, %s24
    %p30 = scmp.eq.s32.totalorder %s11, 0
    %p31 = por %p29, %p30
    %p32 = scmp.ne.s32.totalorder %s21, %s24
    %p33 = scmp.eq.s32.totalorder %s16, 3
    %p34 = por %p32, %p33
    %p35 = scmp.ne.s32.totalorder %s24, %s25
    %p36 = scmp.eq.s32.totalorder %s16, 0
    %p37 = por %p35, %p36
    %p38 = scmp.ne.s32.totalorder %s24, %s25
    %p39 = scmp.eq.s32.totalorder %s17, 3
    %p40 = por %p38, %p39
    %p42 = scmp.ne.s32.totalorder %s25, %s41
    %p43 = scmp.eq.s32.totalorder %s17, 0
    %p44 = por %p42, %p43
    %s46 = sadd.s32 %s45, 1
    %p49 = scmp.eq.s32.totalorder %s11, 3
    %p50 = scmp.ne.s32.totalorder %s45, %s47
    %p51 = scmp.eq.s32.totalorder %s11, 0
    %p52 = por %p50, %p51
    %p53 = scmp.ne.s32.totalorder %s45, %s47
    %p54 = scmp.eq.s32.totalorder %s16, 3
    %p55 = por %p53, %p54
    %p56 = scmp.ne.s32.totalorder %s47, %s48
    %p57 = scmp.eq.s32.totalorder %s16, 0
    %p58 = por %p56, %p57
    %p59 = scmp.ne.s32.totalorder %s47, %s48
    %p60 = scmp.eq.s32.totalorder %s17, 3
    %p61 = por %p59, %p60
    %p63 = scmp.ne.s32.totalorder %s48, %s62
    %p64 = scmp.eq.s32.totalorder %s17, 0
    %p65 = por %p63, %p64
    %s67 = sadd.s32 %s66, 1
    %p70 = scmp.eq.s32.totalorder %s11, 3
    %p71 = scmp.ne.s32.totalorder %s66, %s68
    %p72 = scmp.eq.s32.totalorder %s11, 0
    %p73 = por %p71, %p72
    %p74 = scmp.ne.s32.totalorder %s66, %s68
    %p75 = scmp.eq.s32.totalorder %s16, 3
    %p76 = por %p74, %p75
    %p77 = scmp.ne.s32.totalorder %s68, %s69
    %p78 = scmp.eq.s32.totalorder %s16, 0
    %p79 = por %p77, %p78
    %p80 = scmp.ne.s32.totalorder %s68, %s69
    %p81 = scmp.eq.s32.totalorder %s17, 3
    %p82 = por %p80, %p81
    %p84 = scmp.ne.s32.totalorder %s69, %s83
    %p85 = scmp.eq.s32.totalorder %s17, 0
    %p86 = por %p84, %p85
    %s88 = sadd.s32 %s87, 1
    %p91 = scmp.eq.s32.totalorder %s11, 3
    %p92 = scmp.ne.s32.totalorder %s87, %s89
    %p93 = scmp.eq.s32.totalorder %s11, 0
    %p94 = por %p92, %p93
    %p95 = scmp.ne.s32.totalorder %s87, %s89
    %p96 = scmp.eq.s32.totalorder %s16, 3
    %p97 = por %p95, %p96
    %p98 = scmp.ne.s32.totalorder %s89, %s90
    %p99 = scmp.eq.s32.totalorder %s16, 0
    %p100 = por %p98, %p99
    %p101 = scmp.ne.s32.totalorder %s89, %s90
    %p102 = scmp.eq.s32.totalorder %s17, 3
    %p103 = por %p101, %p102
    %p105 = scmp.ne.s32.totalorder %s90, %s104
    %p106 = scmp.eq.s32.totalorder %s17, 0
    %p107 = por %p105, %p106
    %s109 = sadd.s32 %s108, 1
    %p112 = scmp.eq.s32.totalorder %s11, 3
    %p113 = scmp.ne.s32.totalorder %s108, %s110
    %p114 = scmp.eq.s32.totalorder %s11, 0
    %p115 = por %p113, %p114
    %p116 = scmp.ne.s32.totalorder %s108, %s110
    %p117 = scmp.eq.s32.totalorder %s16, 3
    %p118 = por %p116, %p117
    %p119 = scmp.ne.s32.totalorder %s110, %s111
    %p120 = scmp.eq.s32.totalorder %s16, 0
    %p121 = por %p119, %p120
    %p122 = scmp.ne.s32.totalorder %s110, %s111
    %p123 = scmp.eq.s32.totalorder %s17, 3
    %p124 = por %p122, %p123
    %p126 = scmp.ne.s32.totalorder %s111, %s125
    %p127 = scmp.eq.s32.totalorder %s17, 0
    %p128 = por %p126, %p127
    %s129 = ssub.s32 %s11, %s18
    %p130 = scmp.eq.s32.totalorder %s129, 0
    %s132 = sadd.s32 %s131, 1
    %s133 = scalar_select %p130, %s131, %s132
    %p136 = pneg %p130
    %p137 = scmp.eq.s32.totalorder %s11, 3
    %p138 = por %p136, %p137
    %p139 = scmp.ne.s32.totalorder %s131, %s134
    %p140 = scmp.eq.s32.totalorder %s11, 0
    %p141 = por %p139, %p140
    %p142 = scmp.ne.s32.totalorder %s131, %s134
    %p143 = scmp.eq.s32.totalorder %s16, 3
    %p144 = por %p142, %p143
    %p145 = scmp.ne.s32.totalorder %s134, %s135
    %p146 = scmp.eq.s32.totalorder %s16, 0
    %p147 = por %p145, %p146
    %p148 = scmp.ne.s32.totalorder %s134, %s135
    %p149 = scmp.eq.s32.totalorder %s17, 3
    %p150 = por %p148, %p149
    %p152 = scmp.ne.s32.totalorder %s135, %s151
    %p153 = scmp.eq.s32.totalorder %s17, 0
    %p154 = por %p152, %p153
    %p155 = scmp.le.s32.totalorder 1, %s11
    %p156 = scmp.lt.s32.totalorder %s11, 5
    %p157 = pnand %p155, %p156
    %p158 = pneg %p157
    // Predicated region
    $region9: #{att_pooling.1} parent=5 // pred_check
      _
    $region10: #{att_pooling.1} parent=5 // pred_check_branch
      %160 = sbr.rel (%p157) target = $region12
    $region11: #{att_pooling.1} parent=5 // pred_region
      %s161 = ssub.s32 %s11, 1
      // Predicated region
      $region13: #{att_pooling.1} parent=11 // pred_check
        %p162 = pneg %p58
      $region14: #{att_pooling.1} parent=11 // pred_check_branch
        %164 = sbr.rel (%p162) target = $region16
      $region15: #{att_pooling.1} parent=11 // pred_region
        _
      $region16: #{att_pooling.1} parent=11 // pred_fallthru
        _
      // Predicated region
      $region17: #{att_pooling.1} parent=11 // pred_check
        %p165 = pneg %p79
      $region18: #{att_pooling.1} parent=11 // pred_check_branch
        %167 = sbr.rel (%p165) target = $region20
      $region19: #{att_pooling.1} parent=11 // pred_region
        _
      $region20: #{att_pooling.1} parent=11 // pred_fallthru
        _
      // Predicated region
      $region21: #{att_pooling.1} parent=11 // pred_check
        %p168 = pneg %p100
      $region22: #{att_pooling.1} parent=11 // pred_check_branch
        %170 = sbr.rel (%p168) target = $region24
      $region23: #{att_pooling.1} parent=11 // pred_region
        _
      $region24: #{att_pooling.1} parent=11 // pred_fallthru
        _
      // Predicated region
      $region25: #{att_pooling.1} parent=11 // pred_check
        %p171 = pneg %p121
      $region26: #{att_pooling.1} parent=11 // pred_check_branch
        %173 = sbr.rel (%p171) target = $region28
      $region27: #{att_pooling.1} parent=11 // pred_region
        _
      $region28: #{att_pooling.1} parent=11 // pred_fallthru
        _
    $region12: #{att_pooling.1} parent=5 // pred_fallthru
      _
    %p174 = scmp.lt.s32.totalorder %s11, 4
    // Predicated region
    $region29: #{att_pooling.1} parent=5 // pred_check
      %p175 = pneg %p174
    $region30: #{att_pooling.1} parent=5 // pred_check_branch
      %177 = sbr.rel (%p175) target = $region32
    $region31: #{att_pooling.1} parent=5 // pred_region
      // Predicated region
      $region33: #{att_pooling.1} parent=31 // pred_check
        %p178 = pneg %p31
      $region34: #{att_pooling.1} parent=31 // pred_check_branch
        %180 = sbr.rel (%p178) target = $region36
      $region35: #{att_pooling.1} parent=31 // pred_region
        %s181 = smul.u32 128, %s11
        %p182 = scmp.lt.s32.totalorder %s181, 511
        %s183 = scalar_select %p182, %s181, 511
        %s184 = smul.addr %s183, 8
        %s185 = scalar_lea.vmem %s0, %s184
        %s186 = smul.u32 128, %s11
      $region36: #{att_pooling.1} parent=31 // pred_fallthru
        _
    $region32: #{att_pooling.1} parent=5 // pred_fallthru
      _
    %p187 = scmp.le.s32.totalorder 1, %s11
    %p188 = scmp.lt.s32.totalorder %s11, 5
    %p189 = pnand %p187, %p188
    %p190 = pneg %p189
    // Predicated region
    $region37: #{att_pooling.1} parent=5 // pred_check
      _
    $region38: #{att_pooling.1} parent=5 // pred_check_branch
      %192 = sbr.rel (%p189) target = $region40
    $region39: #{att_pooling.1} parent=5 // pred_region
      %s193 = ssub.s32 %s11, 1
      %s194 = smul.u32 128, %s16
      %p195 = scmp.lt.s32.totalorder %s194, 511
      %s196 = scalar_select %p195, %s194, 511
      %s197 = smul.addr %s196, 8
      %s198 = scalar_lea.vmem %s0, %s197
      %p199 = pneg %p37
      %p200 = pneg %p34
      %p201 = pneg %p58
      %p202 = pneg %p55
      %p203 = pneg %p79
      %p204 = pneg %p76
      %p205 = pneg %p100
      %p206 = pneg %p97
      %p207 = pneg %p121
      %p208 = pneg %p118
      %p209 = pneg %p147
      %p210 = pneg %p144
      %s211 = smul.u32 8, %s16
      %p212 = scmp.lt.s32.totalorder %s211, 31
      %s213 = scalar_select %p212, %s211, 31
      %s214 = smul.addr %s213, 2
      %s215 = smul.addr %s214, 8
      %s216 = scalar_lea.vmem %s5, %s215
      %s217 = smul.u32 128, %s16
      %p218 = scmp.lt.s32.totalorder %s217, 511
      %s219 = scalar_select %p218, %s217, 511
      %s220 = smul.addr %s219, 8
      %s221 = scalar_lea.vmem %s0, %s220
      %s222 = smul.u32 128, %s16
      %s223 = smul.u32 8, %s16
      %p224 = scmp.lt.s32.totalorder %s223, 31
      %s225 = scalar_select %p224, %s223, 31
      %s226 = smul.addr %s225, 2
      %s227 = smul.addr %s226, 8
      %s228 = scalar_lea.vmem %s5, %s227
      %s229 = smul.u32 8, %s16
      %v230 = vld [vmem:[%s221] sm:$0xff]
      %v231 = vld [vmem:[%s221 + $0x8] sm:$0xff]
      %v232 = vld [vmem:[%s221 + $0x10] sm:$0xff]
      %v233 = vld [vmem:[%s221 + $0x18] sm:$0xff]
      %v234 = vld [vmem:[%s221 + $0x20] sm:$0xff]
      %v235 = vld [vmem:[%s221 + $0x28] sm:$0xff]
      %v236 = vld [vmem:[%s221 + $0x30] sm:$0xff]
      %v237 = vld [vmem:[%s221 + $0x38] sm:$0xff]
      %v238 = vld [vmem:[%s221 + $0x40] sm:$0xff]
      %v239 = vld [vmem:[%s221 + $0x48] sm:$0xff]
      %v240 = vld [vmem:[%s221 + $0x50] sm:$0xff]
      %v241 = vld [vmem:[%s221 + $0x58] sm:$0xff]
      %v242 = vld [vmem:[%s221 + $0x60] sm:$0xff]
      %v243 = vld [vmem:[%s221 + $0x68] sm:$0xff]
      %v244 = vld [vmem:[%s221 + $0x70] sm:$0xff]
      %v245 = vld [vmem:[%s221 + $0x78] sm:$0xff]
      %v246 = vld [vmem:[%s221 + $0x80] sm:$0xff]
      %v247 = vld [vmem:[%s221 + $0x88] sm:$0xff]
      %v248 = vld [vmem:[%s221 + $0x90] sm:$0xff]
      %v249 = vld [vmem:[%s221 + $0x98] sm:$0xff]
      %v250 = vld [vmem:[%s221 + $0xa0] sm:$0xff]
      %v251 = vld [vmem:[%s221 + $0xa8] sm:$0xff]
      %v252 = vld [vmem:[%s221 + $0xb0] sm:$0xff]
      %v253 = vld [vmem:[%s221 + $0xb8] sm:$0xff]
      %v254 = vld [vmem:[%s221 + $0xc0] sm:$0xff]
      %v255 = vld [vmem:[%s221 + $0xc8] sm:$0xff]
      %v256 = vld [vmem:[%s221 + $0xd0] sm:$0xff]
      %v257 = vld [vmem:[%s221 + $0xd8] sm:$0xff]
      %v258 = vld [vmem:[%s221 + $0xe0] sm:$0xff]
      %v259 = vld [vmem:[%s221 + $0xe8] sm:$0xff]
      %v260 = vld [vmem:[%s221 + $0xf0] sm:$0xff]
      %v261 = vld [vmem:[%s221 + $0xf8] sm:$0xff]
      %v262 = vld [vmem:[%s221 + $0x100] sm:$0xff]
      %v263 = vld [vmem:[%s221 + $0x108] sm:$0xff]
      %v264 = vld [vmem:[%s221 + $0x110] sm:$0xff]
      %v265 = vld [vmem:[%s221 + $0x118] sm:$0xff]
      %v266 = vld [vmem:[%s221 + $0x120] sm:$0xff]
      %v267 = vld [vmem:[%s221 + $0x128] sm:$0xff]
      %v268 = vld [vmem:[%s221 + $0x130] sm:$0xff]
      %v269 = vld [vmem:[%s221 + $0x138] sm:$0xff]
      %v270 = vld [vmem:[%s221 + $0x140] sm:$0xff]
      %v271 = vld [vmem:[%s221 + $0x148] sm:$0xff]
      %v272 = vld [vmem:[%s221 + $0x150] sm:$0xff]
      %v273 = vld [vmem:[%s221 + $0x158] sm:$0xff]
      %v274 = vld [vmem:[%s221 + $0x160] sm:$0xff]
      %v275 = vld [vmem:[%s221 + $0x168] sm:$0xff]
      %v276 = vld [vmem:[%s221 + $0x170] sm:$0xff]
      %v277 = vld [vmem:[%s221 + $0x178] sm:$0xff]
      %v278 = vld [vmem:[%s221 + $0x180] sm:$0xff]
      %v279 = vld [vmem:[%s221 + $0x188] sm:$0xff]
      %v280 = vld [vmem:[%s221 + $0x190] sm:$0xff]
      %v281 = vld [vmem:[%s221 + $0x198] sm:$0xff]
      %v282 = vld [vmem:[%s221 + $0x1a0] sm:$0xff]
      %v283 = vld [vmem:[%s221 + $0x1a8] sm:$0xff]
      %v284 = vld [vmem:[%s221 + $0x1b0] sm:$0xff]
      %v285 = vld [vmem:[%s221 + $0x1b8] sm:$0xff]
      %v286 = vld [vmem:[%s221 + $0x1c0] sm:$0xff]
      %v287 = vld [vmem:[%s221 + $0x1c8] sm:$0xff]
      %v288 = vld [vmem:[%s221 + $0x1d0] sm:$0xff]
      %v289 = vld [vmem:[%s221 + $0x1d8] sm:$0xff]
      %v290 = vld [vmem:[%s221 + $0x1e0] sm:$0xff]
      %v291 = vld [vmem:[%s221 + $0x1e8] sm:$0xff]
      %v292 = vld [vmem:[%s221 + $0x1f0] sm:$0xff]
      %v293 = vld [vmem:[%s221 + $0x1f8] sm:$0xff]
      %v294 = vld [vmem:[%s221 + $0x200] sm:$0xff]
      %v295 = vld [vmem:[%s221 + $0x208] sm:$0xff]
      %v296 = vld [vmem:[%s221 + $0x210] sm:$0xff]
      %v297 = vld [vmem:[%s221 + $0x218] sm:$0xff]
      %v298 = vld [vmem:[%s221 + $0x220] sm:$0xff]
      %v299 = vld [vmem:[%s221 + $0x228] sm:$0xff]
      %v300 = vld [vmem:[%s221 + $0x230] sm:$0xff]
      %v301 = vld [vmem:[%s221 + $0x238] sm:$0xff]
      %v302 = vld [vmem:[%s221 + $0x240] sm:$0xff]
      %v303 = vld [vmem:[%s221 + $0x248] sm:$0xff]
      %v304 = vld [vmem:[%s221 + $0x250] sm:$0xff]
      %v305 = vld [vmem:[%s221 + $0x258] sm:$0xff]
      %v306 = vld [vmem:[%s221 + $0x260] sm:$0xff]
      %v307 = vld [vmem:[%s221 + $0x268] sm:$0xff]
      %v308 = vld [vmem:[%s221 + $0x270] sm:$0xff]
      %v309 = vld [vmem:[%s221 + $0x278] sm:$0xff]
      %v310 = vld [vmem:[%s221 + $0x280] sm:$0xff]
      %v311 = vld [vmem:[%s221 + $0x288] sm:$0xff]
      %v312 = vld [vmem:[%s221 + $0x290] sm:$0xff]
      %v313 = vld [vmem:[%s221 + $0x298] sm:$0xff]
      %v314 = vld [vmem:[%s221 + $0x2a0] sm:$0xff]
      %v315 = vld [vmem:[%s221 + $0x2a8] sm:$0xff]
      %v316 = vld [vmem:[%s221 + $0x2b0] sm:$0xff]
      %v317 = vld [vmem:[%s221 + $0x2b8] sm:$0xff]
      %v318 = vld [vmem:[%s221 + $0x2c0] sm:$0xff]
      %v319 = vld [vmem:[%s221 + $0x2c8] sm:$0xff]
      %v320 = vld [vmem:[%s221 + $0x2d0] sm:$0xff]
      %v321 = vld [vmem:[%s221 + $0x2d8] sm:$0xff]
      %v322 = vld [vmem:[%s221 + $0x2e0] sm:$0xff]
      %v323 = vld [vmem:[%s221 + $0x2e8] sm:$0xff]
      %v324 = vld [vmem:[%s221 + $0x2f0] sm:$0xff]
      %v325 = vld [vmem:[%s221 + $0x2f8] sm:$0xff]
      %v326 = vld [vmem:[%s221 + $0x300] sm:$0xff]
      %v327 = vld [vmem:[%s221 + $0x308] sm:$0xff]
      %v328 = vld [vmem:[%s221 + $0x310] sm:$0xff]
      %v329 = vld [vmem:[%s221 + $0x318] sm:$0xff]
      %v330 = vld [vmem:[%s221 + $0x320] sm:$0xff]
      %v331 = vld [vmem:[%s221 + $0x328] sm:$0xff]
      %v332 = vld [vmem:[%s221 + $0x330] sm:$0xff]
      %v333 = vld [vmem:[%s221 + $0x338] sm:$0xff]
      %v334 = vld [vmem:[%s221 + $0x340] sm:$0xff]
      %v335 = vld [vmem:[%s221 + $0x348] sm:$0xff]
      %v336 = vld [vmem:[%s221 + $0x350] sm:$0xff]
      %v337 = vld [vmem:[%s221 + $0x358] sm:$0xff]
      %v338 = vld [vmem:[%s221 + $0x360] sm:$0xff]
      %v339 = vld [vmem:[%s221 + $0x368] sm:$0xff]
      %v340 = vld [vmem:[%s221 + $0x370] sm:$0xff]
      %v341 = vld [vmem:[%s221 + $0x378] sm:$0xff]
      %v342 = vld [vmem:[%s221 + $0x380] sm:$0xff]
      %v343 = vld [vmem:[%s221 + $0x388] sm:$0xff]
      %v344 = vld [vmem:[%s221 + $0x390] sm:$0xff]
      %v345 = vld [vmem:[%s221 + $0x398] sm:$0xff]
      %v346 = vld [vmem:[%s221 + $0x3a0] sm:$0xff]
      %v347 = vld [vmem:[%s221 + $0x3a8] sm:$0xff]
      %v348 = vld [vmem:[%s221 + $0x3b0] sm:$0xff]
      %v349 = vld [vmem:[%s221 + $0x3b8] sm:$0xff]
      %v350 = vld [vmem:[%s221 + $0x3c0] sm:$0xff]
      %v351 = vld [vmem:[%s221 + $0x3c8] sm:$0xff]
      %v352 = vld [vmem:[%s221 + $0x3d0] sm:$0xff]
      %v353 = vld [vmem:[%s221 + $0x3d8] sm:$0xff]
      %v354 = vld [vmem:[%s221 + $0x3e0] sm:$0xff]
      %v355 = vld [vmem:[%s221 + $0x3e8] sm:$0xff]
      %v356 = vld [vmem:[%s221 + $0x3f0] sm:$0xff]
      %v357 = vld [vmem:[%s221 + $0x3f8] sm:$0xff]
      %v358 = vld [vmem:[%s1] sm:$0xff]
      %v359 = vld [vmem:[%s1 + $0x8] sm:$0xff]
      %v360 = vld [vmem:[%s1 + $0x10] sm:$0xff]
      %v361 = vld [vmem:[%s1 + $0x18] sm:$0xff]
      %v362 = vld [vmem:[%s1 + $0x20] sm:$0xff]
      %v363 = vld [vmem:[%s1 + $0x28] sm:$0xff]
      %v364 = vld [vmem:[%s1 + $0x30] sm:$0xff]
      %v365 = vld [vmem:[%s1 + $0x38] sm:$0xff]
      %v366 = vld [vmem:[%s1 + $0x40] sm:$0xff]
      %v367 = vld [vmem:[%s1 + $0x48] sm:$0xff]
      %v368 = vld [vmem:[%s1 + $0x50] sm:$0xff]
      %v369 = vld [vmem:[%s1 + $0x58] sm:$0xff]
      %v370 = vld [vmem:[%s1 + $0x60] sm:$0xff]
      %v371 = vld [vmem:[%s1 + $0x68] sm:$0xff]
      %v372 = vld [vmem:[%s1 + $0x70] sm:$0xff]
      %v373 = vld [vmem:[%s1 + $0x78] sm:$0xff]
      %374 = vmatprep.subr.mxu0 0.0
      %375 = vmatpush1.msra.mxu0 %v373
      %376 = vmatprep.subr.mxu0 0.0
      %377 = vmatpush1.msra.mxu0 %v372
      %378 = vmatprep.subr.mxu0 0.0
      %379 = vmatpush1.msra.mxu0 %v371
      %380 = vmatprep.subr.mxu0 0.0
      %381 = vmatpush1.msra.mxu0 %v370
      %382 = vmatprep.subr.mxu0 0.0
      %383 = vmatpush1.msra.mxu0 %v369
      %384 = vmatprep.subr.mxu0 0.0
      %385 = vmatpush1.msra.mxu0 %v368
      %386 = vmatprep.subr.mxu0 0.0
      %387 = vmatpush1.msra.mxu0 %v367
      %388 = vmatprep.subr.mxu0 0.0
      %389 = vmatpush1.msra.mxu0 %v366
      %390 = vmatprep.subr.mxu0 0.0
      %391 = vmatpush1.msra.mxu0 %v365
      %392 = vmatprep.subr.mxu0 0.0
      %393 = vmatpush1.msra.mxu0 %v364
      %394 = vmatprep.subr.mxu0 0.0
      %395 = vmatpush1.msra.mxu0 %v363
      %396 = vmatprep.subr.mxu0 0.0
      %397 = vmatpush1.msra.mxu0 %v362
      %398 = vmatprep.subr.mxu0 0.0
      %399 = vmatpush1.msra.mxu0 %v361
      %400 = vmatprep.subr.mxu0 0.0
      %401 = vmatpush1.msra.mxu0 %v360
      %402 = vmatprep.subr.mxu0 0.0
      %403 = vmatpush1.msra.mxu0 %v359
      %404 = vmatprep.subr.mxu0 0.0
      %405 = vmatpush1.msra.mxu0 %v358
      %406 = vmatprep.subr.mxu0 0.0
      %407 = vmatpush2.msra.mxu0 0.0
      %408 = vmatprep.subr.mxu0 0.0
      %409 = vmatpush2.msra.mxu0 0.0
      %410 = vmatprep.subr.mxu0 0.0
      %411 = vmatpush2.msra.mxu0 0.0
      %412 = vmatprep.subr.mxu0 0.0
      %413 = vmatpush2.msra.mxu0 0.0
      %414 = vmatprep.subr.mxu0 0.0
      %415 = vmatpush2.msra.mxu0 0.0
      %416 = vmatprep.subr.mxu0 0.0
      %417 = vmatpush2.msra.mxu0 0.0
      %418 = vmatprep.subr.mxu0 0.0
      %419 = vmatpush2.msra.mxu0 0.0
      %420 = vmatprep.subr.mxu0 0.0
      %421 = vmatpush2.msra.mxu0 0.0
      %422 = vmatprep.subr.mxu0 0.0
      %423 = vmatpush2.msra.mxu0 0.0
      %424 = vmatprep.subr.mxu0 0.0
      %425 = vmatpush2.msra.mxu0 0.0
      %426 = vmatprep.subr.mxu0 0.0
      %427 = vmatpush2.msra.mxu0 0.0
      %428 = vmatprep.subr.mxu0 0.0
      %429 = vmatpush2.msra.mxu0 0.0
      %430 = vmatprep.subr.mxu0 0.0
      %431 = vmatpush2.msra.mxu0 0.0
      %432 = vmatprep.subr.mxu0 0.0
      %433 = vmatpush2.msra.mxu0 0.0
      %434 = vmatprep.subr.mxu0 0.0
      %435 = vmatpush2.msra.mxu0 0.0
      %436 = vmatprep.subr.mxu0 0.0
      %437 = vmatpush2.msra.mxu0 0.0
      %438 = vmatprep.mubr.f32.mxu0 0.0
      %439 = vmatmul.mubr.f32.gmra.mxu0 %v230
      %v440 = vpop.f32.mrf.mxu0
      %v441 = vadd.f32 0.0, %v440
      %v442 = vpop.f32.mrf.mxu0
      %443 = vmatprep.mubr.f32.mxu0 0.0
      %444 = vmatmul.mubr.f32.gmra.mxu0 %v231
      %v445 = vpop.f32.mrf.mxu0
      %v446 = vadd.f32 0.0, %v445
      %v447 = vpop.f32.mrf.mxu0
      %448 = vmatprep.mubr.f32.mxu0 0.0
      %449 = vmatmul.mubr.f32.gmra.mxu0 %v232
      %v450 = vpop.f32.mrf.mxu0
      %v451 = vadd.f32 0.0, %v450
      %v452 = vpop.f32.mrf.mxu0
      %453 = vmatprep.mubr.f32.mxu0 0.0
      %454 = vmatmul.mubr.f32.gmra.mxu0 %v233
      %v455 = vpop.f32.mrf.mxu0
      %v456 = vadd.f32 0.0, %v455
      %v457 = vpop.f32.mrf.mxu0
      %458 = vmatprep.mubr.f32.mxu0 0.0
      %459 = vmatmul.mubr.f32.gmra.mxu0 %v234
      %v460 = vpop.f32.mrf.mxu0
      %v461 = vadd.f32 0.0, %v460
      %v462 = vpop.f32.mrf.mxu0
      %463 = vmatprep.mubr.f32.mxu0 0.0
      %464 = vmatmul.mubr.f32.gmra.mxu0 %v235
      %v465 = vpop.f32.mrf.mxu0
      %v466 = vadd.f32 0.0, %v465
      %v467 = vpop.f32.mrf.mxu0
      %468 = vmatprep.mubr.f32.mxu0 0.0
      %469 = vmatmul.mubr.f32.gmra.mxu0 %v236
      %v470 = vpop.f32.mrf.mxu0
      %v471 = vadd.f32 0.0, %v470
      %v472 = vpop.f32.mrf.mxu0
      %473 = vmatprep.mubr.f32.mxu0 0.0
      %474 = vmatmul.mubr.f32.gmra.mxu0 %v237
      %v475 = vpop.f32.mrf.mxu0
      %v476 = vadd.f32 0.0, %v475
      %v477 = vpop.f32.mrf.mxu0
      %478 = vmatprep.mubr.f32.mxu0 0.0
      %479 = vmatmul.mubr.f32.gmra.mxu0 %v238
      %v480 = vpop.f32.mrf.mxu0
      %v481 = vadd.f32 0.0, %v480
      %v482 = vpop.f32.mrf.mxu0
      %483 = vmatprep.mubr.f32.mxu0 0.0
      %484 = vmatmul.mubr.f32.gmra.mxu0 %v239
      %v485 = vpop.f32.mrf.mxu0
      %v486 = vadd.f32 0.0, %v485
      %v487 = vpop.f32.mrf.mxu0
      %488 = vmatprep.mubr.f32.mxu0 0.0
      %489 = vmatmul.mubr.f32.gmra.mxu0 %v240
      %v490 = vpop.f32.mrf.mxu0
      %v491 = vadd.f32 0.0, %v490
      %v492 = vpop.f32.mrf.mxu0
      %493 = vmatprep.mubr.f32.mxu0 0.0
      %494 = vmatmul.mubr.f32.gmra.mxu0 %v241
      %v495 = vpop.f32.mrf.mxu0
      %v496 = vadd.f32 0.0, %v495
      %v497 = vpop.f32.mrf.mxu0
      %498 = vmatprep.mubr.f32.mxu0 0.0
      %499 = vmatmul.mubr.f32.gmra.mxu0 %v242
      %v500 = vpop.f32.mrf.mxu0
      %v501 = vadd.f32 0.0, %v500
      %v502 = vpop.f32.mrf.mxu0
      %503 = vmatprep.mubr.f32.mxu0 0.0
      %504 = vmatmul.mubr.f32.gmra.mxu0 %v243
      %v505 = vpop.f32.mrf.mxu0
      %v506 = vadd.f32 0.0, %v505
      %v507 = vpop.f32.mrf.mxu0
      %508 = vmatprep.mubr.f32.mxu0 0.0
      %509 = vmatmul.mubr.f32.gmra.mxu0 %v244
      %v510 = vpop.f32.mrf.mxu0
      %v511 = vadd.f32 0.0, %v510
      %v512 = vpop.f32.mrf.mxu0
      %513 = vmatprep.mubr.f32.mxu0 0.0
      %514 = vmatmul.mubr.f32.gmra.mxu0 %v245
      %v515 = vpop.f32.mrf.mxu0
      %v516 = vadd.f32 0.0, %v515
      %v517 = vpop.f32.mrf.mxu0
      %518 = vmatprep.mubr.f32.mxu0 0.0
      %519 = vmatmul.mubr.f32.gmra.mxu0 %v246
      %v520 = vpop.f32.mrf.mxu0
      %v521 = vadd.f32 0.0, %v520
      %v522 = vpop.f32.mrf.mxu0
      %523 = vmatprep.mubr.f32.mxu0 0.0
      %524 = vmatmul.mubr.f32.gmra.mxu0 %v247
      %v525 = vpop.f32.mrf.mxu0
      %v526 = vadd.f32 0.0, %v525
      %v527 = vpop.f32.mrf.mxu0
      %528 = vmatprep.mubr.f32.mxu0 0.0
      %529 = vmatmul.mubr.f32.gmra.mxu0 %v248
      %v530 = vpop.f32.mrf.mxu0
      %v531 = vadd.f32 0.0, %v530
      %v532 = vpop.f32.mrf.mxu0
      %533 = vmatprep.mubr.f32.mxu0 0.0
      %534 = vmatmul.mubr.f32.gmra.mxu0 %v249
      %v535 = vpop.f32.mrf.mxu0
      %v536 = vadd.f32 0.0, %v535
      %v537 = vpop.f32.mrf.mxu0
      %538 = vmatprep.mubr.f32.mxu0 0.0
      %539 = vmatmul.mubr.f32.gmra.mxu0 %v250
      %v540 = vpop.f32.mrf.mxu0
      %v541 = vadd.f32 0.0, %v540
      %v542 = vpop.f32.mrf.mxu0
      %543 = vmatprep.mubr.f32.mxu0 0.0
      %544 = vmatmul.mubr.f32.gmra.mxu0 %v251
      %v545 = vpop.f32.mrf.mxu0
      %v546 = vadd.f32 0.0, %v545
      %v547 = vpop.f32.mrf.mxu0
      %548 = vmatprep.mubr.f32.mxu0 0.0
      %549 = vmatmul.mubr.f32.gmra.mxu0 %v252
      %v550 = vpop.f32.mrf.mxu0
      %v551 = vadd.f32 0.0, %v550
      %v552 = vpop.f32.mrf.mxu0
      %553 = vmatprep.mubr.f32.mxu0 0.0
      %554 = vmatmul.mubr.f32.gmra.mxu0 %v253
      %v555 = vpop.f32.mrf.mxu0
      %v556 = vadd.f32 0.0, %v555
      %v557 = vpop.f32.mrf.mxu0
      %558 = vmatprep.mubr.f32.mxu0 0.0
      %559 = vmatmul.mubr.f32.gmra.mxu0 %v254
      %v560 = vpop.f32.mrf.mxu0
      %v561 = vadd.f32 0.0, %v560
      %v562 = vpop.f32.mrf.mxu0
      %563 = vmatprep.mubr.f32.mxu0 0.0
      %564 = vmatmul.mubr.f32.gmra.mxu0 %v255
      %v565 = vpop.f32.mrf.mxu0
      %v566 = vadd.f32 0.0, %v565
      %v567 = vpop.f32.mrf.mxu0
      %568 = vmatprep.mubr.f32.mxu0 0.0
      %569 = vmatmul.mubr.f32.gmra.mxu0 %v256
      %v570 = vpop.f32.mrf.mxu0
      %v571 = vadd.f32 0.0, %v570
      %v572 = vpop.f32.mrf.mxu0
      %573 = vmatprep.mubr.f32.mxu0 0.0
      %574 = vmatmul.mubr.f32.gmra.mxu0 %v257
      %v575 = vpop.f32.mrf.mxu0
      %v576 = vadd.f32 0.0, %v575
      %v577 = vpop.f32.mrf.mxu0
      %578 = vmatprep.mubr.f32.mxu0 0.0
      %579 = vmatmul.mubr.f32.gmra.mxu0 %v258
      %v580 = vpop.f32.mrf.mxu0
      %v581 = vadd.f32 0.0, %v580
      %v582 = vpop.f32.mrf.mxu0
      %583 = vmatprep.mubr.f32.mxu0 0.0
      %584 = vmatmul.mubr.f32.gmra.mxu0 %v259
      %v585 = vpop.f32.mrf.mxu0
      %v586 = vadd.f32 0.0, %v585
      %v587 = vpop.f32.mrf.mxu0
      %588 = vmatprep.mubr.f32.mxu0 0.0
      %589 = vmatmul.mubr.f32.gmra.mxu0 %v260
      %v590 = vpop.f32.mrf.mxu0
      %v591 = vadd.f32 0.0, %v590
      %v592 = vpop.f32.mrf.mxu0
      %593 = vmatprep.mubr.f32.mxu0 0.0
      %594 = vmatmul.mubr.f32.gmra.mxu0 %v261
      %v595 = vpop.f32.mrf.mxu0
      %v596 = vadd.f32 0.0, %v595
      %v597 = vpop.f32.mrf.mxu0
      %598 = vmatprep.mubr.f32.mxu0 0.0
      %599 = vmatmul.mubr.f32.gmra.mxu0 %v262
      %v600 = vpop.f32.mrf.mxu0
      %v601 = vadd.f32 0.0, %v600
      %v602 = vpop.f32.mrf.mxu0
      %603 = vmatprep.mubr.f32.mxu0 0.0
      %604 = vmatmul.mubr.f32.gmra.mxu0 %v263
      %v605 = vpop.f32.mrf.mxu0
      %v606 = vadd.f32 0.0, %v605
      %v607 = vpop.f32.mrf.mxu0
      %608 = vmatprep.mubr.f32.mxu0 0.0
      %609 = vmatmul.mubr.f32.gmra.mxu0 %v264
      %v610 = vpop.f32.mrf.mxu0
      %v611 = vadd.f32 0.0, %v610
      %v612 = vpop.f32.mrf.mxu0
      %613 = vmatprep.mubr.f32.mxu0 0.0
      %614 = vmatmul.mubr.f32.gmra.mxu0 %v265
      %v615 = vpop.f32.mrf.mxu0
      %v616 = vadd.f32 0.0, %v615
      %v617 = vpop.f32.mrf.mxu0
      %618 = vmatprep.mubr.f32.mxu0 0.0
      %619 = vmatmul.mubr.f32.gmra.mxu0 %v266
      %v620 = vpop.f32.mrf.mxu0
      %v621 = vadd.f32 0.0, %v620
      %v622 = vpop.f32.mrf.mxu0
      %623 = vmatprep.mubr.f32.mxu0 0.0
      %624 = vmatmul.mubr.f32.gmra.mxu0 %v267
      %v625 = vpop.f32.mrf.mxu0
      %v626 = vadd.f32 0.0, %v625
      %v627 = vpop.f32.mrf.mxu0
      %628 = vmatprep.mubr.f32.mxu0 0.0
      %629 = vmatmul.mubr.f32.gmra.mxu0 %v268
      %v630 = vpop.f32.mrf.mxu0
      %v631 = vadd.f32 0.0, %v630
      %v632 = vpop.f32.mrf.mxu0
      %633 = vmatprep.mubr.f32.mxu0 0.0
      %634 = vmatmul.mubr.f32.gmra.mxu0 %v269
      %v635 = vpop.f32.mrf.mxu0
      %v636 = vadd.f32 0.0, %v635
      %v637 = vpop.f32.mrf.mxu0
      %638 = vmatprep.mubr.f32.mxu0 0.0
      %639 = vmatmul.mubr.f32.gmra.mxu0 %v270
      %v640 = vpop.f32.mrf.mxu0
      %v641 = vadd.f32 0.0, %v640
      %v642 = vpop.f32.mrf.mxu0
      %643 = vmatprep.mubr.f32.mxu0 0.0
      %644 = vmatmul.mubr.f32.gmra.mxu0 %v271
      %v645 = vpop.f32.mrf.mxu0
      %v646 = vadd.f32 0.0, %v645
      %v647 = vpop.f32.mrf.mxu0
      %648 = vmatprep.mubr.f32.mxu0 0.0
      %649 = vmatmul.mubr.f32.gmra.mxu0 %v272
      %v650 = vpop.f32.mrf.mxu0
      %v651 = vadd.f32 0.0, %v650
      %v652 = vpop.f32.mrf.mxu0
      %653 = vmatprep.mubr.f32.mxu0 0.0
      %654 = vmatmul.mubr.f32.gmra.mxu0 %v273
      %v655 = vpop.f32.mrf.mxu0
      %v656 = vadd.f32 0.0, %v655
      %v657 = vpop.f32.mrf.mxu0
      %658 = vmatprep.mubr.f32.mxu0 0.0
      %659 = vmatmul.mubr.f32.gmra.mxu0 %v274
      %v660 = vpop.f32.mrf.mxu0
      %v661 = vadd.f32 0.0, %v660
      %v662 = vpop.f32.mrf.mxu0
      %663 = vmatprep.mubr.f32.mxu0 0.0
      %664 = vmatmul.mubr.f32.gmra.mxu0 %v275
      %v665 = vpop.f32.mrf.mxu0
      %v666 = vadd.f32 0.0, %v665
      %v667 = vpop.f32.mrf.mxu0
      %668 = vmatprep.mubr.f32.mxu0 0.0
      %669 = vmatmul.mubr.f32.gmra.mxu0 %v276
      %v670 = vpop.f32.mrf.mxu0
      %v671 = vadd.f32 0.0, %v670
      %v672 = vpop.f32.mrf.mxu0
      %673 = vmatprep.mubr.f32.mxu0 0.0
      %674 = vmatmul.mubr.f32.gmra.mxu0 %v277
      %v675 = vpop.f32.mrf.mxu0
      %v676 = vadd.f32 0.0, %v675
      %v677 = vpop.f32.mrf.mxu0
      %678 = vmatprep.mubr.f32.mxu0 0.0
      %679 = vmatmul.mubr.f32.gmra.mxu0 %v278
      %v680 = vpop.f32.mrf.mxu0
      %v681 = vadd.f32 0.0, %v680
      %v682 = vpop.f32.mrf.mxu0
      %683 = vmatprep.mubr.f32.mxu0 0.0
      %684 = vmatmul.mubr.f32.gmra.mxu0 %v279
      %v685 = vpop.f32.mrf.mxu0
      %v686 = vadd.f32 0.0, %v685
      %v687 = vpop.f32.mrf.mxu0
      %688 = vmatprep.mubr.f32.mxu0 0.0
      %689 = vmatmul.mubr.f32.gmra.mxu0 %v280
      %v690 = vpop.f32.mrf.mxu0
      %v691 = vadd.f32 0.0, %v690
      %v692 = vpop.f32.mrf.mxu0
      %693 = vmatprep.mubr.f32.mxu0 0.0
      %694 = vmatmul.mubr.f32.gmra.mxu0 %v281
      %v695 = vpop.f32.mrf.mxu0
      %v696 = vadd.f32 0.0, %v695
      %v697 = vpop.f32.mrf.mxu0
      %698 = vmatprep.mubr.f32.mxu0 0.0
      %699 = vmatmul.mubr.f32.gmra.mxu0 %v282
      %v700 = vpop.f32.mrf.mxu0
      %v701 = vadd.f32 0.0, %v700
      %v702 = vpop.f32.mrf.mxu0
      %703 = vmatprep.mubr.f32.mxu0 0.0
      %704 = vmatmul.mubr.f32.gmra.mxu0 %v283
      %v705 = vpop.f32.mrf.mxu0
      %v706 = vadd.f32 0.0, %v705
      %v707 = vpop.f32.mrf.mxu0
      %708 = vmatprep.mubr.f32.mxu0 0.0
      %709 = vmatmul.mubr.f32.gmra.mxu0 %v284
      %v710 = vpop.f32.mrf.mxu0
      %v711 = vadd.f32 0.0, %v710
      %v712 = vpop.f32.mrf.mxu0
      %713 = vmatprep.mubr.f32.mxu0 0.0
      %714 = vmatmul.mubr.f32.gmra.mxu0 %v285
      %v715 = vpop.f32.mrf.mxu0
      %v716 = vadd.f32 0.0, %v715
      %v717 = vpop.f32.mrf.mxu0
      %718 = vmatprep.mubr.f32.mxu0 0.0
      %719 = vmatmul.mubr.f32.gmra.mxu0 %v286
      %v720 = vpop.f32.mrf.mxu0
      %v721 = vadd.f32 0.0, %v720
      %v722 = vpop.f32.mrf.mxu0
      %723 = vmatprep.mubr.f32.mxu0 0.0
      %724 = vmatmul.mubr.f32.gmra.mxu0 %v287
      %v725 = vpop.f32.mrf.mxu0
      %v726 = vadd.f32 0.0, %v725
      %v727 = vpop.f32.mrf.mxu0
      %728 = vmatprep.mubr.f32.mxu0 0.0
      %729 = vmatmul.mubr.f32.gmra.mxu0 %v288
      %v730 = vpop.f32.mrf.mxu0
      %v731 = vadd.f32 0.0, %v730
      %v732 = vpop.f32.mrf.mxu0
      %733 = vmatprep.mubr.f32.mxu0 0.0
      %734 = vmatmul.mubr.f32.gmra.mxu0 %v289
      %v735 = vpop.f32.mrf.mxu0
      %v736 = vadd.f32 0.0, %v735
      %v737 = vpop.f32.mrf.mxu0
      %738 = vmatprep.mubr.f32.mxu0 0.0
      %739 = vmatmul.mubr.f32.gmra.mxu0 %v290
      %v740 = vpop.f32.mrf.mxu0
      %v741 = vadd.f32 0.0, %v740
      %v742 = vpop.f32.mrf.mxu0
      %743 = vmatprep.mubr.f32.mxu0 0.0
      %744 = vmatmul.mubr.f32.gmra.mxu0 %v291
      %v745 = vpop.f32.mrf.mxu0
      %v746 = vadd.f32 0.0, %v745
      %v747 = vpop.f32.mrf.mxu0
      %748 = vmatprep.mubr.f32.mxu0 0.0
      %749 = vmatmul.mubr.f32.gmra.mxu0 %v292
      %v750 = vpop.f32.mrf.mxu0
      %v751 = vadd.f32 0.0, %v750
      %v752 = vpop.f32.mrf.mxu0
      %753 = vmatprep.mubr.f32.mxu0 0.0
      %754 = vmatmul.mubr.f32.gmra.mxu0 %v293
      %v755 = vpop.f32.mrf.mxu0
      %v756 = vadd.f32 0.0, %v755
      %v757 = vpop.f32.mrf.mxu0
      %758 = vmatprep.mubr.f32.mxu0 0.0
      %759 = vmatmul.mubr.f32.gmra.mxu0 %v294
      %v760 = vpop.f32.mrf.mxu0
      %v761 = vadd.f32 0.0, %v760
      %v762 = vpop.f32.mrf.mxu0
      %763 = vmatprep.mubr.f32.mxu0 0.0
      %764 = vmatmul.mubr.f32.gmra.mxu0 %v295
      %v765 = vpop.f32.mrf.mxu0
      %v766 = vadd.f32 0.0, %v765
      %v767 = vpop.f32.mrf.mxu0
      %768 = vmatprep.mubr.f32.mxu0 0.0
      %769 = vmatmul.mubr.f32.gmra.mxu0 %v296
      %v770 = vpop.f32.mrf.mxu0
      %v771 = vadd.f32 0.0, %v770
      %v772 = vpop.f32.mrf.mxu0
      %773 = vmatprep.mubr.f32.mxu0 0.0
      %774 = vmatmul.mubr.f32.gmra.mxu0 %v297
      %v775 = vpop.f32.mrf.mxu0
      %v776 = vadd.f32 0.0, %v775
      %v777 = vpop.f32.mrf.mxu0
      %778 = vmatprep.mubr.f32.mxu0 0.0
      %779 = vmatmul.mubr.f32.gmra.mxu0 %v298
      %v780 = vpop.f32.mrf.mxu0
      %v781 = vadd.f32 0.0, %v780
      %v782 = vpop.f32.mrf.mxu0
      %783 = vmatprep.mubr.f32.mxu0 0.0
      %784 = vmatmul.mubr.f32.gmra.mxu0 %v299
      %v785 = vpop.f32.mrf.mxu0
      %v786 = vadd.f32 0.0, %v785
      %v787 = vpop.f32.mrf.mxu0
      %788 = vmatprep.mubr.f32.mxu0 0.0
      %789 = vmatmul.mubr.f32.gmra.mxu0 %v300
      %v790 = vpop.f32.mrf.mxu0
      %v791 = vadd.f32 0.0, %v790
      %v792 = vpop.f32.mrf.mxu0
      %793 = vmatprep.mubr.f32.mxu0 0.0
      %794 = vmatmul.mubr.f32.gmra.mxu0 %v301
      %v795 = vpop.f32.mrf.mxu0
      %v796 = vadd.f32 0.0, %v795
      %v797 = vpop.f32.mrf.mxu0
      %798 = vmatprep.mubr.f32.mxu0 0.0
      %799 = vmatmul.mubr.f32.gmra.mxu0 %v302
      %v800 = vpop.f32.mrf.mxu0
      %v801 = vadd.f32 0.0, %v800
      %v802 = vpop.f32.mrf.mxu0
      %803 = vmatprep.mubr.f32.mxu0 0.0
      %804 = vmatmul.mubr.f32.gmra.mxu0 %v303
      %v805 = vpop.f32.mrf.mxu0
      %v806 = vadd.f32 0.0, %v805
      %v807 = vpop.f32.mrf.mxu0
      %808 = vmatprep.mubr.f32.mxu0 0.0
      %809 = vmatmul.mubr.f32.gmra.mxu0 %v304
      %v810 = vpop.f32.mrf.mxu0
      %v811 = vadd.f32 0.0, %v810
      %v812 = vpop.f32.mrf.mxu0
      %813 = vmatprep.mubr.f32.mxu0 0.0
      %814 = vmatmul.mubr.f32.gmra.mxu0 %v305
      %v815 = vpop.f32.mrf.mxu0
      %v816 = vadd.f32 0.0, %v815
      %v817 = vpop.f32.mrf.mxu0
      %818 = vmatprep.mubr.f32.mxu0 0.0
      %819 = vmatmul.mubr.f32.gmra.mxu0 %v306
      %v820 = vpop.f32.mrf.mxu0
      %v821 = vadd.f32 0.0, %v820
      %v822 = vpop.f32.mrf.mxu0
      %823 = vmatprep.mubr.f32.mxu0 0.0
      %824 = vmatmul.mubr.f32.gmra.mxu0 %v307
      %v825 = vpop.f32.mrf.mxu0
      %v826 = vadd.f32 0.0, %v825
      %v827 = vpop.f32.mrf.mxu0
      %828 = vmatprep.mubr.f32.mxu0 0.0
      %829 = vmatmul.mubr.f32.gmra.mxu0 %v308
      %v830 = vpop.f32.mrf.mxu0
      %v831 = vadd.f32 0.0, %v830
      %v832 = vpop.f32.mrf.mxu0
      %833 = vmatprep.mubr.f32.mxu0 0.0
      %834 = vmatmul.mubr.f32.gmra.mxu0 %v309
      %v835 = vpop.f32.mrf.mxu0
      %v836 = vadd.f32 0.0, %v835
      %v837 = vpop.f32.mrf.mxu0
      %838 = vmatprep.mubr.f32.mxu0 0.0
      %839 = vmatmul.mubr.f32.gmra.mxu0 %v310
      %v840 = vpop.f32.mrf.mxu0
      %v841 = vadd.f32 0.0, %v840
      %v842 = vpop.f32.mrf.mxu0
      %843 = vmatprep.mubr.f32.mxu0 0.0
      %844 = vmatmul.mubr.f32.gmra.mxu0 %v311
      %v845 = vpop.f32.mrf.mxu0
      %v846 = vadd.f32 0.0, %v845
      %v847 = vpop.f32.mrf.mxu0
      %848 = vmatprep.mubr.f32.mxu0 0.0
      %849 = vmatmul.mubr.f32.gmra.mxu0 %v312
      %v850 = vpop.f32.mrf.mxu0
      %v851 = vadd.f32 0.0, %v850
      %v852 = vpop.f32.mrf.mxu0
      %853 = vmatprep.mubr.f32.mxu0 0.0
      %854 = vmatmul.mubr.f32.gmra.mxu0 %v313
      %v855 = vpop.f32.mrf.mxu0
      %v856 = vadd.f32 0.0, %v855
      %v857 = vpop.f32.mrf.mxu0
      %858 = vmatprep.mubr.f32.mxu0 0.0
      %859 = vmatmul.mubr.f32.gmra.mxu0 %v314
      %v860 = vpop.f32.mrf.mxu0
      %v861 = vadd.f32 0.0, %v860
      %v862 = vpop.f32.mrf.mxu0
      %863 = vmatprep.mubr.f32.mxu0 0.0
      %864 = vmatmul.mubr.f32.gmra.mxu0 %v315
      %v865 = vpop.f32.mrf.mxu0
      %v866 = vadd.f32 0.0, %v865
      %v867 = vpop.f32.mrf.mxu0
      %868 = vmatprep.mubr.f32.mxu0 0.0
      %869 = vmatmul.mubr.f32.gmra.mxu0 %v316
      %v870 = vpop.f32.mrf.mxu0
      %v871 = vadd.f32 0.0, %v870
      %v872 = vpop.f32.mrf.mxu0
      %873 = vmatprep.mubr.f32.mxu0 0.0
      %874 = vmatmul.mubr.f32.gmra.mxu0 %v317
      %v875 = vpop.f32.mrf.mxu0
      %v876 = vadd.f32 0.0, %v875
      %v877 = vpop.f32.mrf.mxu0
      %878 = vmatprep.mubr.f32.mxu0 0.0
      %879 = vmatmul.mubr.f32.gmra.mxu0 %v318
      %v880 = vpop.f32.mrf.mxu0
      %v881 = vadd.f32 0.0, %v880
      %v882 = vpop.f32.mrf.mxu0
      %883 = vmatprep.mubr.f32.mxu0 0.0
      %884 = vmatmul.mubr.f32.gmra.mxu0 %v319
      %v885 = vpop.f32.mrf.mxu0
      %v886 = vadd.f32 0.0, %v885
      %v887 = vpop.f32.mrf.mxu0
      %888 = vmatprep.mubr.f32.mxu0 0.0
      %889 = vmatmul.mubr.f32.gmra.mxu0 %v320
      %v890 = vpop.f32.mrf.mxu0
      %v891 = vadd.f32 0.0, %v890
      %v892 = vpop.f32.mrf.mxu0
      %893 = vmatprep.mubr.f32.mxu0 0.0
      %894 = vmatmul.mubr.f32.gmra.mxu0 %v321
      %v895 = vpop.f32.mrf.mxu0
      %v896 = vadd.f32 0.0, %v895
      %v897 = vpop.f32.mrf.mxu0
      %898 = vmatprep.mubr.f32.mxu0 0.0
      %899 = vmatmul.mubr.f32.gmra.mxu0 %v322
      %v900 = vpop.f32.mrf.mxu0
      %v901 = vadd.f32 0.0, %v900
      %v902 = vpop.f32.mrf.mxu0
      %903 = vmatprep.mubr.f32.mxu0 0.0
      %904 = vmatmul.mubr.f32.gmra.mxu0 %v323
      %v905 = vpop.f32.mrf.mxu0
      %v906 = vadd.f32 0.0, %v905
      %v907 = vpop.f32.mrf.mxu0
      %908 = vmatprep.mubr.f32.mxu0 0.0
      %909 = vmatmul.mubr.f32.gmra.mxu0 %v324
      %v910 = vpop.f32.mrf.mxu0
      %v911 = vadd.f32 0.0, %v910
      %v912 = vpop.f32.mrf.mxu0
      %913 = vmatprep.mubr.f32.mxu0 0.0
      %914 = vmatmul.mubr.f32.gmra.mxu0 %v325
      %v915 = vpop.f32.mrf.mxu0
      %v916 = vadd.f32 0.0, %v915
      %v917 = vpop.f32.mrf.mxu0
      %918 = vmatprep.mubr.f32.mxu0 0.0
      %919 = vmatmul.mubr.f32.gmra.mxu0 %v326
      %v920 = vpop.f32.mrf.mxu0
      %v921 = vadd.f32 0.0, %v920
      %v922 = vpop.f32.mrf.mxu0
      %923 = vmatprep.mubr.f32.mxu0 0.0
      %924 = vmatmul.mubr.f32.gmra.mxu0 %v327
      %v925 = vpop.f32.mrf.mxu0
      %v926 = vadd.f32 0.0, %v925
      %v927 = vpop.f32.mrf.mxu0
      %928 = vmatprep.mubr.f32.mxu0 0.0
      %929 = vmatmul.mubr.f32.gmra.mxu0 %v328
      %v930 = vpop.f32.mrf.mxu0
      %v931 = vadd.f32 0.0, %v930
      %v932 = vpop.f32.mrf.mxu0
      %933 = vmatprep.mubr.f32.mxu0 0.0
      %934 = vmatmul.mubr.f32.gmra.mxu0 %v329
      %v935 = vpop.f32.mrf.mxu0
      %v936 = vadd.f32 0.0, %v935
      %v937 = vpop.f32.mrf.mxu0
      %938 = vmatprep.mubr.f32.mxu0 0.0
      %939 = vmatmul.mubr.f32.gmra.mxu0 %v330
      %v940 = vpop.f32.mrf.mxu0
      %v941 = vadd.f32 0.0, %v940
      %v942 = vpop.f32.mrf.mxu0
      %943 = vmatprep.mubr.f32.mxu0 0.0
      %944 = vmatmul.mubr.f32.gmra.mxu0 %v331
      %v945 = vpop.f32.mrf.mxu0
      %v946 = vadd.f32 0.0, %v945
      %v947 = vpop.f32.mrf.mxu0
      %948 = vmatprep.mubr.f32.mxu0 0.0
      %949 = vmatmul.mubr.f32.gmra.mxu0 %v332
      %v950 = vpop.f32.mrf.mxu0
      %v951 = vadd.f32 0.0, %v950
      %v952 = vpop.f32.mrf.mxu0
      %953 = vmatprep.mubr.f32.mxu0 0.0
      %954 = vmatmul.mubr.f32.gmra.mxu0 %v333
      %v955 = vpop.f32.mrf.mxu0
      %v956 = vadd.f32 0.0, %v955
      %v957 = vpop.f32.mrf.mxu0
      %958 = vmatprep.mubr.f32.mxu0 0.0
      %959 = vmatmul.mubr.f32.gmra.mxu0 %v334
      %v960 = vpop.f32.mrf.mxu0
      %v961 = vadd.f32 0.0, %v960
      %v962 = vpop.f32.mrf.mxu0
      %963 = vmatprep.mubr.f32.mxu0 0.0
      %964 = vmatmul.mubr.f32.gmra.mxu0 %v335
      %v965 = vpop.f32.mrf.mxu0
      %v966 = vadd.f32 0.0, %v965
      %v967 = vpop.f32.mrf.mxu0
      %968 = vmatprep.mubr.f32.mxu0 0.0
      %969 = vmatmul.mubr.f32.gmra.mxu0 %v336
      %v970 = vpop.f32.mrf.mxu0
      %v971 = vadd.f32 0.0, %v970
      %v972 = vpop.f32.mrf.mxu0
      %973 = vmatprep.mubr.f32.mxu0 0.0
      %974 = vmatmul.mubr.f32.gmra.mxu0 %v337
      %v975 = vpop.f32.mrf.mxu0
      %v976 = vadd.f32 0.0, %v975
      %v977 = vpop.f32.mrf.mxu0
      %978 = vmatprep.mubr.f32.mxu0 0.0
      %979 = vmatmul.mubr.f32.gmra.mxu0 %v338
      %v980 = vpop.f32.mrf.mxu0
      %v981 = vadd.f32 0.0, %v980
      %v982 = vpop.f32.mrf.mxu0
      %983 = vmatprep.mubr.f32.mxu0 0.0
      %984 = vmatmul.mubr.f32.gmra.mxu0 %v339
      %v985 = vpop.f32.mrf.mxu0
      %v986 = vadd.f32 0.0, %v985
      %v987 = vpop.f32.mrf.mxu0
      %988 = vmatprep.mubr.f32.mxu0 0.0
      %989 = vmatmul.mubr.f32.gmra.mxu0 %v340
      %v990 = vpop.f32.mrf.mxu0
      %v991 = vadd.f32 0.0, %v990
      %v992 = vpop.f32.mrf.mxu0
      %993 = vmatprep.mubr.f32.mxu0 0.0
      %994 = vmatmul.mubr.f32.gmra.mxu0 %v341
      %v995 = vpop.f32.mrf.mxu0
      %v996 = vadd.f32 0.0, %v995
      %v997 = vpop.f32.mrf.mxu0
      %998 = vmatprep.mubr.f32.mxu0 0.0
      %999 = vmatmul.mubr.f32.gmra.mxu0 %v342
      %v1000 = vpop.f32.mrf.mxu0
      %v1001 = vadd.f32 0.0, %v1000
      %v1002 = vpop.f32.mrf.mxu0
      %1003 = vmatprep.mubr.f32.mxu0 0.0
      %1004 = vmatmul.mubr.f32.gmra.mxu0 %v343
      %v1005 = vpop.f32.mrf.mxu0
      %v1006 = vadd.f32 0.0, %v1005
      %v1007 = vpop.f32.mrf.mxu0
      %1008 = vmatprep.mubr.f32.mxu0 0.0
      %1009 = vmatmul.mubr.f32.gmra.mxu0 %v344
      %v1010 = vpop.f32.mrf.mxu0
      %v1011 = vadd.f32 0.0, %v1010
      %v1012 = vpop.f32.mrf.mxu0
      %1013 = vmatprep.mubr.f32.mxu0 0.0
      %1014 = vmatmul.mubr.f32.gmra.mxu0 %v345
      %v1015 = vpop.f32.mrf.mxu0
      %v1016 = vadd.f32 0.0, %v1015
      %v1017 = vpop.f32.mrf.mxu0
      %1018 = vmatprep.mubr.f32.mxu0 0.0
      %1019 = vmatmul.mubr.f32.gmra.mxu0 %v346
      %v1020 = vpop.f32.mrf.mxu0
      %v1021 = vadd.f32 0.0, %v1020
      %v1022 = vpop.f32.mrf.mxu0
      %1023 = vmatprep.mubr.f32.mxu0 0.0
      %1024 = vmatmul.mubr.f32.gmra.mxu0 %v347
      %v1025 = vpop.f32.mrf.mxu0
      %v1026 = vadd.f32 0.0, %v1025
      %v1027 = vpop.f32.mrf.mxu0
      %1028 = vmatprep.mubr.f32.mxu0 0.0
      %1029 = vmatmul.mubr.f32.gmra.mxu0 %v348
      %v1030 = vpop.f32.mrf.mxu0
      %v1031 = vadd.f32 0.0, %v1030
      %v1032 = vpop.f32.mrf.mxu0
      %1033 = vmatprep.mubr.f32.mxu0 0.0
      %1034 = vmatmul.mubr.f32.gmra.mxu0 %v349
      %v1035 = vpop.f32.mrf.mxu0
      %v1036 = vadd.f32 0.0, %v1035
      %v1037 = vpop.f32.mrf.mxu0
      %1038 = vmatprep.mubr.f32.mxu0 0.0
      %1039 = vmatmul.mubr.f32.gmra.mxu0 %v350
      %v1040 = vpop.f32.mrf.mxu0
      %v1041 = vadd.f32 0.0, %v1040
      %v1042 = vpop.f32.mrf.mxu0
      %1043 = vmatprep.mubr.f32.mxu0 0.0
      %1044 = vmatmul.mubr.f32.gmra.mxu0 %v351
      %v1045 = vpop.f32.mrf.mxu0
      %v1046 = vadd.f32 0.0, %v1045
      %v1047 = vpop.f32.mrf.mxu0
      %1048 = vmatprep.mubr.f32.mxu0 0.0
      %1049 = vmatmul.mubr.f32.gmra.mxu0 %v352
      %v1050 = vpop.f32.mrf.mxu0
      %v1051 = vadd.f32 0.0, %v1050
      %v1052 = vpop.f32.mrf.mxu0
      %1053 = vmatprep.mubr.f32.mxu0 0.0
      %1054 = vmatmul.mubr.f32.gmra.mxu0 %v353
      %v1055 = vpop.f32.mrf.mxu0
      %v1056 = vadd.f32 0.0, %v1055
      %v1057 = vpop.f32.mrf.mxu0
      %1058 = vmatprep.mubr.f32.mxu0 0.0
      %1059 = vmatmul.mubr.f32.gmra.mxu0 %v354
      %v1060 = vpop.f32.mrf.mxu0
      %v1061 = vadd.f32 0.0, %v1060
      %v1062 = vpop.f32.mrf.mxu0
      %1063 = vmatprep.mubr.f32.mxu0 0.0
      %1064 = vmatmul.mubr.f32.gmra.mxu0 %v355
      %v1065 = vpop.f32.mrf.mxu0
      %v1066 = vadd.f32 0.0, %v1065
      %v1067 = vpop.f32.mrf.mxu0
      %1068 = vmatprep.mubr.f32.mxu0 0.0
      %1069 = vmatmul.mubr.f32.gmra.mxu0 %v356
      %v1070 = vpop.f32.mrf.mxu0
      %v1071 = vadd.f32 0.0, %v1070
      %v1072 = vpop.f32.mrf.mxu0
      %1073 = vmatprep.mubr.f32.mxu0 0.0
      %1074 = vmatmul.mubr.f32.gmra.mxu0 %v357
      %v1075 = vpop.f32.mrf.mxu0
      %v1076 = vadd.f32 0.0, %v1075
      %v1077 = vpop.f32.mrf.mxu0
      %1078 = vdwg.mxu0
      %v1079 = vmax.f32 %v441, %v446
      %v1080 = vrot.slane %v1079, 4
      %v1081 = vmax.f32 %v1079, %v1080
      %v1082 = vrot.slane %v1081, 2
      %v1083 = vmax.f32 %v1081, %v1082
      %v1084 = vrot.slane %v1083, 1
      %v1085 = vmax.f32 %v1083, %v1084
      %v1086 = vmax.f32 %v451, %v456
      %v1087 = vrot.slane %v1086, 4
      %v1088 = vmax.f32 %v1086, %v1087
      %v1089 = vrot.slane %v1088, 2
      %v1090 = vmax.f32 %v1088, %v1089
      %v1091 = vrot.slane %v1090, 1
      %v1092 = vmax.f32 %v1090, %v1091
      %v1093 = vmax.f32 %v461, %v466
      %v1094 = vrot.slane %v1093, 4
      %v1095 = vmax.f32 %v1093, %v1094
      %v1096 = vrot.slane %v1095, 2
      %v1097 = vmax.f32 %v1095, %v1096
      %v1098 = vrot.slane %v1097, 1
      %v1099 = vmax.f32 %v1097, %v1098
      %v1100 = vmax.f32 %v471, %v476
      %v1101 = vrot.slane %v1100, 4
      %v1102 = vmax.f32 %v1100, %v1101
      %v1103 = vrot.slane %v1102, 2
      %v1104 = vmax.f32 %v1102, %v1103
      %v1105 = vrot.slane %v1104, 1
      %v1106 = vmax.f32 %v1104, %v1105
      %v1107 = vmax.f32 %v481, %v486
      %v1108 = vrot.slane %v1107, 4
      %v1109 = vmax.f32 %v1107, %v1108
      %v1110 = vrot.slane %v1109, 2
      %v1111 = vmax.f32 %v1109, %v1110
      %v1112 = vrot.slane %v1111, 1
      %v1113 = vmax.f32 %v1111, %v1112
      %v1114 = vmax.f32 %v491, %v496
      %v1115 = vrot.slane %v1114, 4
      %v1116 = vmax.f32 %v1114, %v1115
      %v1117 = vrot.slane %v1116, 2
      %v1118 = vmax.f32 %v1116, %v1117
      %v1119 = vrot.slane %v1118, 1
      %v1120 = vmax.f32 %v1118, %v1119
      %v1121 = vmax.f32 %v501, %v506
      %v1122 = vrot.slane %v1121, 4
      %v1123 = vmax.f32 %v1121, %v1122
      %v1124 = vrot.slane %v1123, 2
      %v1125 = vmax.f32 %v1123, %v1124
      %v1126 = vrot.slane %v1125, 1
      %v1127 = vmax.f32 %v1125, %v1126
      %v1128 = vmax.f32 %v511, %v516
      %v1129 = vrot.slane %v1128, 4
      %v1130 = vmax.f32 %v1128, %v1129
      %v1131 = vrot.slane %v1130, 2
      %v1132 = vmax.f32 %v1130, %v1131
      %v1133 = vrot.slane %v1132, 1
      %v1134 = vmax.f32 %v1132, %v1133
      %v1135 = vmax.f32 %v521, %v526
      %v1136 = vrot.slane %v1135, 4
      %v1137 = vmax.f32 %v1135, %v1136
      %v1138 = vrot.slane %v1137, 2
      %v1139 = vmax.f32 %v1137, %v1138
      %v1140 = vrot.slane %v1139, 1
      %v1141 = vmax.f32 %v1139, %v1140
      %v1142 = vmax.f32 %v531, %v536
      %v1143 = vrot.slane %v1142, 4
      %v1144 = vmax.f32 %v1142, %v1143
      %v1145 = vrot.slane %v1144, 2
      %v1146 = vmax.f32 %v1144, %v1145
      %v1147 = vrot.slane %v1146, 1
      %v1148 = vmax.f32 %v1146, %v1147
      %v1149 = vmax.f32 %v541, %v546
      %v1150 = vrot.slane %v1149, 4
      %v1151 = vmax.f32 %v1149, %v1150
      %v1152 = vrot.slane %v1151, 2
      %v1153 = vmax.f32 %v1151, %v1152
      %v1154 = vrot.slane %v1153, 1
      %v1155 = vmax.f32 %v1153, %v1154
      %v1156 = vmax.f32 %v551, %v556
      %v1157 = vrot.slane %v1156, 4
      %v1158 = vmax.f32 %v1156, %v1157
      %v1159 = vrot.slane %v1158, 2
      %v1160 = vmax.f32 %v1158, %v1159
      %v1161 = vrot.slane %v1160, 1
      %v1162 = vmax.f32 %v1160, %v1161
      %v1163 = vmax.f32 %v561, %v566
      %v1164 = vrot.slane %v1163, 4
      %v1165 = vmax.f32 %v1163, %v1164
      %v1166 = vrot.slane %v1165, 2
      %v1167 = vmax.f32 %v1165, %v1166
      %v1168 = vrot.slane %v1167, 1
      %v1169 = vmax.f32 %v1167, %v1168
      %v1170 = vmax.f32 %v571, %v576
      %v1171 = vrot.slane %v1170, 4
      %v1172 = vmax.f32 %v1170, %v1171
      %v1173 = vrot.slane %v1172, 2
      %v1174 = vmax.f32 %v1172, %v1173
      %v1175 = vrot.slane %v1174, 1
      %v1176 = vmax.f32 %v1174, %v1175
      %v1177 = vmax.f32 %v581, %v586
      %v1178 = vrot.slane %v1177, 4
      %v1179 = vmax.f32 %v1177, %v1178
      %v1180 = vrot.slane %v1179, 2
      %v1181 = vmax.f32 %v1179, %v1180
      %v1182 = vrot.slane %v1181, 1
      %v1183 = vmax.f32 %v1181, %v1182
      %v1184 = vmax.f32 %v591, %v596
      %v1185 = vrot.slane %v1184, 4
      %v1186 = vmax.f32 %v1184, %v1185
      %v1187 = vrot.slane %v1186, 2
      %v1188 = vmax.f32 %v1186, %v1187
      %v1189 = vrot.slane %v1188, 1
      %v1190 = vmax.f32 %v1188, %v1189
      %v1191 = vmax.f32 %v601, %v606
      %v1192 = vrot.slane %v1191, 4
      %v1193 = vmax.f32 %v1191, %v1192
      %v1194 = vrot.slane %v1193, 2
      %v1195 = vmax.f32 %v1193, %v1194
      %v1196 = vrot.slane %v1195, 1
      %v1197 = vmax.f32 %v1195, %v1196
      %v1198 = vmax.f32 %v611, %v616
      %v1199 = vrot.slane %v1198, 4
      %v1200 = vmax.f32 %v1198, %v1199
      %v1201 = vrot.slane %v1200, 2
      %v1202 = vmax.f32 %v1200, %v1201
      %v1203 = vrot.slane %v1202, 1
      %v1204 = vmax.f32 %v1202, %v1203
      %v1205 = vmax.f32 %v621, %v626
      %v1206 = vrot.slane %v1205, 4
      %v1207 = vmax.f32 %v1205, %v1206
      %v1208 = vrot.slane %v1207, 2
      %v1209 = vmax.f32 %v1207, %v1208
      %v1210 = vrot.slane %v1209, 1
      %v1211 = vmax.f32 %v1209, %v1210
      %v1212 = vmax.f32 %v631, %v636
      %v1213 = vrot.slane %v1212, 4
      %v1214 = vmax.f32 %v1212, %v1213
      %v1215 = vrot.slane %v1214, 2
      %v1216 = vmax.f32 %v1214, %v1215
      %v1217 = vrot.slane %v1216, 1
      %v1218 = vmax.f32 %v1216, %v1217
      %v1219 = vmax.f32 %v641, %v646
      %v1220 = vrot.slane %v1219, 4
      %v1221 = vmax.f32 %v1219, %v1220
      %v1222 = vrot.slane %v1221, 2
      %v1223 = vmax.f32 %v1221, %v1222
      %v1224 = vrot.slane %v1223, 1
      %v1225 = vmax.f32 %v1223, %v1224
      %v1226 = vmax.f32 %v651, %v656
      %v1227 = vrot.slane %v1226, 4
      %v1228 = vmax.f32 %v1226, %v1227
      %v1229 = vrot.slane %v1228, 2
      %v1230 = vmax.f32 %v1228, %v1229
      %v1231 = vrot.slane %v1230, 1
      %v1232 = vmax.f32 %v1230, %v1231
      %v1233 = vmax.f32 %v661, %v666
      %v1234 = vrot.slane %v1233, 4
      %v1235 = vmax.f32 %v1233, %v1234
      %v1236 = vrot.slane %v1235, 2
      %v1237 = vmax.f32 %v1235, %v1236
      %v1238 = vrot.slane %v1237, 1
      %v1239 = vmax.f32 %v1237, %v1238
      %v1240 = vmax.f32 %v671, %v676
      %v1241 = vrot.slane %v1240, 4
      %v1242 = vmax.f32 %v1240, %v1241
      %v1243 = vrot.slane %v1242, 2
      %v1244 = vmax.f32 %v1242, %v1243
      %v1245 = vrot.slane %v1244, 1
      %v1246 = vmax.f32 %v1244, %v1245
      %v1247 = vmax.f32 %v681, %v686
      %v1248 = vrot.slane %v1247, 4
      %v1249 = vmax.f32 %v1247, %v1248
      %v1250 = vrot.slane %v1249, 2
      %v1251 = vmax.f32 %v1249, %v1250
      %v1252 = vrot.slane %v1251, 1
      %v1253 = vmax.f32 %v1251, %v1252
      %v1254 = vmax.f32 %v691, %v696
      %v1255 = vrot.slane %v1254, 4
      %v1256 = vmax.f32 %v1254, %v1255
      %v1257 = vrot.slane %v1256, 2
      %v1258 = vmax.f32 %v1256, %v1257
      %v1259 = vrot.slane %v1258, 1
      %v1260 = vmax.f32 %v1258, %v1259
      %v1261 = vmax.f32 %v701, %v706
      %v1262 = vrot.slane %v1261, 4
      %v1263 = vmax.f32 %v1261, %v1262
      %v1264 = vrot.slane %v1263, 2
      %v1265 = vmax.f32 %v1263, %v1264
      %v1266 = vrot.slane %v1265, 1
      %v1267 = vmax.f32 %v1265, %v1266
      %v1268 = vmax.f32 %v711, %v716
      %v1269 = vrot.slane %v1268, 4
      %v1270 = vmax.f32 %v1268, %v1269
      %v1271 = vrot.slane %v1270, 2
      %v1272 = vmax.f32 %v1270, %v1271
      %v1273 = vrot.slane %v1272, 1
      %v1274 = vmax.f32 %v1272, %v1273
      %v1275 = vmax.f32 %v721, %v726
      %v1276 = vrot.slane %v1275, 4
      %v1277 = vmax.f32 %v1275, %v1276
      %v1278 = vrot.slane %v1277, 2
      %v1279 = vmax.f32 %v1277, %v1278
      %v1280 = vrot.slane %v1279, 1
      %v1281 = vmax.f32 %v1279, %v1280
      %v1282 = vmax.f32 %v731, %v736
      %v1283 = vrot.slane %v1282, 4
      %v1284 = vmax.f32 %v1282, %v1283
      %v1285 = vrot.slane %v1284, 2
      %v1286 = vmax.f32 %v1284, %v1285
      %v1287 = vrot.slane %v1286, 1
      %v1288 = vmax.f32 %v1286, %v1287
      %v1289 = vmax.f32 %v741, %v746
      %v1290 = vrot.slane %v1289, 4
      %v1291 = vmax.f32 %v1289, %v1290
      %v1292 = vrot.slane %v1291, 2
      %v1293 = vmax.f32 %v1291, %v1292
      %v1294 = vrot.slane %v1293, 1
      %v1295 = vmax.f32 %v1293, %v1294
      %v1296 = vmax.f32 %v751, %v756
      %v1297 = vrot.slane %v1296, 4
      %v1298 = vmax.f32 %v1296, %v1297
      %v1299 = vrot.slane %v1298, 2
      %v1300 = vmax.f32 %v1298, %v1299
      %v1301 = vrot.slane %v1300, 1
      %v1302 = vmax.f32 %v1300, %v1301
      %v1303 = vmax.f32 %v761, %v766
      %v1304 = vrot.slane %v1303, 4
      %v1305 = vmax.f32 %v1303, %v1304
      %v1306 = vrot.slane %v1305, 2
      %v1307 = vmax.f32 %v1305, %v1306
      %v1308 = vrot.slane %v1307, 1
      %v1309 = vmax.f32 %v1307, %v1308
      %v1310 = vmax.f32 %v771, %v776
      %v1311 = vrot.slane %v1310, 4
      %v1312 = vmax.f32 %v1310, %v1311
      %v1313 = vrot.slane %v1312, 2
      %v1314 = vmax.f32 %v1312, %v1313
      %v1315 = vrot.slane %v1314, 1
      %v1316 = vmax.f32 %v1314, %v1315
      %v1317 = vmax.f32 %v781, %v786
      %v1318 = vrot.slane %v1317, 4
      %v1319 = vmax.f32 %v1317, %v1318
      %v1320 = vrot.slane %v1319, 2
      %v1321 = vmax.f32 %v1319, %v1320
      %v1322 = vrot.slane %v1321, 1
      %v1323 = vmax.f32 %v1321, %v1322
      %v1324 = vmax.f32 %v791, %v796
      %v1325 = vrot.slane %v1324, 4
      %v1326 = vmax.f32 %v1324, %v1325
      %v1327 = vrot.slane %v1326, 2
      %v1328 = vmax.f32 %v1326, %v1327
      %v1329 = vrot.slane %v1328, 1
      %v1330 = vmax.f32 %v1328, %v1329
      %v1331 = vmax.f32 %v801, %v806
      %v1332 = vrot.slane %v1331, 4
      %v1333 = vmax.f32 %v1331, %v1332
      %v1334 = vrot.slane %v1333, 2
      %v1335 = vmax.f32 %v1333, %v1334
      %v1336 = vrot.slane %v1335, 1
      %v1337 = vmax.f32 %v1335, %v1336
      %v1338 = vmax.f32 %v811, %v816
      %v1339 = vrot.slane %v1338, 4
      %v1340 = vmax.f32 %v1338, %v1339
      %v1341 = vrot.slane %v1340, 2
      %v1342 = vmax.f32 %v1340, %v1341
      %v1343 = vrot.slane %v1342, 1
      %v1344 = vmax.f32 %v1342, %v1343
      %v1345 = vmax.f32 %v821, %v826
      %v1346 = vrot.slane %v1345, 4
      %v1347 = vmax.f32 %v1345, %v1346
      %v1348 = vrot.slane %v1347, 2
      %v1349 = vmax.f32 %v1347, %v1348
      %v1350 = vrot.slane %v1349, 1
      %v1351 = vmax.f32 %v1349, %v1350
      %v1352 = vmax.f32 %v831, %v836
      %v1353 = vrot.slane %v1352, 4
      %v1354 = vmax.f32 %v1352, %v1353
      %v1355 = vrot.slane %v1354, 2
      %v1356 = vmax.f32 %v1354, %v1355
      %v1357 = vrot.slane %v1356, 1
      %v1358 = vmax.f32 %v1356, %v1357
      %v1359 = vmax.f32 %v841, %v846
      %v1360 = vrot.slane %v1359, 4
      %v1361 = vmax.f32 %v1359, %v1360
      %v1362 = vrot.slane %v1361, 2
      %v1363 = vmax.f32 %v1361, %v1362
      %v1364 = vrot.slane %v1363, 1
      %v1365 = vmax.f32 %v1363, %v1364
      %v1366 = vmax.f32 %v851, %v856
      %v1367 = vrot.slane %v1366, 4
      %v1368 = vmax.f32 %v1366, %v1367
      %v1369 = vrot.slane %v1368, 2
      %v1370 = vmax.f32 %v1368, %v1369
      %v1371 = vrot.slane %v1370, 1
      %v1372 = vmax.f32 %v1370, %v1371
      %v1373 = vmax.f32 %v861, %v866
      %v1374 = vrot.slane %v1373, 4
      %v1375 = vmax.f32 %v1373, %v1374
      %v1376 = vrot.slane %v1375, 2
      %v1377 = vmax.f32 %v1375, %v1376
      %v1378 = vrot.slane %v1377, 1
      %v1379 = vmax.f32 %v1377, %v1378
      %v1380 = vmax.f32 %v871, %v876
      %v1381 = vrot.slane %v1380, 4
      %v1382 = vmax.f32 %v1380, %v1381
      %v1383 = vrot.slane %v1382, 2
      %v1384 = vmax.f32 %v1382, %v1383
      %v1385 = vrot.slane %v1384, 1
      %v1386 = vmax.f32 %v1384, %v1385
      %v1387 = vmax.f32 %v881, %v886
      %v1388 = vrot.slane %v1387, 4
      %v1389 = vmax.f32 %v1387, %v1388
      %v1390 = vrot.slane %v1389, 2
      %v1391 = vmax.f32 %v1389, %v1390
      %v1392 = vrot.slane %v1391, 1
      %v1393 = vmax.f32 %v1391, %v1392
      %v1394 = vmax.f32 %v891, %v896
      %v1395 = vrot.slane %v1394, 4
      %v1396 = vmax.f32 %v1394, %v1395
      %v1397 = vrot.slane %v1396, 2
      %v1398 = vmax.f32 %v1396, %v1397
      %v1399 = vrot.slane %v1398, 1
      %v1400 = vmax.f32 %v1398, %v1399
      %v1401 = vmax.f32 %v901, %v906
      %v1402 = vrot.slane %v1401, 4
      %v1403 = vmax.f32 %v1401, %v1402
      %v1404 = vrot.slane %v1403, 2
      %v1405 = vmax.f32 %v1403, %v1404
      %v1406 = vrot.slane %v1405, 1
      %v1407 = vmax.f32 %v1405, %v1406
      %v1408 = vmax.f32 %v911, %v916
      %v1409 = vrot.slane %v1408, 4
      %v1410 = vmax.f32 %v1408, %v1409
      %v1411 = vrot.slane %v1410, 2
      %v1412 = vmax.f32 %v1410, %v1411
      %v1413 = vrot.slane %v1412, 1
      %v1414 = vmax.f32 %v1412, %v1413
      %v1415 = vmax.f32 %v921, %v926
      %v1416 = vrot.slane %v1415, 4
      %v1417 = vmax.f32 %v1415, %v1416
      %v1418 = vrot.slane %v1417, 2
      %v1419 = vmax.f32 %v1417, %v1418
      %v1420 = vrot.slane %v1419, 1
      %v1421 = vmax.f32 %v1419, %v1420
      %v1422 = vmax.f32 %v931, %v936
      %v1423 = vrot.slane %v1422, 4
      %v1424 = vmax.f32 %v1422, %v1423
      %v1425 = vrot.slane %v1424, 2
      %v1426 = vmax.f32 %v1424, %v1425
      %v1427 = vrot.slane %v1426, 1
      %v1428 = vmax.f32 %v1426, %v1427
      %v1429 = vmax.f32 %v941, %v946
      %v1430 = vrot.slane %v1429, 4
      %v1431 = vmax.f32 %v1429, %v1430
      %v1432 = vrot.slane %v1431, 2
      %v1433 = vmax.f32 %v1431, %v1432
      %v1434 = vrot.slane %v1433, 1
      %v1435 = vmax.f32 %v1433, %v1434
      %v1436 = vmax.f32 %v951, %v956
      %v1437 = vrot.slane %v1436, 4
      %v1438 = vmax.f32 %v1436, %v1437
      %v1439 = vrot.slane %v1438, 2
      %v1440 = vmax.f32 %v1438, %v1439
      %v1441 = vrot.slane %v1440, 1
      %v1442 = vmax.f32 %v1440, %v1441
      %v1443 = vmax.f32 %v961, %v966
      %v1444 = vrot.slane %v1443, 4
      %v1445 = vmax.f32 %v1443, %v1444
      %v1446 = vrot.slane %v1445, 2
      %v1447 = vmax.f32 %v1445, %v1446
      %v1448 = vrot.slane %v1447, 1
      %v1449 = vmax.f32 %v1447, %v1448
      %v1450 = vmax.f32 %v971, %v976
      %v1451 = vrot.slane %v1450, 4
      %v1452 = vmax.f32 %v1450, %v1451
      %v1453 = vrot.slane %v1452, 2
      %v1454 = vmax.f32 %v1452, %v1453
      %v1455 = vrot.slane %v1454, 1
      %v1456 = vmax.f32 %v1454, %v1455
      %v1457 = vmax.f32 %v981, %v986
      %v1458 = vrot.slane %v1457, 4
      %v1459 = vmax.f32 %v1457, %v1458
      %v1460 = vrot.slane %v1459, 2
      %v1461 = vmax.f32 %v1459, %v1460
      %v1462 = vrot.slane %v1461, 1
      %v1463 = vmax.f32 %v1461, %v1462
      %v1464 = vmax.f32 %v991, %v996
      %v1465 = vrot.slane %v1464, 4
      %v1466 = vmax.f32 %v1464, %v1465
      %v1467 = vrot.slane %v1466, 2
      %v1468 = vmax.f32 %v1466, %v1467
      %v1469 = vrot.slane %v1468, 1
      %v1470 = vmax.f32 %v1468, %v1469
      %v1471 = vmax.f32 %v1001, %v1006
      %v1472 = vrot.slane %v1471, 4
      %v1473 = vmax.f32 %v1471, %v1472
      %v1474 = vrot.slane %v1473, 2
      %v1475 = vmax.f32 %v1473, %v1474
      %v1476 = vrot.slane %v1475, 1
      %v1477 = vmax.f32 %v1475, %v1476
      %v1478 = vmax.f32 %v1011, %v1016
      %v1479 = vrot.slane %v1478, 4
      %v1480 = vmax.f32 %v1478, %v1479
      %v1481 = vrot.slane %v1480, 2
      %v1482 = vmax.f32 %v1480, %v1481
      %v1483 = vrot.slane %v1482, 1
      %v1484 = vmax.f32 %v1482, %v1483
      %v1485 = vmax.f32 %v1021, %v1026
      %v1486 = vrot.slane %v1485, 4
      %v1487 = vmax.f32 %v1485, %v1486
      %v1488 = vrot.slane %v1487, 2
      %v1489 = vmax.f32 %v1487, %v1488
      %v1490 = vrot.slane %v1489, 1
      %v1491 = vmax.f32 %v1489, %v1490
      %v1492 = vmax.f32 %v1031, %v1036
      %v1493 = vrot.slane %v1492, 4
      %v1494 = vmax.f32 %v1492, %v1493
      %v1495 = vrot.slane %v1494, 2
      %v1496 = vmax.f32 %v1494, %v1495
      %v1497 = vrot.slane %v1496, 1
      %v1498 = vmax.f32 %v1496, %v1497
      %v1499 = vmax.f32 %v1041, %v1046
      %v1500 = vrot.slane %v1499, 4
      %v1501 = vmax.f32 %v1499, %v1500
      %v1502 = vrot.slane %v1501, 2
      %v1503 = vmax.f32 %v1501, %v1502
      %v1504 = vrot.slane %v1503, 1
      %v1505 = vmax.f32 %v1503, %v1504
      %v1506 = vmax.f32 %v1051, %v1056
      %v1507 = vrot.slane %v1506, 4
      %v1508 = vmax.f32 %v1506, %v1507
      %v1509 = vrot.slane %v1508, 2
      %v1510 = vmax.f32 %v1508, %v1509
      %v1511 = vrot.slane %v1510, 1
      %v1512 = vmax.f32 %v1510, %v1511
      %v1513 = vmax.f32 %v1061, %v1066
      %v1514 = vrot.slane %v1513, 4
      %v1515 = vmax.f32 %v1513, %v1514
      %v1516 = vrot.slane %v1515, 2
      %v1517 = vmax.f32 %v1515, %v1516
      %v1518 = vrot.slane %v1517, 1
      %v1519 = vmax.f32 %v1517, %v1518
      %v1520 = vmax.f32 %v1071, %v1076
      %v1521 = vrot.slane %v1520, 4
      %v1522 = vmax.f32 %v1520, %v1521
      %v1523 = vrot.slane %v1522, 2
      %v1524 = vmax.f32 %v1522, %v1523
      %v1525 = vrot.slane %v1524, 1
      %v1526 = vmax.f32 %v1524, %v1525
      %v1527 = vsub.f32 %v441, %v1085
      %v1528 = vsub.f32 %v446, %v1085
      %v1529 = vsub.f32 %v451, %v1092
      %v1530 = vsub.f32 %v456, %v1092
      %v1531 = vsub.f32 %v461, %v1099
      %v1532 = vsub.f32 %v466, %v1099
      %v1533 = vsub.f32 %v471, %v1106
      %v1534 = vsub.f32 %v476, %v1106
      %v1535 = vsub.f32 %v481, %v1113
      %v1536 = vsub.f32 %v486, %v1113
      %v1537 = vsub.f32 %v491, %v1120
      %v1538 = vsub.f32 %v496, %v1120
      %v1539 = vsub.f32 %v501, %v1127
      %v1540 = vsub.f32 %v506, %v1127
      %v1541 = vsub.f32 %v511, %v1134
      %v1542 = vsub.f32 %v516, %v1134
      %v1543 = vsub.f32 %v521, %v1141
      %v1544 = vsub.f32 %v526, %v1141
      %v1545 = vsub.f32 %v531, %v1148
      %v1546 = vsub.f32 %v536, %v1148
      %v1547 = vsub.f32 %v541, %v1155
      %v1548 = vsub.f32 %v546, %v1155
      %v1549 = vsub.f32 %v551, %v1162
      %v1550 = vsub.f32 %v556, %v1162
      %v1551 = vsub.f32 %v561, %v1169
      %v1552 = vsub.f32 %v566, %v1169
      %v1553 = vsub.f32 %v571, %v1176
      %v1554 = vsub.f32 %v576, %v1176
      %v1555 = vsub.f32 %v581, %v1183
      %v1556 = vsub.f32 %v586, %v1183
      %v1557 = vsub.f32 %v591, %v1190
      %v1558 = vsub.f32 %v596, %v1190
      %v1559 = vsub.f32 %v601, %v1197
      %v1560 = vsub.f32 %v606, %v1197
      %v1561 = vsub.f32 %v611, %v1204
      %v1562 = vsub.f32 %v616, %v1204
      %v1563 = vsub.f32 %v621, %v1211
      %v1564 = vsub.f32 %v626, %v1211
      %v1565 = vsub.f32 %v631, %v1218
      %v1566 = vsub.f32 %v636, %v1218
      %v1567 = vsub.f32 %v641, %v1225
      %v1568 = vsub.f32 %v646, %v1225
      %v1569 = vsub.f32 %v651, %v1232
      %v1570 = vsub.f32 %v656, %v1232
      %v1571 = vsub.f32 %v661, %v1239
      %v1572 = vsub.f32 %v666, %v1239
      %v1573 = vsub.f32 %v671, %v1246
      %v1574 = vsub.f32 %v676, %v1246
      %v1575 = vsub.f32 %v681, %v1253
      %v1576 = vsub.f32 %v686, %v1253
      %v1577 = vsub.f32 %v691, %v1260
      %v1578 = vsub.f32 %v696, %v1260
      %v1579 = vsub.f32 %v701, %v1267
      %v1580 = vsub.f32 %v706, %v1267
      %v1581 = vsub.f32 %v711, %v1274
      %v1582 = vsub.f32 %v716, %v1274
      %v1583 = vsub.f32 %v721, %v1281
      %v1584 = vsub.f32 %v726, %v1281
      %v1585 = vsub.f32 %v731, %v1288
      %v1586 = vsub.f32 %v736, %v1288
      %v1587 = vsub.f32 %v741, %v1295
      %v1588 = vsub.f32 %v746, %v1295
      %v1589 = vsub.f32 %v751, %v1302
      %v1590 = vsub.f32 %v756, %v1302
      %v1591 = vsub.f32 %v761, %v1309
      %v1592 = vsub.f32 %v766, %v1309
      %v1593 = vsub.f32 %v771, %v1316
      %v1594 = vsub.f32 %v776, %v1316
      %v1595 = vsub.f32 %v781, %v1323
      %v1596 = vsub.f32 %v786, %v1323
      %v1597 = vsub.f32 %v791, %v1330
      %v1598 = vsub.f32 %v796, %v1330
      %v1599 = vsub.f32 %v801, %v1337
      %v1600 = vsub.f32 %v806, %v1337
      %v1601 = vsub.f32 %v811, %v1344
      %v1602 = vsub.f32 %v816, %v1344
      %v1603 = vsub.f32 %v821, %v1351
      %v1604 = vsub.f32 %v826, %v1351
      %v1605 = vsub.f32 %v831, %v1358
      %v1606 = vsub.f32 %v836, %v1358
      %v1607 = vsub.f32 %v841, %v1365
      %v1608 = vsub.f32 %v846, %v1365
      %v1609 = vsub.f32 %v851, %v1372
      %v1610 = vsub.f32 %v856, %v1372
      %v1611 = vsub.f32 %v861, %v1379
      %v1612 = vsub.f32 %v866, %v1379
      %v1613 = vsub.f32 %v871, %v1386
      %v1614 = vsub.f32 %v876, %v1386
      %v1615 = vsub.f32 %v881, %v1393
      %v1616 = vsub.f32 %v886, %v1393
      %v1617 = vsub.f32 %v891, %v1400
      %v1618 = vsub.f32 %v896, %v1400
      %v1619 = vsub.f32 %v901, %v1407
      %v1620 = vsub.f32 %v906, %v1407
      %v1621 = vsub.f32 %v911, %v1414
      %v1622 = vsub.f32 %v916, %v1414
      %v1623 = vsub.f32 %v921, %v1421
      %v1624 = vsub.f32 %v926, %v1421
      %v1625 = vsub.f32 %v931, %v1428
      %v1626 = vsub.f32 %v936, %v1428
      %v1627 = vsub.f32 %v941, %v1435
      %v1628 = vsub.f32 %v946, %v1435
      %v1629 = vsub.f32 %v951, %v1442
      %v1630 = vsub.f32 %v956, %v1442
      %v1631 = vsub.f32 %v961, %v1449
      %v1632 = vsub.f32 %v966, %v1449
      %v1633 = vsub.f32 %v971, %v1456
      %v1634 = vsub.f32 %v976, %v1456
      %v1635 = vsub.f32 %v981, %v1463
      %v1636 = vsub.f32 %v986, %v1463
      %v1637 = vsub.f32 %v991, %v1470
      %v1638 = vsub.f32 %v996, %v1470
      %v1639 = vsub.f32 %v1001, %v1477
      %v1640 = vsub.f32 %v1006, %v1477
      %v1641 = vsub.f32 %v1011, %v1484
      %v1642 = vsub.f32 %v1016, %v1484
      %v1643 = vsub.f32 %v1021, %v1491
      %v1644 = vsub.f32 %v1026, %v1491
      %v1645 = vsub.f32 %v1031, %v1498
      %v1646 = vsub.f32 %v1036, %v1498
      %v1647 = vsub.f32 %v1041, %v1505
      %v1648 = vsub.f32 %v1046, %v1505
      %v1649 = vsub.f32 %v1051, %v1512
      %v1650 = vsub.f32 %v1056, %v1512
      %v1651 = vsub.f32 %v1061, %v1519
      %v1652 = vsub.f32 %v1066, %v1519
      %v1653 = vsub.f32 %v1071, %v1526
      %v1654 = vsub.f32 %v1076, %v1526
      %v1655 = vmul.f32 %v1527, 1.442695
      %v1656 = vpow.pop %v1655
      %v1657 = vmul.f32 %v1528, 1.442695
      %v1658 = vpow.pop %v1657
      %v1659 = vmul.f32 %v1529, 1.442695
      %v1660 = vpow.pop %v1659
      %v1661 = vmul.f32 %v1530, 1.442695
      %v1662 = vpow.pop %v1661
      %v1663 = vmul.f32 %v1531, 1.442695
      %v1664 = vpow.pop %v1663
      %v1665 = vmul.f32 %v1532, 1.442695
      %v1666 = vpow.pop %v1665
      %v1667 = vmul.f32 %v1533, 1.442695
      %v1668 = vpow.pop %v1667
      %v1669 = vmul.f32 %v1534, 1.442695
      %v1670 = vpow.pop %v1669
      %v1671 = vmul.f32 %v1535, 1.442695
      %v1672 = vpow.pop %v1671
      %v1673 = vmul.f32 %v1536, 1.442695
      %v1674 = vpow.pop %v1673
      %v1675 = vmul.f32 %v1537, 1.442695
      %v1676 = vpow.pop %v1675
      %v1677 = vmul.f32 %v1538, 1.442695
      %v1678 = vpow.pop %v1677
      %v1679 = vmul.f32 %v1539, 1.442695
      %v1680 = vpow.pop %v1679
      %v1681 = vmul.f32 %v1540, 1.442695
      %v1682 = vpow.pop %v1681
      %v1683 = vmul.f32 %v1541, 1.442695
      %v1684 = vpow.pop %v1683
      %v1685 = vmul.f32 %v1542, 1.442695
      %v1686 = vpow.pop %v1685
      %v1687 = vmul.f32 %v1543, 1.442695
      %v1688 = vpow.pop %v1687
      %v1689 = vmul.f32 %v1544, 1.442695
      %v1690 = vpow.pop %v1689
      %v1691 = vmul.f32 %v1545, 1.442695
      %v1692 = vpow.pop %v1691
      %v1693 = vmul.f32 %v1546, 1.442695
      %v1694 = vpow.pop %v1693
      %v1695 = vmul.f32 %v1547, 1.442695
      %v1696 = vpow.pop %v1695
      %v1697 = vmul.f32 %v1548, 1.442695
      %v1698 = vpow.pop %v1697
      %v1699 = vmul.f32 %v1549, 1.442695
      %v1700 = vpow.pop %v1699
      %v1701 = vmul.f32 %v1550, 1.442695
      %v1702 = vpow.pop %v1701
      %v1703 = vmul.f32 %v1551, 1.442695
      %v1704 = vpow.pop %v1703
      %v1705 = vmul.f32 %v1552, 1.442695
      %v1706 = vpow.pop %v1705
      %v1707 = vmul.f32 %v1553, 1.442695
      %v1708 = vpow.pop %v1707
      %v1709 = vmul.f32 %v1554, 1.442695
      %v1710 = vpow.pop %v1709
      %v1711 = vmul.f32 %v1555, 1.442695
      %v1712 = vpow.pop %v1711
      %v1713 = vmul.f32 %v1556, 1.442695
      %v1714 = vpow.pop %v1713
      %v1715 = vmul.f32 %v1557, 1.442695
      %v1716 = vpow.pop %v1715
      %v1717 = vmul.f32 %v1558, 1.442695
      %v1718 = vpow.pop %v1717
      %v1719 = vmul.f32 %v1559, 1.442695
      %v1720 = vpow.pop %v1719
      %v1721 = vmul.f32 %v1560, 1.442695
      %v1722 = vpow.pop %v1721
      %v1723 = vmul.f32 %v1561, 1.442695
      %v1724 = vpow.pop %v1723
      %v1725 = vmul.f32 %v1562, 1.442695
      %v1726 = vpow.pop %v1725
      %v1727 = vmul.f32 %v1563, 1.442695
      %v1728 = vpow.pop %v1727
      %v1729 = vmul.f32 %v1564, 1.442695
      %v1730 = vpow.pop %v1729
      %v1731 = vmul.f32 %v1565, 1.442695
      %v1732 = vpow.pop %v1731
      %v1733 = vmul.f32 %v1566, 1.442695
      %v1734 = vpow.pop %v1733
      %v1735 = vmul.f32 %v1567, 1.442695
      %v1736 = vpow.pop %v1735
      %v1737 = vmul.f32 %v1568, 1.442695
      %v1738 = vpow.pop %v1737
      %v1739 = vmul.f32 %v1569, 1.442695
      %v1740 = vpow.pop %v1739
      %v1741 = vmul.f32 %v1570, 1.442695
      %v1742 = vpow.pop %v1741
      %v1743 = vmul.f32 %v1571, 1.442695
      %v1744 = vpow.pop %v1743
      %v1745 = vmul.f32 %v1572, 1.442695
      %v1746 = vpow.pop %v1745
      %v1747 = vmul.f32 %v1573, 1.442695
      %v1748 = vpow.pop %v1747
      %v1749 = vmul.f32 %v1574, 1.442695
      %v1750 = vpow.pop %v1749
      %v1751 = vmul.f32 %v1575, 1.442695
      %v1752 = vpow.pop %v1751
      %v1753 = vmul.f32 %v1576, 1.442695
      %v1754 = vpow.pop %v1753
      %v1755 = vmul.f32 %v1577, 1.442695
      %v1756 = vpow.pop %v1755
      %v1757 = vmul.f32 %v1578, 1.442695
      %v1758 = vpow.pop %v1757
      %v1759 = vmul.f32 %v1579, 1.442695
      %v1760 = vpow.pop %v1759
      %v1761 = vmul.f32 %v1580, 1.442695
      %v1762 = vpow.pop %v1761
      %v1763 = vmul.f32 %v1581, 1.442695
      %v1764 = vpow.pop %v1763
      %v1765 = vmul.f32 %v1582, 1.442695
      %v1766 = vpow.pop %v1765
      %v1767 = vmul.f32 %v1583, 1.442695
      %v1768 = vpow.pop %v1767
      %v1769 = vmul.f32 %v1584, 1.442695
      %v1770 = vpow.pop %v1769
      %v1771 = vmul.f32 %v1585, 1.442695
      %v1772 = vpow.pop %v1771
      %v1773 = vmul.f32 %v1586, 1.442695
      %v1774 = vpow.pop %v1773
      %v1775 = vmul.f32 %v1587, 1.442695
      %v1776 = vpow.pop %v1775
      %v1777 = vmul.f32 %v1588, 1.442695
      %v1778 = vpow.pop %v1777
      %v1779 = vmul.f32 %v1589, 1.442695
      %v1780 = vpow.pop %v1779
      %v1781 = vmul.f32 %v1590, 1.442695
      %v1782 = vpow.pop %v1781
      %v1783 = vmul.f32 %v1591, 1.442695
      %v1784 = vpow.pop %v1783
      %v1785 = vmul.f32 %v1592, 1.442695
      %v1786 = vpow.pop %v1785
      %v1787 = vmul.f32 %v1593, 1.442695
      %v1788 = vpow.pop %v1787
      %v1789 = vmul.f32 %v1594, 1.442695
      %v1790 = vpow.pop %v1789
      %v1791 = vmul.f32 %v1595, 1.442695
      %v1792 = vpow.pop %v1791
      %v1793 = vmul.f32 %v1596, 1.442695
      %v1794 = vpow.pop %v1793
      %v1795 = vmul.f32 %v1597, 1.442695
      %v1796 = vpow.pop %v1795
      %v1797 = vmul.f32 %v1598, 1.442695
      %v1798 = vpow.pop %v1797
      %v1799 = vmul.f32 %v1599, 1.442695
      %v1800 = vpow.pop %v1799
      %v1801 = vmul.f32 %v1600, 1.442695
      %v1802 = vpow.pop %v1801
      %v1803 = vmul.f32 %v1601, 1.442695
      %v1804 = vpow.pop %v1803
      %v1805 = vmul.f32 %v1602, 1.442695
      %v1806 = vpow.pop %v1805
      %v1807 = vmul.f32 %v1603, 1.442695
      %v1808 = vpow.pop %v1807
      %v1809 = vmul.f32 %v1604, 1.442695
      %v1810 = vpow.pop %v1809
      %v1811 = vmul.f32 %v1605, 1.442695
      %v1812 = vpow.pop %v1811
      %v1813 = vmul.f32 %v1606, 1.442695
      %v1814 = vpow.pop %v1813
      %v1815 = vmul.f32 %v1607, 1.442695
      %v1816 = vpow.pop %v1815
      %v1817 = vmul.f32 %v1608, 1.442695
      %v1818 = vpow.pop %v1817
      %v1819 = vmul.f32 %v1609, 1.442695
      %v1820 = vpow.pop %v1819
      %v1821 = vmul.f32 %v1610, 1.442695
      %v1822 = vpow.pop %v1821
      %v1823 = vmul.f32 %v1611, 1.442695
      %v1824 = vpow.pop %v1823
      %v1825 = vmul.f32 %v1612, 1.442695
      %v1826 = vpow.pop %v1825
      %v1827 = vmul.f32 %v1613, 1.442695
      %v1828 = vpow.pop %v1827
      %v1829 = vmul.f32 %v1614, 1.442695
      %v1830 = vpow.pop %v1829
      %v1831 = vmul.f32 %v1615, 1.442695
      %v1832 = vpow.pop %v1831
      %v1833 = vmul.f32 %v1616, 1.442695
      %v1834 = vpow.pop %v1833
      %v1835 = vmul.f32 %v1617, 1.442695
      %v1836 = vpow.pop %v1835
      %v1837 = vmul.f32 %v1618, 1.442695
      %v1838 = vpow.pop %v1837
      %v1839 = vmul.f32 %v1619, 1.442695
      %v1840 = vpow.pop %v1839
      %v1841 = vmul.f32 %v1620, 1.442695
      %v1842 = vpow.pop %v1841
      %v1843 = vmul.f32 %v1621, 1.442695
      %v1844 = vpow.pop %v1843
      %v1845 = vmul.f32 %v1622, 1.442695
      %v1846 = vpow.pop %v1845
      %v1847 = vmul.f32 %v1623, 1.442695
      %v1848 = vpow.pop %v1847
      %v1849 = vmul.f32 %v1624, 1.442695
      %v1850 = vpow.pop %v1849
      %v1851 = vmul.f32 %v1625, 1.442695
      %v1852 = vpow.pop %v1851
      %v1853 = vmul.f32 %v1626, 1.442695
      %v1854 = vpow.pop %v1853
      %v1855 = vmul.f32 %v1627, 1.442695
      %v1856 = vpow.pop %v1855
      %v1857 = vmul.f32 %v1628, 1.442695
      %v1858 = vpow.pop %v1857
      %v1859 = vmul.f32 %v1629, 1.442695
      %v1860 = vpow.pop %v1859
      %v1861 = vmul.f32 %v1630, 1.442695
      %v1862 = vpow.pop %v1861
      %v1863 = vmul.f32 %v1631, 1.442695
      %v1864 = vpow.pop %v1863
      %v1865 = vmul.f32 %v1632, 1.442695
      %v1866 = vpow.pop %v1865
      %v1867 = vmul.f32 %v1633, 1.442695
      %v1868 = vpow.pop %v1867
      %v1869 = vmul.f32 %v1634, 1.442695
      %v1870 = vpow.pop %v1869
      %v1871 = vmul.f32 %v1635, 1.442695
      %v1872 = vpow.pop %v1871
      %v1873 = vmul.f32 %v1636, 1.442695
      %v1874 = vpow.pop %v1873
      %v1875 = vmul.f32 %v1637, 1.442695
      %v1876 = vpow.pop %v1875
      %v1877 = vmul.f32 %v1638, 1.442695
      %v1878 = vpow.pop %v1877
      %v1879 = vmul.f32 %v1639, 1.442695
      %v1880 = vpow.pop %v1879
      %v1881 = vmul.f32 %v1640, 1.442695
      %v1882 = vpow.pop %v1881
      %v1883 = vmul.f32 %v1641, 1.442695
      %v1884 = vpow.pop %v1883
      %v1885 = vmul.f32 %v1642, 1.442695
      %v1886 = vpow.pop %v1885
      %v1887 = vmul.f32 %v1643, 1.442695
      %v1888 = vpow.pop %v1887
      %v1889 = vmul.f32 %v1644, 1.442695
      %v1890 = vpow.pop %v1889
      %v1891 = vmul.f32 %v1645, 1.442695
      %v1892 = vpow.pop %v1891
      %v1893 = vmul.f32 %v1646, 1.442695
      %v1894 = vpow.pop %v1893
      %v1895 = vmul.f32 %v1647, 1.442695
      %v1896 = vpow.pop %v1895
      %v1897 = vmul.f32 %v1648, 1.442695
      %v1898 = vpow.pop %v1897
      %v1899 = vmul.f32 %v1649, 1.442695
      %v1900 = vpow.pop %v1899
      %v1901 = vmul.f32 %v1650, 1.442695
      %v1902 = vpow.pop %v1901
      %v1903 = vmul.f32 %v1651, 1.442695
      %v1904 = vpow.pop %v1903
      %v1905 = vmul.f32 %v1652, 1.442695
      %v1906 = vpow.pop %v1905
      %v1907 = vmul.f32 %v1653, 1.442695
      %v1908 = vpow.pop %v1907
      %v1909 = vmul.f32 %v1654, 1.442695
      %v1910 = vpow.pop %v1909
      %v1911 = vadd.f32 %v1656, %v1658
      %v1912 = vrot.slane %v1911, 4
      %v1913 = vadd.f32 %v1911, %v1912
      %v1914 = vrot.slane %v1913, 2
      %v1915 = vadd.f32 %v1913, %v1914
      %v1916 = vrot.slane %v1915, 1
      %v1917 = vadd.f32 %v1915, %v1916
      %v1918 = vadd.f32 %v1660, %v1662
      %v1919 = vrot.slane %v1918, 4
      %v1920 = vadd.f32 %v1918, %v1919
      %v1921 = vrot.slane %v1920, 2
      %v1922 = vadd.f32 %v1920, %v1921
      %v1923 = vrot.slane %v1922, 1
      %v1924 = vadd.f32 %v1922, %v1923
      %v1925 = vadd.f32 %v1664, %v1666
      %v1926 = vrot.slane %v1925, 4
      %v1927 = vadd.f32 %v1925, %v1926
      %v1928 = vrot.slane %v1927, 2
      %v1929 = vadd.f32 %v1927, %v1928
      %v1930 = vrot.slane %v1929, 1
      %v1931 = vadd.f32 %v1929, %v1930
      %v1932 = vadd.f32 %v1668, %v1670
      %v1933 = vrot.slane %v1932, 4
      %v1934 = vadd.f32 %v1932, %v1933
      %v1935 = vrot.slane %v1934, 2
      %v1936 = vadd.f32 %v1934, %v1935
      %v1937 = vrot.slane %v1936, 1
      %v1938 = vadd.f32 %v1936, %v1937
      %v1939 = vadd.f32 %v1672, %v1674
      %v1940 = vrot.slane %v1939, 4
      %v1941 = vadd.f32 %v1939, %v1940
      %v1942 = vrot.slane %v1941, 2
      %v1943 = vadd.f32 %v1941, %v1942
      %v1944 = vrot.slane %v1943, 1
      %v1945 = vadd.f32 %v1943, %v1944
      %v1946 = vadd.f32 %v1676, %v1678
      %v1947 = vrot.slane %v1946, 4
      %v1948 = vadd.f32 %v1946, %v1947
      %v1949 = vrot.slane %v1948, 2
      %v1950 = vadd.f32 %v1948, %v1949
      %v1951 = vrot.slane %v1950, 1
      %v1952 = vadd.f32 %v1950, %v1951
      %v1953 = vadd.f32 %v1680, %v1682
      %v1954 = vrot.slane %v1953, 4
      %v1955 = vadd.f32 %v1953, %v1954
      %v1956 = vrot.slane %v1955, 2
      %v1957 = vadd.f32 %v1955, %v1956
      %v1958 = vrot.slane %v1957, 1
      %v1959 = vadd.f32 %v1957, %v1958
      %v1960 = vadd.f32 %v1684, %v1686
      %v1961 = vrot.slane %v1960, 4
      %v1962 = vadd.f32 %v1960, %v1961
      %v1963 = vrot.slane %v1962, 2
      %v1964 = vadd.f32 %v1962, %v1963
      %v1965 = vrot.slane %v1964, 1
      %v1966 = vadd.f32 %v1964, %v1965
      %v1967 = vadd.f32 %v1688, %v1690
      %v1968 = vrot.slane %v1967, 4
      %v1969 = vadd.f32 %v1967, %v1968
      %v1970 = vrot.slane %v1969, 2
      %v1971 = vadd.f32 %v1969, %v1970
      %v1972 = vrot.slane %v1971, 1
      %v1973 = vadd.f32 %v1971, %v1972
      %v1974 = vadd.f32 %v1692, %v1694
      %v1975 = vrot.slane %v1974, 4
      %v1976 = vadd.f32 %v1974, %v1975
      %v1977 = vrot.slane %v1976, 2
      %v1978 = vadd.f32 %v1976, %v1977
      %v1979 = vrot.slane %v1978, 1
      %v1980 = vadd.f32 %v1978, %v1979
      %v1981 = vadd.f32 %v1696, %v1698
      %v1982 = vrot.slane %v1981, 4
      %v1983 = vadd.f32 %v1981, %v1982
      %v1984 = vrot.slane %v1983, 2
      %v1985 = vadd.f32 %v1983, %v1984
      %v1986 = vrot.slane %v1985, 1
      %v1987 = vadd.f32 %v1985, %v1986
      %v1988 = vadd.f32 %v1700, %v1702
      %v1989 = vrot.slane %v1988, 4
      %v1990 = vadd.f32 %v1988, %v1989
      %v1991 = vrot.slane %v1990, 2
      %v1992 = vadd.f32 %v1990, %v1991
      %v1993 = vrot.slane %v1992, 1
      %v1994 = vadd.f32 %v1992, %v1993
      %v1995 = vadd.f32 %v1704, %v1706
      %v1996 = vrot.slane %v1995, 4
      %v1997 = vadd.f32 %v1995, %v1996
      %v1998 = vrot.slane %v1997, 2
      %v1999 = vadd.f32 %v1997, %v1998
      %v2000 = vrot.slane %v1999, 1
      %v2001 = vadd.f32 %v1999, %v2000
      %v2002 = vadd.f32 %v1708, %v1710
      %v2003 = vrot.slane %v2002, 4
      %v2004 = vadd.f32 %v2002, %v2003
      %v2005 = vrot.slane %v2004, 2
      %v2006 = vadd.f32 %v2004, %v2005
      %v2007 = vrot.slane %v2006, 1
      %v2008 = vadd.f32 %v2006, %v2007
      %v2009 = vadd.f32 %v1712, %v1714
      %v2010 = vrot.slane %v2009, 4
      %v2011 = vadd.f32 %v2009, %v2010
      %v2012 = vrot.slane %v2011, 2
      %v2013 = vadd.f32 %v2011, %v2012
      %v2014 = vrot.slane %v2013, 1
      %v2015 = vadd.f32 %v2013, %v2014
      %v2016 = vadd.f32 %v1716, %v1718
      %v2017 = vrot.slane %v2016, 4
      %v2018 = vadd.f32 %v2016, %v2017
      %v2019 = vrot.slane %v2018, 2
      %v2020 = vadd.f32 %v2018, %v2019
      %v2021 = vrot.slane %v2020, 1
      %v2022 = vadd.f32 %v2020, %v2021
      %v2023 = vadd.f32 %v1720, %v1722
      %v2024 = vrot.slane %v2023, 4
      %v2025 = vadd.f32 %v2023, %v2024
      %v2026 = vrot.slane %v2025, 2
      %v2027 = vadd.f32 %v2025, %v2026
      %v2028 = vrot.slane %v2027, 1
      %v2029 = vadd.f32 %v2027, %v2028
      %v2030 = vadd.f32 %v1724, %v1726
      %v2031 = vrot.slane %v2030, 4
      %v2032 = vadd.f32 %v2030, %v2031
      %v2033 = vrot.slane %v2032, 2
      %v2034 = vadd.f32 %v2032, %v2033
      %v2035 = vrot.slane %v2034, 1
      %v2036 = vadd.f32 %v2034, %v2035
      %v2037 = vadd.f32 %v1728, %v1730
      %v2038 = vrot.slane %v2037, 4
      %v2039 = vadd.f32 %v2037, %v2038
      %v2040 = vrot.slane %v2039, 2
      %v2041 = vadd.f32 %v2039, %v2040
      %v2042 = vrot.slane %v2041, 1
      %v2043 = vadd.f32 %v2041, %v2042
      %v2044 = vadd.f32 %v1732, %v1734
      %v2045 = vrot.slane %v2044, 4
      %v2046 = vadd.f32 %v2044, %v2045
      %v2047 = vrot.slane %v2046, 2
      %v2048 = vadd.f32 %v2046, %v2047
      %v2049 = vrot.slane %v2048, 1
      %v2050 = vadd.f32 %v2048, %v2049
      %v2051 = vadd.f32 %v1736, %v1738
      %v2052 = vrot.slane %v2051, 4
      %v2053 = vadd.f32 %v2051, %v2052
      %v2054 = vrot.slane %v2053, 2
      %v2055 = vadd.f32 %v2053, %v2054
      %v2056 = vrot.slane %v2055, 1
      %v2057 = vadd.f32 %v2055, %v2056
      %v2058 = vadd.f32 %v1740, %v1742
      %v2059 = vrot.slane %v2058, 4
      %v2060 = vadd.f32 %v2058, %v2059
      %v2061 = vrot.slane %v2060, 2
      %v2062 = vadd.f32 %v2060, %v2061
      %v2063 = vrot.slane %v2062, 1
      %v2064 = vadd.f32 %v2062, %v2063
      %v2065 = vadd.f32 %v1744, %v1746
      %v2066 = vrot.slane %v2065, 4
      %v2067 = vadd.f32 %v2065, %v2066
      %v2068 = vrot.slane %v2067, 2
      %v2069 = vadd.f32 %v2067, %v2068
      %v2070 = vrot.slane %v2069, 1
      %v2071 = vadd.f32 %v2069, %v2070
      %v2072 = vadd.f32 %v1748, %v1750
      %v2073 = vrot.slane %v2072, 4
      %v2074 = vadd.f32 %v2072, %v2073
      %v2075 = vrot.slane %v2074, 2
      %v2076 = vadd.f32 %v2074, %v2075
      %v2077 = vrot.slane %v2076, 1
      %v2078 = vadd.f32 %v2076, %v2077
      %v2079 = vadd.f32 %v1752, %v1754
      %v2080 = vrot.slane %v2079, 4
      %v2081 = vadd.f32 %v2079, %v2080
      %v2082 = vrot.slane %v2081, 2
      %v2083 = vadd.f32 %v2081, %v2082
      %v2084 = vrot.slane %v2083, 1
      %v2085 = vadd.f32 %v2083, %v2084
      %v2086 = vadd.f32 %v1756, %v1758
      %v2087 = vrot.slane %v2086, 4
      %v2088 = vadd.f32 %v2086, %v2087
      %v2089 = vrot.slane %v2088, 2
      %v2090 = vadd.f32 %v2088, %v2089
      %v2091 = vrot.slane %v2090, 1
      %v2092 = vadd.f32 %v2090, %v2091
      %v2093 = vadd.f32 %v1760, %v1762
      %v2094 = vrot.slane %v2093, 4
      %v2095 = vadd.f32 %v2093, %v2094
      %v2096 = vrot.slane %v2095, 2
      %v2097 = vadd.f32 %v2095, %v2096
      %v2098 = vrot.slane %v2097, 1
      %v2099 = vadd.f32 %v2097, %v2098
      %v2100 = vadd.f32 %v1764, %v1766
      %v2101 = vrot.slane %v2100, 4
      %v2102 = vadd.f32 %v2100, %v2101
      %v2103 = vrot.slane %v2102, 2
      %v2104 = vadd.f32 %v2102, %v2103
      %v2105 = vrot.slane %v2104, 1
      %v2106 = vadd.f32 %v2104, %v2105
      %v2107 = vadd.f32 %v1768, %v1770
      %v2108 = vrot.slane %v2107, 4
      %v2109 = vadd.f32 %v2107, %v2108
      %v2110 = vrot.slane %v2109, 2
      %v2111 = vadd.f32 %v2109, %v2110
      %v2112 = vrot.slane %v2111, 1
      %v2113 = vadd.f32 %v2111, %v2112
      %v2114 = vadd.f32 %v1772, %v1774
      %v2115 = vrot.slane %v2114, 4
      %v2116 = vadd.f32 %v2114, %v2115
      %v2117 = vrot.slane %v2116, 2
      %v2118 = vadd.f32 %v2116, %v2117
      %v2119 = vrot.slane %v2118, 1
      %v2120 = vadd.f32 %v2118, %v2119
      %v2121 = vadd.f32 %v1776, %v1778
      %v2122 = vrot.slane %v2121, 4
      %v2123 = vadd.f32 %v2121, %v2122
      %v2124 = vrot.slane %v2123, 2
      %v2125 = vadd.f32 %v2123, %v2124
      %v2126 = vrot.slane %v2125, 1
      %v2127 = vadd.f32 %v2125, %v2126
      %v2128 = vadd.f32 %v1780, %v1782
      %v2129 = vrot.slane %v2128, 4
      %v2130 = vadd.f32 %v2128, %v2129
      %v2131 = vrot.slane %v2130, 2
      %v2132 = vadd.f32 %v2130, %v2131
      %v2133 = vrot.slane %v2132, 1
      %v2134 = vadd.f32 %v2132, %v2133
      %v2135 = vadd.f32 %v1784, %v1786
      %v2136 = vrot.slane %v2135, 4
      %v2137 = vadd.f32 %v2135, %v2136
      %v2138 = vrot.slane %v2137, 2
      %v2139 = vadd.f32 %v2137, %v2138
      %v2140 = vrot.slane %v2139, 1
      %v2141 = vadd.f32 %v2139, %v2140
      %v2142 = vadd.f32 %v1788, %v1790
      %v2143 = vrot.slane %v2142, 4
      %v2144 = vadd.f32 %v2142, %v2143
      %v2145 = vrot.slane %v2144, 2
      %v2146 = vadd.f32 %v2144, %v2145
      %v2147 = vrot.slane %v2146, 1
      %v2148 = vadd.f32 %v2146, %v2147
      %v2149 = vadd.f32 %v1792, %v1794
      %v2150 = vrot.slane %v2149, 4
      %v2151 = vadd.f32 %v2149, %v2150
      %v2152 = vrot.slane %v2151, 2
      %v2153 = vadd.f32 %v2151, %v2152
      %v2154 = vrot.slane %v2153, 1
      %v2155 = vadd.f32 %v2153, %v2154
      %v2156 = vadd.f32 %v1796, %v1798
      %v2157 = vrot.slane %v2156, 4
      %v2158 = vadd.f32 %v2156, %v2157
      %v2159 = vrot.slane %v2158, 2
      %v2160 = vadd.f32 %v2158, %v2159
      %v2161 = vrot.slane %v2160, 1
      %v2162 = vadd.f32 %v2160, %v2161
      %v2163 = vadd.f32 %v1800, %v1802
      %v2164 = vrot.slane %v2163, 4
      %v2165 = vadd.f32 %v2163, %v2164
      %v2166 = vrot.slane %v2165, 2
      %v2167 = vadd.f32 %v2165, %v2166
      %v2168 = vrot.slane %v2167, 1
      %v2169 = vadd.f32 %v2167, %v2168
      %v2170 = vadd.f32 %v1804, %v1806
      %v2171 = vrot.slane %v2170, 4
      %v2172 = vadd.f32 %v2170, %v2171
      %v2173 = vrot.slane %v2172, 2
      %v2174 = vadd.f32 %v2172, %v2173
      %v2175 = vrot.slane %v2174, 1
      %v2176 = vadd.f32 %v2174, %v2175
      %v2177 = vadd.f32 %v1808, %v1810
      %v2178 = vrot.slane %v2177, 4
      %v2179 = vadd.f32 %v2177, %v2178
      %v2180 = vrot.slane %v2179, 2
      %v2181 = vadd.f32 %v2179, %v2180
      %v2182 = vrot.slane %v2181, 1
      %v2183 = vadd.f32 %v2181, %v2182
      %v2184 = vadd.f32 %v1812, %v1814
      %v2185 = vrot.slane %v2184, 4
      %v2186 = vadd.f32 %v2184, %v2185
      %v2187 = vrot.slane %v2186, 2
      %v2188 = vadd.f32 %v2186, %v2187
      %v2189 = vrot.slane %v2188, 1
      %v2190 = vadd.f32 %v2188, %v2189
      %v2191 = vadd.f32 %v1816, %v1818
      %v2192 = vrot.slane %v2191, 4
      %v2193 = vadd.f32 %v2191, %v2192
      %v2194 = vrot.slane %v2193, 2
      %v2195 = vadd.f32 %v2193, %v2194
      %v2196 = vrot.slane %v2195, 1
      %v2197 = vadd.f32 %v2195, %v2196
      %v2198 = vadd.f32 %v1820, %v1822
      %v2199 = vrot.slane %v2198, 4
      %v2200 = vadd.f32 %v2198, %v2199
      %v2201 = vrot.slane %v2200, 2
      %v2202 = vadd.f32 %v2200, %v2201
      %v2203 = vrot.slane %v2202, 1
      %v2204 = vadd.f32 %v2202, %v2203
      %v2205 = vadd.f32 %v1824, %v1826
      %v2206 = vrot.slane %v2205, 4
      %v2207 = vadd.f32 %v2205, %v2206
      %v2208 = vrot.slane %v2207, 2
      %v2209 = vadd.f32 %v2207, %v2208
      %v2210 = vrot.slane %v2209, 1
      %v2211 = vadd.f32 %v2209, %v2210
      %v2212 = vadd.f32 %v1828, %v1830
      %v2213 = vrot.slane %v2212, 4
      %v2214 = vadd.f32 %v2212, %v2213
      %v2215 = vrot.slane %v2214, 2
      %v2216 = vadd.f32 %v2214, %v2215
      %v2217 = vrot.slane %v2216, 1
      %v2218 = vadd.f32 %v2216, %v2217
      %v2219 = vadd.f32 %v1832, %v1834
      %v2220 = vrot.slane %v2219, 4
      %v2221 = vadd.f32 %v2219, %v2220
      %v2222 = vrot.slane %v2221, 2
      %v2223 = vadd.f32 %v2221, %v2222
      %v2224 = vrot.slane %v2223, 1
      %v2225 = vadd.f32 %v2223, %v2224
      %v2226 = vadd.f32 %v1836, %v1838
      %v2227 = vrot.slane %v2226, 4
      %v2228 = vadd.f32 %v2226, %v2227
      %v2229 = vrot.slane %v2228, 2
      %v2230 = vadd.f32 %v2228, %v2229
      %v2231 = vrot.slane %v2230, 1
      %v2232 = vadd.f32 %v2230, %v2231
      %v2233 = vadd.f32 %v1840, %v1842
      %v2234 = vrot.slane %v2233, 4
      %v2235 = vadd.f32 %v2233, %v2234
      %v2236 = vrot.slane %v2235, 2
      %v2237 = vadd.f32 %v2235, %v2236
      %v2238 = vrot.slane %v2237, 1
      %v2239 = vadd.f32 %v2237, %v2238
      %v2240 = vadd.f32 %v1844, %v1846
      %v2241 = vrot.slane %v2240, 4
      %v2242 = vadd.f32 %v2240, %v2241
      %v2243 = vrot.slane %v2242, 2
      %v2244 = vadd.f32 %v2242, %v2243
      %v2245 = vrot.slane %v2244, 1
      %v2246 = vadd.f32 %v2244, %v2245
      %v2247 = vadd.f32 %v1848, %v1850
      %v2248 = vrot.slane %v2247, 4
      %v2249 = vadd.f32 %v2247, %v2248
      %v2250 = vrot.slane %v2249, 2
      %v2251 = vadd.f32 %v2249, %v2250
      %v2252 = vrot.slane %v2251, 1
      %v2253 = vadd.f32 %v2251, %v2252
      %v2254 = vadd.f32 %v1852, %v1854
      %v2255 = vrot.slane %v2254, 4
      %v2256 = vadd.f32 %v2254, %v2255
      %v2257 = vrot.slane %v2256, 2
      %v2258 = vadd.f32 %v2256, %v2257
      %v2259 = vrot.slane %v2258, 1
      %v2260 = vadd.f32 %v2258, %v2259
      %v2261 = vadd.f32 %v1856, %v1858
      %v2262 = vrot.slane %v2261, 4
      %v2263 = vadd.f32 %v2261, %v2262
      %v2264 = vrot.slane %v2263, 2
      %v2265 = vadd.f32 %v2263, %v2264
      %v2266 = vrot.slane %v2265, 1
      %v2267 = vadd.f32 %v2265, %v2266
      %v2268 = vadd.f32 %v1860, %v1862
      %v2269 = vrot.slane %v2268, 4
      %v2270 = vadd.f32 %v2268, %v2269
      %v2271 = vrot.slane %v2270, 2
      %v2272 = vadd.f32 %v2270, %v2271
      %v2273 = vrot.slane %v2272, 1
      %v2274 = vadd.f32 %v2272, %v2273
      %v2275 = vadd.f32 %v1864, %v1866
      %v2276 = vrot.slane %v2275, 4
      %v2277 = vadd.f32 %v2275, %v2276
      %v2278 = vrot.slane %v2277, 2
      %v2279 = vadd.f32 %v2277, %v2278
      %v2280 = vrot.slane %v2279, 1
      %v2281 = vadd.f32 %v2279, %v2280
      %v2282 = vadd.f32 %v1868, %v1870
      %v2283 = vrot.slane %v2282, 4
      %v2284 = vadd.f32 %v2282, %v2283
      %v2285 = vrot.slane %v2284, 2
      %v2286 = vadd.f32 %v2284, %v2285
      %v2287 = vrot.slane %v2286, 1
      %v2288 = vadd.f32 %v2286, %v2287
      %v2289 = vadd.f32 %v1872, %v1874
      %v2290 = vrot.slane %v2289, 4
      %v2291 = vadd.f32 %v2289, %v2290
      %v2292 = vrot.slane %v2291, 2
      %v2293 = vadd.f32 %v2291, %v2292
      %v2294 = vrot.slane %v2293, 1
      %v2295 = vadd.f32 %v2293, %v2294
      %v2296 = vadd.f32 %v1876, %v1878
      %v2297 = vrot.slane %v2296, 4
      %v2298 = vadd.f32 %v2296, %v2297
      %v2299 = vrot.slane %v2298, 2
      %v2300 = vadd.f32 %v2298, %v2299
      %v2301 = vrot.slane %v2300, 1
      %v2302 = vadd.f32 %v2300, %v2301
      %v2303 = vadd.f32 %v1880, %v1882
      %v2304 = vrot.slane %v2303, 4
      %v2305 = vadd.f32 %v2303, %v2304
      %v2306 = vrot.slane %v2305, 2
      %v2307 = vadd.f32 %v2305, %v2306
      %v2308 = vrot.slane %v2307, 1
      %v2309 = vadd.f32 %v2307, %v2308
      %v2310 = vadd.f32 %v1884, %v1886
      %v2311 = vrot.slane %v2310, 4
      %v2312 = vadd.f32 %v2310, %v2311
      %v2313 = vrot.slane %v2312, 2
      %v2314 = vadd.f32 %v2312, %v2313
      %v2315 = vrot.slane %v2314, 1
      %v2316 = vadd.f32 %v2314, %v2315
      %v2317 = vadd.f32 %v1888, %v1890
      %v2318 = vrot.slane %v2317, 4
      %v2319 = vadd.f32 %v2317, %v2318
      %v2320 = vrot.slane %v2319, 2
      %v2321 = vadd.f32 %v2319, %v2320
      %v2322 = vrot.slane %v2321, 1
      %v2323 = vadd.f32 %v2321, %v2322
      %v2324 = vadd.f32 %v1892, %v1894
      %v2325 = vrot.slane %v2324, 4
      %v2326 = vadd.f32 %v2324, %v2325
      %v2327 = vrot.slane %v2326, 2
      %v2328 = vadd.f32 %v2326, %v2327
      %v2329 = vrot.slane %v2328, 1
      %v2330 = vadd.f32 %v2328, %v2329
      %v2331 = vadd.f32 %v1896, %v1898
      %v2332 = vrot.slane %v2331, 4
      %v2333 = vadd.f32 %v2331, %v2332
      %v2334 = vrot.slane %v2333, 2
      %v2335 = vadd.f32 %v2333, %v2334
      %v2336 = vrot.slane %v2335, 1
      %v2337 = vadd.f32 %v2335, %v2336
      %v2338 = vadd.f32 %v1900, %v1902
      %v2339 = vrot.slane %v2338, 4
      %v2340 = vadd.f32 %v2338, %v2339
      %v2341 = vrot.slane %v2340, 2
      %v2342 = vadd.f32 %v2340, %v2341
      %v2343 = vrot.slane %v2342, 1
      %v2344 = vadd.f32 %v2342, %v2343
      %v2345 = vadd.f32 %v1904, %v1906
      %v2346 = vrot.slane %v2345, 4
      %v2347 = vadd.f32 %v2345, %v2346
      %v2348 = vrot.slane %v2347, 2
      %v2349 = vadd.f32 %v2347, %v2348
      %v2350 = vrot.slane %v2349, 1
      %v2351 = vadd.f32 %v2349, %v2350
      %v2352 = vadd.f32 %v1908, %v1910
      %v2353 = vrot.slane %v2352, 4
      %v2354 = vadd.f32 %v2352, %v2353
      %v2355 = vrot.slane %v2354, 2
      %v2356 = vadd.f32 %v2354, %v2355
      %v2357 = vrot.slane %v2356, 1
      %v2358 = vadd.f32 %v2356, %v2357
      %v2359 = vmul.f32 %v230, %v1656
      %v2360 = vmul.f32 %v231, %v1658
      %v2361 = vmul.f32 %v232, %v1660
      %v2362 = vmul.f32 %v233, %v1662
      %v2363 = vmul.f32 %v234, %v1664
      %v2364 = vmul.f32 %v235, %v1666
      %v2365 = vmul.f32 %v236, %v1668
      %v2366 = vmul.f32 %v237, %v1670
      %v2367 = vmul.f32 %v238, %v1672
      %v2368 = vmul.f32 %v239, %v1674
      %v2369 = vmul.f32 %v240, %v1676
      %v2370 = vmul.f32 %v241, %v1678
      %v2371 = vmul.f32 %v242, %v1680
      %v2372 = vmul.f32 %v243, %v1682
      %v2373 = vmul.f32 %v244, %v1684
      %v2374 = vmul.f32 %v245, %v1686
      %v2375 = vmul.f32 %v246, %v1688
      %v2376 = vmul.f32 %v247, %v1690
      %v2377 = vmul.f32 %v248, %v1692
      %v2378 = vmul.f32 %v249, %v1694
      %v2379 = vmul.f32 %v250, %v1696
      %v2380 = vmul.f32 %v251, %v1698
      %v2381 = vmul.f32 %v252, %v1700
      %v2382 = vmul.f32 %v253, %v1702
      %v2383 = vmul.f32 %v254, %v1704
      %v2384 = vmul.f32 %v255, %v1706
      %v2385 = vmul.f32 %v256, %v1708
      %v2386 = vmul.f32 %v257, %v1710
      %v2387 = vmul.f32 %v258, %v1712
      %v2388 = vmul.f32 %v259, %v1714
      %v2389 = vmul.f32 %v260, %v1716
      %v2390 = vmul.f32 %v261, %v1718
      %v2391 = vmul.f32 %v262, %v1720
      %v2392 = vmul.f32 %v263, %v1722
      %v2393 = vmul.f32 %v264, %v1724
      %v2394 = vmul.f32 %v265, %v1726
      %v2395 = vmul.f32 %v266, %v1728
      %v2396 = vmul.f32 %v267, %v1730
      %v2397 = vmul.f32 %v268, %v1732
      %v2398 = vmul.f32 %v269, %v1734
      %v2399 = vmul.f32 %v270, %v1736
      %v2400 = vmul.f32 %v271, %v1738
      %v2401 = vmul.f32 %v272, %v1740
      %v2402 = vmul.f32 %v273, %v1742
      %v2403 = vmul.f32 %v274, %v1744
      %v2404 = vmul.f32 %v275, %v1746
      %v2405 = vmul.f32 %v276, %v1748
      %v2406 = vmul.f32 %v277, %v1750
      %v2407 = vmul.f32 %v278, %v1752
      %v2408 = vmul.f32 %v279, %v1754
      %v2409 = vmul.f32 %v280, %v1756
      %v2410 = vmul.f32 %v281, %v1758
      %v2411 = vmul.f32 %v282, %v1760
      %v2412 = vmul.f32 %v283, %v1762
      %v2413 = vmul.f32 %v284, %v1764
      %v2414 = vmul.f32 %v285, %v1766
      %v2415 = vmul.f32 %v286, %v1768
      %v2416 = vmul.f32 %v287, %v1770
      %v2417 = vmul.f32 %v288, %v1772
      %v2418 = vmul.f32 %v289, %v1774
      %v2419 = vmul.f32 %v290, %v1776
      %v2420 = vmul.f32 %v291, %v1778
      %v2421 = vmul.f32 %v292, %v1780
      %v2422 = vmul.f32 %v293, %v1782
      %v2423 = vmul.f32 %v294, %v1784
      %v2424 = vmul.f32 %v295, %v1786
      %v2425 = vmul.f32 %v296, %v1788
      %v2426 = vmul.f32 %v297, %v1790
      %v2427 = vmul.f32 %v298, %v1792
      %v2428 = vmul.f32 %v299, %v1794
      %v2429 = vmul.f32 %v300, %v1796
      %v2430 = vmul.f32 %v301, %v1798
      %v2431 = vmul.f32 %v302, %v1800
      %v2432 = vmul.f32 %v303, %v1802
      %v2433 = vmul.f32 %v304, %v1804
      %v2434 = vmul.f32 %v305, %v1806
      %v2435 = vmul.f32 %v306, %v1808
      %v2436 = vmul.f32 %v307, %v1810
      %v2437 = vmul.f32 %v308, %v1812
      %v2438 = vmul.f32 %v309, %v1814
      %v2439 = vmul.f32 %v310, %v1816
      %v2440 = vmul.f32 %v311, %v1818
      %v2441 = vmul.f32 %v312, %v1820
      %v2442 = vmul.f32 %v313, %v1822
      %v2443 = vmul.f32 %v314, %v1824
      %v2444 = vmul.f32 %v315, %v1826
      %v2445 = vmul.f32 %v316, %v1828
      %v2446 = vmul.f32 %v317, %v1830
      %v2447 = vmul.f32 %v318, %v1832
      %v2448 = vmul.f32 %v319, %v1834
      %v2449 = vmul.f32 %v320, %v1836
      %v2450 = vmul.f32 %v321, %v1838
      %v2451 = vmul.f32 %v322, %v1840
      %v2452 = vmul.f32 %v323, %v1842
      %v2453 = vmul.f32 %v324, %v1844
      %v2454 = vmul.f32 %v325, %v1846
      %v2455 = vmul.f32 %v326, %v1848
      %v2456 = vmul.f32 %v327, %v1850
      %v2457 = vmul.f32 %v328, %v1852
      %v2458 = vmul.f32 %v329, %v1854
      %v2459 = vmul.f32 %v330, %v1856
      %v2460 = vmul.f32 %v331, %v1858
      %v2461 = vmul.f32 %v332, %v1860
      %v2462 = vmul.f32 %v333, %v1862
      %v2463 = vmul.f32 %v334, %v1864
      %v2464 = vmul.f32 %v335, %v1866
      %v2465 = vmul.f32 %v336, %v1868
      %v2466 = vmul.f32 %v337, %v1870
      %v2467 = vmul.f32 %v338, %v1872
      %v2468 = vmul.f32 %v339, %v1874
      %v2469 = vmul.f32 %v340, %v1876
      %v2470 = vmul.f32 %v341, %v1878
      %v2471 = vmul.f32 %v342, %v1880
      %v2472 = vmul.f32 %v343, %v1882
      %v2473 = vmul.f32 %v344, %v1884
      %v2474 = vmul.f32 %v345, %v1886
      %v2475 = vmul.f32 %v346, %v1888
      %v2476 = vmul.f32 %v347, %v1890
      %v2477 = vmul.f32 %v348, %v1892
      %v2478 = vmul.f32 %v349, %v1894
      %v2479 = vmul.f32 %v350, %v1896
      %v2480 = vmul.f32 %v351, %v1898
      %v2481 = vmul.f32 %v352, %v1900
      %v2482 = vmul.f32 %v353, %v1902
      %v2483 = vmul.f32 %v354, %v1904
      %v2484 = vmul.f32 %v355, %v1906
      %v2485 = vmul.f32 %v356, %v1908
      %v2486 = vmul.f32 %v357, %v1910
      %v2487 = vadd.f32 %v2359, %v2360
      %v2488 = vrot.slane %v2487, 4
      %v2489 = vadd.f32 %v2487, %v2488
      %v2490 = vrot.slane %v2489, 2
      %v2491 = vadd.f32 %v2489, %v2490
      %v2492 = vrot.slane %v2491, 1
      %v2493 = vadd.f32 %v2491, %v2492
      %v2494 = vadd.f32 %v2361, %v2362
      %v2495 = vrot.slane %v2494, 4
      %v2496 = vadd.f32 %v2494, %v2495
      %v2497 = vrot.slane %v2496, 2
      %v2498 = vadd.f32 %v2496, %v2497
      %v2499 = vrot.slane %v2498, 1
      %v2500 = vadd.f32 %v2498, %v2499
      %v2501 = vadd.f32 %v2363, %v2364
      %v2502 = vrot.slane %v2501, 4
      %v2503 = vadd.f32 %v2501, %v2502
      %v2504 = vrot.slane %v2503, 2
      %v2505 = vadd.f32 %v2503, %v2504
      %v2506 = vrot.slane %v2505, 1
      %v2507 = vadd.f32 %v2505, %v2506
      %v2508 = vadd.f32 %v2365, %v2366
      %v2509 = vrot.slane %v2508, 4
      %v2510 = vadd.f32 %v2508, %v2509
      %v2511 = vrot.slane %v2510, 2
      %v2512 = vadd.f32 %v2510, %v2511
      %v2513 = vrot.slane %v2512, 1
      %v2514 = vadd.f32 %v2512, %v2513
      %v2515 = vadd.f32 %v2367, %v2368
      %v2516 = vrot.slane %v2515, 4
      %v2517 = vadd.f32 %v2515, %v2516
      %v2518 = vrot.slane %v2517, 2
      %v2519 = vadd.f32 %v2517, %v2518
      %v2520 = vrot.slane %v2519, 1
      %v2521 = vadd.f32 %v2519, %v2520
      %v2522 = vadd.f32 %v2369, %v2370
      %v2523 = vrot.slane %v2522, 4
      %v2524 = vadd.f32 %v2522, %v2523
      %v2525 = vrot.slane %v2524, 2
      %v2526 = vadd.f32 %v2524, %v2525
      %v2527 = vrot.slane %v2526, 1
      %v2528 = vadd.f32 %v2526, %v2527
      %v2529 = vadd.f32 %v2371, %v2372
      %v2530 = vrot.slane %v2529, 4
      %v2531 = vadd.f32 %v2529, %v2530
      %v2532 = vrot.slane %v2531, 2
      %v2533 = vadd.f32 %v2531, %v2532
      %v2534 = vrot.slane %v2533, 1
      %v2535 = vadd.f32 %v2533, %v2534
      %v2536 = vadd.f32 %v2373, %v2374
      %v2537 = vrot.slane %v2536, 4
      %v2538 = vadd.f32 %v2536, %v2537
      %v2539 = vrot.slane %v2538, 2
      %v2540 = vadd.f32 %v2538, %v2539
      %v2541 = vrot.slane %v2540, 1
      %v2542 = vadd.f32 %v2540, %v2541
      %v2543 = vadd.f32 %v2375, %v2376
      %v2544 = vrot.slane %v2543, 4
      %v2545 = vadd.f32 %v2543, %v2544
      %v2546 = vrot.slane %v2545, 2
      %v2547 = vadd.f32 %v2545, %v2546
      %v2548 = vrot.slane %v2547, 1
      %v2549 = vadd.f32 %v2547, %v2548
      %v2550 = vadd.f32 %v2377, %v2378
      %v2551 = vrot.slane %v2550, 4
      %v2552 = vadd.f32 %v2550, %v2551
      %v2553 = vrot.slane %v2552, 2
      %v2554 = vadd.f32 %v2552, %v2553
      %v2555 = vrot.slane %v2554, 1
      %v2556 = vadd.f32 %v2554, %v2555
      %v2557 = vadd.f32 %v2379, %v2380
      %v2558 = vrot.slane %v2557, 4
      %v2559 = vadd.f32 %v2557, %v2558
      %v2560 = vrot.slane %v2559, 2
      %v2561 = vadd.f32 %v2559, %v2560
      %v2562 = vrot.slane %v2561, 1
      %v2563 = vadd.f32 %v2561, %v2562
      %v2564 = vadd.f32 %v2381, %v2382
      %v2565 = vrot.slane %v2564, 4
      %v2566 = vadd.f32 %v2564, %v2565
      %v2567 = vrot.slane %v2566, 2
      %v2568 = vadd.f32 %v2566, %v2567
      %v2569 = vrot.slane %v2568, 1
      %v2570 = vadd.f32 %v2568, %v2569
      %v2571 = vadd.f32 %v2383, %v2384
      %v2572 = vrot.slane %v2571, 4
      %v2573 = vadd.f32 %v2571, %v2572
      %v2574 = vrot.slane %v2573, 2
      %v2575 = vadd.f32 %v2573, %v2574
      %v2576 = vrot.slane %v2575, 1
      %v2577 = vadd.f32 %v2575, %v2576
      %v2578 = vadd.f32 %v2385, %v2386
      %v2579 = vrot.slane %v2578, 4
      %v2580 = vadd.f32 %v2578, %v2579
      %v2581 = vrot.slane %v2580, 2
      %v2582 = vadd.f32 %v2580, %v2581
      %v2583 = vrot.slane %v2582, 1
      %v2584 = vadd.f32 %v2582, %v2583
      %v2585 = vadd.f32 %v2387, %v2388
      %v2586 = vrot.slane %v2585, 4
      %v2587 = vadd.f32 %v2585, %v2586
      %v2588 = vrot.slane %v2587, 2
      %v2589 = vadd.f32 %v2587, %v2588
      %v2590 = vrot.slane %v2589, 1
      %v2591 = vadd.f32 %v2589, %v2590
      %v2592 = vadd.f32 %v2389, %v2390
      %v2593 = vrot.slane %v2592, 4
      %v2594 = vadd.f32 %v2592, %v2593
      %v2595 = vrot.slane %v2594, 2
      %v2596 = vadd.f32 %v2594, %v2595
      %v2597 = vrot.slane %v2596, 1
      %v2598 = vadd.f32 %v2596, %v2597
      %v2599 = vadd.f32 %v2391, %v2392
      %v2600 = vrot.slane %v2599, 4
      %v2601 = vadd.f32 %v2599, %v2600
      %v2602 = vrot.slane %v2601, 2
      %v2603 = vadd.f32 %v2601, %v2602
      %v2604 = vrot.slane %v2603, 1
      %v2605 = vadd.f32 %v2603, %v2604
      %v2606 = vadd.f32 %v2393, %v2394
      %v2607 = vrot.slane %v2606, 4
      %v2608 = vadd.f32 %v2606, %v2607
      %v2609 = vrot.slane %v2608, 2
      %v2610 = vadd.f32 %v2608, %v2609
      %v2611 = vrot.slane %v2610, 1
      %v2612 = vadd.f32 %v2610, %v2611
      %v2613 = vadd.f32 %v2395, %v2396
      %v2614 = vrot.slane %v2613, 4
      %v2615 = vadd.f32 %v2613, %v2614
      %v2616 = vrot.slane %v2615, 2
      %v2617 = vadd.f32 %v2615, %v2616
      %v2618 = vrot.slane %v2617, 1
      %v2619 = vadd.f32 %v2617, %v2618
      %v2620 = vadd.f32 %v2397, %v2398
      %v2621 = vrot.slane %v2620, 4
      %v2622 = vadd.f32 %v2620, %v2621
      %v2623 = vrot.slane %v2622, 2
      %v2624 = vadd.f32 %v2622, %v2623
      %v2625 = vrot.slane %v2624, 1
      %v2626 = vadd.f32 %v2624, %v2625
      %v2627 = vadd.f32 %v2399, %v2400
      %v2628 = vrot.slane %v2627, 4
      %v2629 = vadd.f32 %v2627, %v2628
      %v2630 = vrot.slane %v2629, 2
      %v2631 = vadd.f32 %v2629, %v2630
      %v2632 = vrot.slane %v2631, 1
      %v2633 = vadd.f32 %v2631, %v2632
      %v2634 = vadd.f32 %v2401, %v2402
      %v2635 = vrot.slane %v2634, 4
      %v2636 = vadd.f32 %v2634, %v2635
      %v2637 = vrot.slane %v2636, 2
      %v2638 = vadd.f32 %v2636, %v2637
      %v2639 = vrot.slane %v2638, 1
      %v2640 = vadd.f32 %v2638, %v2639
      %v2641 = vadd.f32 %v2403, %v2404
      %v2642 = vrot.slane %v2641, 4
      %v2643 = vadd.f32 %v2641, %v2642
      %v2644 = vrot.slane %v2643, 2
      %v2645 = vadd.f32 %v2643, %v2644
      %v2646 = vrot.slane %v2645, 1
      %v2647 = vadd.f32 %v2645, %v2646
      %v2648 = vadd.f32 %v2405, %v2406
      %v2649 = vrot.slane %v2648, 4
      %v2650 = vadd.f32 %v2648, %v2649
      %v2651 = vrot.slane %v2650, 2
      %v2652 = vadd.f32 %v2650, %v2651
      %v2653 = vrot.slane %v2652, 1
      %v2654 = vadd.f32 %v2652, %v2653
      %v2655 = vadd.f32 %v2407, %v2408
      %v2656 = vrot.slane %v2655, 4
      %v2657 = vadd.f32 %v2655, %v2656
      %v2658 = vrot.slane %v2657, 2
      %v2659 = vadd.f32 %v2657, %v2658
      %v2660 = vrot.slane %v2659, 1
      %v2661 = vadd.f32 %v2659, %v2660
      %v2662 = vadd.f32 %v2409, %v2410
      %v2663 = vrot.slane %v2662, 4
      %v2664 = vadd.f32 %v2662, %v2663
      %v2665 = vrot.slane %v2664, 2
      %v2666 = vadd.f32 %v2664, %v2665
      %v2667 = vrot.slane %v2666, 1
      %v2668 = vadd.f32 %v2666, %v2667
      %v2669 = vadd.f32 %v2411, %v2412
      %v2670 = vrot.slane %v2669, 4
      %v2671 = vadd.f32 %v2669, %v2670
      %v2672 = vrot.slane %v2671, 2
      %v2673 = vadd.f32 %v2671, %v2672
      %v2674 = vrot.slane %v2673, 1
      %v2675 = vadd.f32 %v2673, %v2674
      %v2676 = vadd.f32 %v2413, %v2414
      %v2677 = vrot.slane %v2676, 4
      %v2678 = vadd.f32 %v2676, %v2677
      %v2679 = vrot.slane %v2678, 2
      %v2680 = vadd.f32 %v2678, %v2679
      %v2681 = vrot.slane %v2680, 1
      %v2682 = vadd.f32 %v2680, %v2681
      %v2683 = vadd.f32 %v2415, %v2416
      %v2684 = vrot.slane %v2683, 4
      %v2685 = vadd.f32 %v2683, %v2684
      %v2686 = vrot.slane %v2685, 2
      %v2687 = vadd.f32 %v2685, %v2686
      %v2688 = vrot.slane %v2687, 1
      %v2689 = vadd.f32 %v2687, %v2688
      %v2690 = vadd.f32 %v2417, %v2418
      %v2691 = vrot.slane %v2690, 4
      %v2692 = vadd.f32 %v2690, %v2691
      %v2693 = vrot.slane %v2692, 2
      %v2694 = vadd.f32 %v2692, %v2693
      %v2695 = vrot.slane %v2694, 1
      %v2696 = vadd.f32 %v2694, %v2695
      %v2697 = vadd.f32 %v2419, %v2420
      %v2698 = vrot.slane %v2697, 4
      %v2699 = vadd.f32 %v2697, %v2698
      %v2700 = vrot.slane %v2699, 2
      %v2701 = vadd.f32 %v2699, %v2700
      %v2702 = vrot.slane %v2701, 1
      %v2703 = vadd.f32 %v2701, %v2702
      %v2704 = vadd.f32 %v2421, %v2422
      %v2705 = vrot.slane %v2704, 4
      %v2706 = vadd.f32 %v2704, %v2705
      %v2707 = vrot.slane %v2706, 2
      %v2708 = vadd.f32 %v2706, %v2707
      %v2709 = vrot.slane %v2708, 1
      %v2710 = vadd.f32 %v2708, %v2709
      %v2711 = vadd.f32 %v2423, %v2424
      %v2712 = vrot.slane %v2711, 4
      %v2713 = vadd.f32 %v2711, %v2712
      %v2714 = vrot.slane %v2713, 2
      %v2715 = vadd.f32 %v2713, %v2714
      %v2716 = vrot.slane %v2715, 1
      %v2717 = vadd.f32 %v2715, %v2716
      %v2718 = vadd.f32 %v2425, %v2426
      %v2719 = vrot.slane %v2718, 4
      %v2720 = vadd.f32 %v2718, %v2719
      %v2721 = vrot.slane %v2720, 2
      %v2722 = vadd.f32 %v2720, %v2721
      %v2723 = vrot.slane %v2722, 1
      %v2724 = vadd.f32 %v2722, %v2723
      %v2725 = vadd.f32 %v2427, %v2428
      %v2726 = vrot.slane %v2725, 4
      %v2727 = vadd.f32 %v2725, %v2726
      %v2728 = vrot.slane %v2727, 2
      %v2729 = vadd.f32 %v2727, %v2728
      %v2730 = vrot.slane %v2729, 1
      %v2731 = vadd.f32 %v2729, %v2730
      %v2732 = vadd.f32 %v2429, %v2430
      %v2733 = vrot.slane %v2732, 4
      %v2734 = vadd.f32 %v2732, %v2733
      %v2735 = vrot.slane %v2734, 2
      %v2736 = vadd.f32 %v2734, %v2735
      %v2737 = vrot.slane %v2736, 1
      %v2738 = vadd.f32 %v2736, %v2737
      %v2739 = vadd.f32 %v2431, %v2432
      %v2740 = vrot.slane %v2739, 4
      %v2741 = vadd.f32 %v2739, %v2740
      %v2742 = vrot.slane %v2741, 2
      %v2743 = vadd.f32 %v2741, %v2742
      %v2744 = vrot.slane %v2743, 1
      %v2745 = vadd.f32 %v2743, %v2744
      %v2746 = vadd.f32 %v2433, %v2434
      %v2747 = vrot.slane %v2746, 4
      %v2748 = vadd.f32 %v2746, %v2747
      %v2749 = vrot.slane %v2748, 2
      %v2750 = vadd.f32 %v2748, %v2749
      %v2751 = vrot.slane %v2750, 1
      %v2752 = vadd.f32 %v2750, %v2751
      %v2753 = vadd.f32 %v2435, %v2436
      %v2754 = vrot.slane %v2753, 4
      %v2755 = vadd.f32 %v2753, %v2754
      %v2756 = vrot.slane %v2755, 2
      %v2757 = vadd.f32 %v2755, %v2756
      %v2758 = vrot.slane %v2757, 1
      %v2759 = vadd.f32 %v2757, %v2758
      %v2760 = vadd.f32 %v2437, %v2438
      %v2761 = vrot.slane %v2760, 4
      %v2762 = vadd.f32 %v2760, %v2761
      %v2763 = vrot.slane %v2762, 2
      %v2764 = vadd.f32 %v2762, %v2763
      %v2765 = vrot.slane %v2764, 1
      %v2766 = vadd.f32 %v2764, %v2765
      %v2767 = vadd.f32 %v2439, %v2440
      %v2768 = vrot.slane %v2767, 4
      %v2769 = vadd.f32 %v2767, %v2768
      %v2770 = vrot.slane %v2769, 2
      %v2771 = vadd.f32 %v2769, %v2770
      %v2772 = vrot.slane %v2771, 1
      %v2773 = vadd.f32 %v2771, %v2772
      %v2774 = vadd.f32 %v2441, %v2442
      %v2775 = vrot.slane %v2774, 4
      %v2776 = vadd.f32 %v2774, %v2775
      %v2777 = vrot.slane %v2776, 2
      %v2778 = vadd.f32 %v2776, %v2777
      %v2779 = vrot.slane %v2778, 1
      %v2780 = vadd.f32 %v2778, %v2779
      %v2781 = vadd.f32 %v2443, %v2444
      %v2782 = vrot.slane %v2781, 4
      %v2783 = vadd.f32 %v2781, %v2782
      %v2784 = vrot.slane %v2783, 2
      %v2785 = vadd.f32 %v2783, %v2784
      %v2786 = vrot.slane %v2785, 1
      %v2787 = vadd.f32 %v2785, %v2786
      %v2788 = vadd.f32 %v2445, %v2446
      %v2789 = vrot.slane %v2788, 4
      %v2790 = vadd.f32 %v2788, %v2789
      %v2791 = vrot.slane %v2790, 2
      %v2792 = vadd.f32 %v2790, %v2791
      %v2793 = vrot.slane %v2792, 1
      %v2794 = vadd.f32 %v2792, %v2793
      %v2795 = vadd.f32 %v2447, %v2448
      %v2796 = vrot.slane %v2795, 4
      %v2797 = vadd.f32 %v2795, %v2796
      %v2798 = vrot.slane %v2797, 2
      %v2799 = vadd.f32 %v2797, %v2798
      %v2800 = vrot.slane %v2799, 1
      %v2801 = vadd.f32 %v2799, %v2800
      %v2802 = vadd.f32 %v2449, %v2450
      %v2803 = vrot.slane %v2802, 4
      %v2804 = vadd.f32 %v2802, %v2803
      %v2805 = vrot.slane %v2804, 2
      %v2806 = vadd.f32 %v2804, %v2805
      %v2807 = vrot.slane %v2806, 1
      %v2808 = vadd.f32 %v2806, %v2807
      %v2809 = vadd.f32 %v2451, %v2452
      %v2810 = vrot.slane %v2809, 4
      %v2811 = vadd.f32 %v2809, %v2810
      %v2812 = vrot.slane %v2811, 2
      %v2813 = vadd.f32 %v2811, %v2812
      %v2814 = vrot.slane %v2813, 1
      %v2815 = vadd.f32 %v2813, %v2814
      %v2816 = vadd.f32 %v2453, %v2454
      %v2817 = vrot.slane %v2816, 4
      %v2818 = vadd.f32 %v2816, %v2817
      %v2819 = vrot.slane %v2818, 2
      %v2820 = vadd.f32 %v2818, %v2819
      %v2821 = vrot.slane %v2820, 1
      %v2822 = vadd.f32 %v2820, %v2821
      %v2823 = vadd.f32 %v2455, %v2456
      %v2824 = vrot.slane %v2823, 4
      %v2825 = vadd.f32 %v2823, %v2824
      %v2826 = vrot.slane %v2825, 2
      %v2827 = vadd.f32 %v2825, %v2826
      %v2828 = vrot.slane %v2827, 1
      %v2829 = vadd.f32 %v2827, %v2828
      %v2830 = vadd.f32 %v2457, %v2458
      %v2831 = vrot.slane %v2830, 4
      %v2832 = vadd.f32 %v2830, %v2831
      %v2833 = vrot.slane %v2832, 2
      %v2834 = vadd.f32 %v2832, %v2833
      %v2835 = vrot.slane %v2834, 1
      %v2836 = vadd.f32 %v2834, %v2835
      %v2837 = vadd.f32 %v2459, %v2460
      %v2838 = vrot.slane %v2837, 4
      %v2839 = vadd.f32 %v2837, %v2838
      %v2840 = vrot.slane %v2839, 2
      %v2841 = vadd.f32 %v2839, %v2840
      %v2842 = vrot.slane %v2841, 1
      %v2843 = vadd.f32 %v2841, %v2842
      %v2844 = vadd.f32 %v2461, %v2462
      %v2845 = vrot.slane %v2844, 4
      %v2846 = vadd.f32 %v2844, %v2845
      %v2847 = vrot.slane %v2846, 2
      %v2848 = vadd.f32 %v2846, %v2847
      %v2849 = vrot.slane %v2848, 1
      %v2850 = vadd.f32 %v2848, %v2849
      %v2851 = vadd.f32 %v2463, %v2464
      %v2852 = vrot.slane %v2851, 4
      %v2853 = vadd.f32 %v2851, %v2852
      %v2854 = vrot.slane %v2853, 2
      %v2855 = vadd.f32 %v2853, %v2854
      %v2856 = vrot.slane %v2855, 1
      %v2857 = vadd.f32 %v2855, %v2856
      %v2858 = vadd.f32 %v2465, %v2466
      %v2859 = vrot.slane %v2858, 4
      %v2860 = vadd.f32 %v2858, %v2859
      %v2861 = vrot.slane %v2860, 2
      %v2862 = vadd.f32 %v2860, %v2861
      %v2863 = vrot.slane %v2862, 1
      %v2864 = vadd.f32 %v2862, %v2863
      %v2865 = vadd.f32 %v2467, %v2468
      %v2866 = vrot.slane %v2865, 4
      %v2867 = vadd.f32 %v2865, %v2866
      %v2868 = vrot.slane %v2867, 2
      %v2869 = vadd.f32 %v2867, %v2868
      %v2870 = vrot.slane %v2869, 1
      %v2871 = vadd.f32 %v2869, %v2870
      %v2872 = vadd.f32 %v2469, %v2470
      %v2873 = vrot.slane %v2872, 4
      %v2874 = vadd.f32 %v2872, %v2873
      %v2875 = vrot.slane %v2874, 2
      %v2876 = vadd.f32 %v2874, %v2875
      %v2877 = vrot.slane %v2876, 1
      %v2878 = vadd.f32 %v2876, %v2877
      %v2879 = vadd.f32 %v2471, %v2472
      %v2880 = vrot.slane %v2879, 4
      %v2881 = vadd.f32 %v2879, %v2880
      %v2882 = vrot.slane %v2881, 2
      %v2883 = vadd.f32 %v2881, %v2882
      %v2884 = vrot.slane %v2883, 1
      %v2885 = vadd.f32 %v2883, %v2884
      %v2886 = vadd.f32 %v2473, %v2474
      %v2887 = vrot.slane %v2886, 4
      %v2888 = vadd.f32 %v2886, %v2887
      %v2889 = vrot.slane %v2888, 2
      %v2890 = vadd.f32 %v2888, %v2889
      %v2891 = vrot.slane %v2890, 1
      %v2892 = vadd.f32 %v2890, %v2891
      %v2893 = vadd.f32 %v2475, %v2476
      %v2894 = vrot.slane %v2893, 4
      %v2895 = vadd.f32 %v2893, %v2894
      %v2896 = vrot.slane %v2895, 2
      %v2897 = vadd.f32 %v2895, %v2896
      %v2898 = vrot.slane %v2897, 1
      %v2899 = vadd.f32 %v2897, %v2898
      %v2900 = vadd.f32 %v2477, %v2478
      %v2901 = vrot.slane %v2900, 4
      %v2902 = vadd.f32 %v2900, %v2901
      %v2903 = vrot.slane %v2902, 2
      %v2904 = vadd.f32 %v2902, %v2903
      %v2905 = vrot.slane %v2904, 1
      %v2906 = vadd.f32 %v2904, %v2905
      %v2907 = vadd.f32 %v2479, %v2480
      %v2908 = vrot.slane %v2907, 4
      %v2909 = vadd.f32 %v2907, %v2908
      %v2910 = vrot.slane %v2909, 2
      %v2911 = vadd.f32 %v2909, %v2910
      %v2912 = vrot.slane %v2911, 1
      %v2913 = vadd.f32 %v2911, %v2912
      %v2914 = vadd.f32 %v2481, %v2482
      %v2915 = vrot.slane %v2914, 4
      %v2916 = vadd.f32 %v2914, %v2915
      %v2917 = vrot.slane %v2916, 2
      %v2918 = vadd.f32 %v2916, %v2917
      %v2919 = vrot.slane %v2918, 1
      %v2920 = vadd.f32 %v2918, %v2919
      %v2921 = vadd.f32 %v2483, %v2484
      %v2922 = vrot.slane %v2921, 4
      %v2923 = vadd.f32 %v2921, %v2922
      %v2924 = vrot.slane %v2923, 2
      %v2925 = vadd.f32 %v2923, %v2924
      %v2926 = vrot.slane %v2925, 1
      %v2927 = vadd.f32 %v2925, %v2926
      %v2928 = vadd.f32 %v2485, %v2486
      %v2929 = vrot.slane %v2928, 4
      %v2930 = vadd.f32 %v2928, %v2929
      %v2931 = vrot.slane %v2930, 2
      %v2932 = vadd.f32 %v2930, %v2931
      %v2933 = vrot.slane %v2932, 1
      %v2934 = vadd.f32 %v2932, %v2933
      %v2935 = vrcp.pop %v1917
      %v2936 = vmul.f32 %v2493, %v2935
      %v2937 = vrcp.pop %v1924
      %v2938 = vmul.f32 %v2500, %v2937
      %v2939 = vrcp.pop %v1931
      %v2940 = vmul.f32 %v2507, %v2939
      %v2941 = vrcp.pop %v1938
      %v2942 = vmul.f32 %v2514, %v2941
      %v2943 = vrcp.pop %v1945
      %v2944 = vmul.f32 %v2521, %v2943
      %v2945 = vrcp.pop %v1952
      %v2946 = vmul.f32 %v2528, %v2945
      %v2947 = vrcp.pop %v1959
      %v2948 = vmul.f32 %v2535, %v2947
      %v2949 = vrcp.pop %v1966
      %v2950 = vmul.f32 %v2542, %v2949
      %v2951 = vrcp.pop %v1973
      %v2952 = vmul.f32 %v2549, %v2951
      %v2953 = vrcp.pop %v1980
      %v2954 = vmul.f32 %v2556, %v2953
      %v2955 = vrcp.pop %v1987
      %v2956 = vmul.f32 %v2563, %v2955
      %v2957 = vrcp.pop %v1994
      %v2958 = vmul.f32 %v2570, %v2957
      %v2959 = vrcp.pop %v2001
      %v2960 = vmul.f32 %v2577, %v2959
      %v2961 = vrcp.pop %v2008
      %v2962 = vmul.f32 %v2584, %v2961
      %v2963 = vrcp.pop %v2015
      %v2964 = vmul.f32 %v2591, %v2963
      %v2965 = vrcp.pop %v2022
      %v2966 = vmul.f32 %v2598, %v2965
      %v2967 = vrcp.pop %v2029
      %v2968 = vmul.f32 %v2605, %v2967
      %v2969 = vrcp.pop %v2036
      %v2970 = vmul.f32 %v2612, %v2969
      %v2971 = vrcp.pop %v2043
      %v2972 = vmul.f32 %v2619, %v2971
      %v2973 = vrcp.pop %v2050
      %v2974 = vmul.f32 %v2626, %v2973
      %v2975 = vrcp.pop %v2057
      %v2976 = vmul.f32 %v2633, %v2975
      %v2977 = vrcp.pop %v2064
      %v2978 = vmul.f32 %v2640, %v2977
      %v2979 = vrcp.pop %v2071
      %v2980 = vmul.f32 %v2647, %v2979
      %v2981 = vrcp.pop %v2078
      %v2982 = vmul.f32 %v2654, %v2981
      %v2983 = vrcp.pop %v2085
      %v2984 = vmul.f32 %v2661, %v2983
      %v2985 = vrcp.pop %v2092
      %v2986 = vmul.f32 %v2668, %v2985
      %v2987 = vrcp.pop %v2099
      %v2988 = vmul.f32 %v2675, %v2987
      %v2989 = vrcp.pop %v2106
      %v2990 = vmul.f32 %v2682, %v2989
      %v2991 = vrcp.pop %v2113
      %v2992 = vmul.f32 %v2689, %v2991
      %v2993 = vrcp.pop %v2120
      %v2994 = vmul.f32 %v2696, %v2993
      %v2995 = vrcp.pop %v2127
      %v2996 = vmul.f32 %v2703, %v2995
      %v2997 = vrcp.pop %v2134
      %v2998 = vmul.f32 %v2710, %v2997
      %v2999 = vrcp.pop %v2141
      %v3000 = vmul.f32 %v2717, %v2999
      %v3001 = vrcp.pop %v2148
      %v3002 = vmul.f32 %v2724, %v3001
      %v3003 = vrcp.pop %v2155
      %v3004 = vmul.f32 %v2731, %v3003
      %v3005 = vrcp.pop %v2162
      %v3006 = vmul.f32 %v2738, %v3005
      %v3007 = vrcp.pop %v2169
      %v3008 = vmul.f32 %v2745, %v3007
      %v3009 = vrcp.pop %v2176
      %v3010 = vmul.f32 %v2752, %v3009
      %v3011 = vrcp.pop %v2183
      %v3012 = vmul.f32 %v2759, %v3011
      %v3013 = vrcp.pop %v2190
      %v3014 = vmul.f32 %v2766, %v3013
      %v3015 = vrcp.pop %v2197
      %v3016 = vmul.f32 %v2773, %v3015
      %v3017 = vrcp.pop %v2204
      %v3018 = vmul.f32 %v2780, %v3017
      %v3019 = vrcp.pop %v2211
      %v3020 = vmul.f32 %v2787, %v3019
      %v3021 = vrcp.pop %v2218
      %v3022 = vmul.f32 %v2794, %v3021
      %v3023 = vrcp.pop %v2225
      %v3024 = vmul.f32 %v2801, %v3023
      %v3025 = vrcp.pop %v2232
      %v3026 = vmul.f32 %v2808, %v3025
      %v3027 = vrcp.pop %v2239
      %v3028 = vmul.f32 %v2815, %v3027
      %v3029 = vrcp.pop %v2246
      %v3030 = vmul.f32 %v2822, %v3029
      %v3031 = vrcp.pop %v2253
      %v3032 = vmul.f32 %v2829, %v3031
      %v3033 = vrcp.pop %v2260
      %v3034 = vmul.f32 %v2836, %v3033
      %v3035 = vrcp.pop %v2267
      %v3036 = vmul.f32 %v2843, %v3035
      %v3037 = vrcp.pop %v2274
      %v3038 = vmul.f32 %v2850, %v3037
      %v3039 = vrcp.pop %v2281
      %v3040 = vmul.f32 %v2857, %v3039
      %v3041 = vrcp.pop %v2288
      %v3042 = vmul.f32 %v2864, %v3041
      %v3043 = vrcp.pop %v2295
      %v3044 = vmul.f32 %v2871, %v3043
      %v3045 = vrcp.pop %v2302
      %v3046 = vmul.f32 %v2878, %v3045
      %v3047 = vrcp.pop %v2309
      %v3048 = vmul.f32 %v2885, %v3047
      %v3049 = vrcp.pop %v2316
      %v3050 = vmul.f32 %v2892, %v3049
      %v3051 = vrcp.pop %v2323
      %v3052 = vmul.f32 %v2899, %v3051
      %v3053 = vrcp.pop %v2330
      %v3054 = vmul.f32 %v2906, %v3053
      %v3055 = vrcp.pop %v2337
      %v3056 = vmul.f32 %v2913, %v3055
      %v3057 = vrcp.pop %v2344
      %v3058 = vmul.f32 %v2920, %v3057
      %v3059 = vrcp.pop %v2351
      %v3060 = vmul.f32 %v2927, %v3059
      %v3061 = vrcp.pop %v2358
      %v3062 = vmul.f32 %v2934, %v3061
      %v3063 = vld [vmem:[%s2] sm:$0xff]
      %v3064 = vld [vmem:[%s2 + $0x8] sm:$0xff]
      %v3065 = vld [vmem:[%s2 + $0x10] sm:$0xff]
      %v3066 = vld [vmem:[%s2 + $0x18] sm:$0xff]
      %v3067 = vld [vmem:[%s2 + $0x20] sm:$0xff]
      %v3068 = vld [vmem:[%s2 + $0x28] sm:$0xff]
      %v3069 = vld [vmem:[%s2 + $0x30] sm:$0xff]
      %v3070 = vld [vmem:[%s2 + $0x38] sm:$0xff]
      %v3071 = vld [vmem:[%s2 + $0x40] sm:$0xff]
      %v3072 = vld [vmem:[%s2 + $0x48] sm:$0xff]
      %v3073 = vld [vmem:[%s2 + $0x50] sm:$0xff]
      %v3074 = vld [vmem:[%s2 + $0x58] sm:$0xff]
      %v3075 = vld [vmem:[%s2 + $0x60] sm:$0xff]
      %v3076 = vld [vmem:[%s2 + $0x68] sm:$0xff]
      %v3077 = vld [vmem:[%s2 + $0x70] sm:$0xff]
      %v3078 = vld [vmem:[%s2 + $0x78] sm:$0xff]
      %v3079 = vld [vmem:[%s2 + $0x80] sm:$0xff]
      %v3080 = vld [vmem:[%s2 + $0x88] sm:$0xff]
      %v3081 = vld [vmem:[%s2 + $0x90] sm:$0xff]
      %v3082 = vld [vmem:[%s2 + $0x98] sm:$0xff]
      %v3083 = vld [vmem:[%s2 + $0xa0] sm:$0xff]
      %v3084 = vld [vmem:[%s2 + $0xa8] sm:$0xff]
      %v3085 = vld [vmem:[%s2 + $0xb0] sm:$0xff]
      %v3086 = vld [vmem:[%s2 + $0xb8] sm:$0xff]
      %v3087 = vld [vmem:[%s2 + $0xc0] sm:$0xff]
      %v3088 = vld [vmem:[%s2 + $0xc8] sm:$0xff]
      %v3089 = vld [vmem:[%s2 + $0xd0] sm:$0xff]
      %v3090 = vld [vmem:[%s2 + $0xd8] sm:$0xff]
      %v3091 = vld [vmem:[%s2 + $0xe0] sm:$0xff]
      %v3092 = vld [vmem:[%s2 + $0xe8] sm:$0xff]
      %v3093 = vld [vmem:[%s2 + $0xf0] sm:$0xff]
      %v3094 = vld [vmem:[%s2 + $0xf8] sm:$0xff]
      %vm3159 = vcmask 1041409
      %v3160 = vsel %vm3159, %v2938, %v2936
      %vm3161 = vcmask 1042434
      %v3162 = vsel %vm3161, %v2940, %v3160
      %vm3163 = vcmask 1043459
      %v3164 = vsel %vm3163, %v2942, %v3162
      %vm3165 = vcmask 1044484
      %v3166 = vsel %vm3165, %v2944, %v3164
      %vm3167 = vcmask 1045509
      %v3168 = vsel %vm3167, %v2946, %v3166
      %vm3169 = vcmask 1046534
      %v3170 = vsel %vm3169, %v2948, %v3168
      %vm3171 = vcmask 1047559
      %v3172 = vsel %vm3171, %v2950, %v3170
      %v3173 = vsel %vm3159, %v2954, %v2952
      %v3174 = vsel %vm3161, %v2956, %v3173
      %v3175 = vsel %vm3163, %v2958, %v3174
      %v3176 = vsel %vm3165, %v2960, %v3175
      %v3177 = vsel %vm3167, %v2962, %v3176
      %v3178 = vsel %vm3169, %v2964, %v3177
      %v3179 = vsel %vm3171, %v2966, %v3178
      %v3180 = vsel %vm3159, %v2970, %v2968
      %v3181 = vsel %vm3161, %v2972, %v3180
      %v3182 = vsel %vm3163, %v2974, %v3181
      %v3183 = vsel %vm3165, %v2976, %v3182
      %v3184 = vsel %vm3167, %v2978, %v3183
      %v3185 = vsel %vm3169, %v2980, %v3184
      %v3186 = vsel %vm3171, %v2982, %v3185
      %v3187 = vsel %vm3159, %v2986, %v2984
      %v3188 = vsel %vm3161, %v2988, %v3187
      %v3189 = vsel %vm3163, %v2990, %v3188
      %v3190 = vsel %vm3165, %v2992, %v3189
      %v3191 = vsel %vm3167, %v2994, %v3190
      %v3192 = vsel %vm3169, %v2996, %v3191
      %v3193 = vsel %vm3171, %v2998, %v3192
      %v3194 = vsel %vm3159, %v3002, %v3000
      %v3195 = vsel %vm3161, %v3004, %v3194
      %v3196 = vsel %vm3163, %v3006, %v3195
      %v3197 = vsel %vm3165, %v3008, %v3196
      %v3198 = vsel %vm3167, %v3010, %v3197
      %v3199 = vsel %vm3169, %v3012, %v3198
      %v3200 = vsel %vm3171, %v3014, %v3199
      %v3201 = vsel %vm3159, %v3018, %v3016
      %v3202 = vsel %vm3161, %v3020, %v3201
      %v3203 = vsel %vm3163, %v3022, %v3202
      %v3204 = vsel %vm3165, %v3024, %v3203
      %v3205 = vsel %vm3167, %v3026, %v3204
      %v3206 = vsel %vm3169, %v3028, %v3205
      %v3207 = vsel %vm3171, %v3030, %v3206
      %v3208 = vsel %vm3159, %v3034, %v3032
      %v3209 = vsel %vm3161, %v3036, %v3208
      %v3210 = vsel %vm3163, %v3038, %v3209
      %v3211 = vsel %vm3165, %v3040, %v3210
      %v3212 = vsel %vm3167, %v3042, %v3211
      %v3213 = vsel %vm3169, %v3044, %v3212
      %v3214 = vsel %vm3171, %v3046, %v3213
      %v3215 = vsel %vm3159, %v3050, %v3048
      %v3216 = vsel %vm3161, %v3052, %v3215
      %v3217 = vsel %vm3163, %v3054, %v3216
      %v3218 = vsel %vm3165, %v3056, %v3217
      %v3219 = vsel %vm3167, %v3058, %v3218
      %v3220 = vsel %vm3169, %v3060, %v3219
      %v3221 = vsel %vm3171, %v3062, %v3220
      %3230 = vmatprep.subr.mxu0 %v3094
      %3231 = vmatpush1.msra.mxu0 %v3093
      %3232 = vmatprep.subr.mxu0 %v3092
      %3233 = vmatpush1.msra.mxu0 %v3091
      %3234 = vmatprep.subr.mxu0 %v3090
      %3235 = vmatpush1.msra.mxu0 %v3089
      %3236 = vmatprep.subr.mxu0 %v3088
      %3237 = vmatpush1.msra.mxu0 %v3087
      %3238 = vmatprep.subr.mxu0 %v3086
      %3239 = vmatpush1.msra.mxu0 %v3085
      %3240 = vmatprep.subr.mxu0 %v3084
      %3241 = vmatpush1.msra.mxu0 %v3083
      %3242 = vmatprep.subr.mxu0 %v3082
      %3243 = vmatpush1.msra.mxu0 %v3081
      %3244 = vmatprep.subr.mxu0 %v3080
      %3245 = vmatpush1.msra.mxu0 %v3079
      %3246 = vmatprep.subr.mxu0 %v3078
      %3247 = vmatpush1.msra.mxu0 %v3077
      %3248 = vmatprep.subr.mxu0 %v3076
      %3249 = vmatpush1.msra.mxu0 %v3075
      %3250 = vmatprep.subr.mxu0 %v3074
      %3251 = vmatpush1.msra.mxu0 %v3073
      %3252 = vmatprep.subr.mxu0 %v3072
      %3253 = vmatpush1.msra.mxu0 %v3071
      %3254 = vmatprep.subr.mxu0 %v3070
      %3255 = vmatpush1.msra.mxu0 %v3069
      %3256 = vmatprep.subr.mxu0 %v3068
      %3257 = vmatpush1.msra.mxu0 %v3067
      %3258 = vmatprep.subr.mxu0 %v3066
      %3259 = vmatpush1.msra.mxu0 %v3065
      %3260 = vmatprep.subr.mxu0 %v3064
      %3261 = vmatpush1.msra.mxu0 %v3063
      %3262 = vmatprep.subr.mxu0 0.0
      %3263 = vmatpush2.msra.mxu0 0.0
      %3264 = vmatprep.subr.mxu0 0.0
      %3265 = vmatpush2.msra.mxu0 0.0
      %3266 = vmatprep.subr.mxu0 0.0
      %3267 = vmatpush2.msra.mxu0 0.0
      %3268 = vmatprep.subr.mxu0 0.0
      %3269 = vmatpush2.msra.mxu0 0.0
      %3270 = vmatprep.subr.mxu0 0.0
      %3271 = vmatpush2.msra.mxu0 0.0
      %3272 = vmatprep.subr.mxu0 0.0
      %3273 = vmatpush2.msra.mxu0 0.0
      %3274 = vmatprep.subr.mxu0 0.0
      %3275 = vmatpush2.msra.mxu0 0.0
      %3276 = vmatprep.subr.mxu0 0.0
      %3277 = vmatpush2.msra.mxu0 0.0
      %3278 = vmatprep.subr.mxu0 0.0
      %3279 = vmatpush2.msra.mxu0 0.0
      %3280 = vmatprep.subr.mxu0 0.0
      %3281 = vmatpush2.msra.mxu0 0.0
      %3282 = vmatprep.subr.mxu0 0.0
      %3283 = vmatpush2.msra.mxu0 0.0
      %3284 = vmatprep.subr.mxu0 0.0
      %3285 = vmatpush2.msra.mxu0 0.0
      %3286 = vmatprep.subr.mxu0 0.0
      %3287 = vmatpush2.msra.mxu0 0.0
      %3288 = vmatprep.subr.mxu0 0.0
      %3289 = vmatpush2.msra.mxu0 0.0
      %3290 = vmatprep.subr.mxu0 0.0
      %3291 = vmatpush2.msra.mxu0 0.0
      %3292 = vmatprep.subr.mxu0 0.0
      %3293 = vmatpush2.msra.mxu0 0.0
      %3294 = vmatprep.mubr.f32.mxu0 0.0
      %3295 = vmatmul.mubr.f32.gmra.mxu0 %v3172
      %v3296 = vpop.f32.mrf.mxu0
      %v3297 = vadd.f32 0.0, %v3296
      %v3298 = vpop.f32.mrf.mxu0
      %v3299 = vadd.f32 0.0, %v3298
      %3300 = vmatprep.mubr.f32.mxu0 0.0
      %3301 = vmatmul.mubr.f32.gmra.mxu0 %v3179
      %v3302 = vpop.f32.mrf.mxu0
      %v3303 = vadd.f32 0.0, %v3302
      %v3304 = vpop.f32.mrf.mxu0
      %v3305 = vadd.f32 0.0, %v3304
      %3306 = vmatprep.mubr.f32.mxu0 0.0
      %3307 = vmatmul.mubr.f32.gmra.mxu0 %v3186
      %v3308 = vpop.f32.mrf.mxu0
      %v3309 = vadd.f32 0.0, %v3308
      %v3310 = vpop.f32.mrf.mxu0
      %v3311 = vadd.f32 0.0, %v3310
      %3312 = vmatprep.mubr.f32.mxu0 0.0
      %3313 = vmatmul.mubr.f32.gmra.mxu0 %v3193
      %v3314 = vpop.f32.mrf.mxu0
      %v3315 = vadd.f32 0.0, %v3314
      %v3316 = vpop.f32.mrf.mxu0
      %v3317 = vadd.f32 0.0, %v3316
      %3318 = vmatprep.mubr.f32.mxu0 0.0
      %3319 = vmatmul.mubr.f32.gmra.mxu0 %v3200
      %v3320 = vpop.f32.mrf.mxu0
      %v3321 = vadd.f32 0.0, %v3320
      %v3322 = vpop.f32.mrf.mxu0
      %v3323 = vadd.f32 0.0, %v3322
      %3324 = vmatprep.mubr.f32.mxu0 0.0
      %3325 = vmatmul.mubr.f32.gmra.mxu0 %v3207
      %v3326 = vpop.f32.mrf.mxu0
      %v3327 = vadd.f32 0.0, %v3326
      %v3328 = vpop.f32.mrf.mxu0
      %v3329 = vadd.f32 0.0, %v3328
      %3330 = vmatprep.mubr.f32.mxu0 0.0
      %3331 = vmatmul.mubr.f32.gmra.mxu0 %v3214
      %v3332 = vpop.f32.mrf.mxu0
      %v3333 = vadd.f32 0.0, %v3332
      %v3334 = vpop.f32.mrf.mxu0
      %v3335 = vadd.f32 0.0, %v3334
      %3336 = vmatprep.mubr.f32.mxu0 0.0
      %3337 = vmatmul.mubr.f32.gmra.mxu0 %v3221
      %v3338 = vpop.f32.mrf.mxu0
      %v3339 = vadd.f32 0.0, %v3338
      %v3340 = vpop.f32.mrf.mxu0
      %v3341 = vadd.f32 0.0, %v3340
      %3342 = vdwg.mxu0
      %v3343 = vld [vmem:[%s3] sm:$0x3]
      %v3345 = vlaneseq
      %v3346 = vshrl.u32 %v3345, 7
      %v3347 = vsub.s32 0, %v3346
      %v3348 = vrot.slane %v3343, %v3347
      %v3349 = vlaneseq
      %v3350 = vshrl.u32 %v3349, 7
      %v3351 = vsub.s32 1, %v3350
      %v3352 = vrot.slane %v3343, %v3351
      %v3355 = vmul.f32 %v3297, %v3348
      %v3356 = vmul.f32 %v3299, %v3352
      %v3357 = vmul.f32 %v3303, %v3348
      %v3358 = vmul.f32 %v3305, %v3352
      %v3359 = vmul.f32 %v3309, %v3348
      %v3360 = vmul.f32 %v3311, %v3352
      %v3361 = vmul.f32 %v3315, %v3348
      %v3362 = vmul.f32 %v3317, %v3352
      %v3363 = vmul.f32 %v3321, %v3348
      %v3364 = vmul.f32 %v3323, %v3352
      %v3365 = vmul.f32 %v3327, %v3348
      %v3366 = vmul.f32 %v3329, %v3352
      %v3367 = vmul.f32 %v3333, %v3348
      %v3368 = vmul.f32 %v3335, %v3352
      %v3369 = vmul.f32 %v3339, %v3348
      %v3370 = vmul.f32 %v3341, %v3352
      %v3371 = vld [vmem:[%s4] sm:$0x3]
      %v3373 = vlaneseq
      %v3374 = vshrl.u32 %v3373, 7
      %v3375 = vsub.s32 0, %v3374
      %v3376 = vrot.slane %v3371, %v3375
      %v3377 = vlaneseq
      %v3378 = vshrl.u32 %v3377, 7
      %v3379 = vsub.s32 1, %v3378
      %v3380 = vrot.slane %v3371, %v3379
      %v3383 = vadd.f32 %v3355, %v3376
      %v3384 = vadd.f32 %v3356, %v3380
      %v3385 = vadd.f32 %v3357, %v3376
      %v3386 = vadd.f32 %v3358, %v3380
      %v3387 = vadd.f32 %v3359, %v3376
      %v3388 = vadd.f32 %v3360, %v3380
      %v3389 = vadd.f32 %v3361, %v3376
      %v3390 = vadd.f32 %v3362, %v3380
      %v3391 = vadd.f32 %v3363, %v3376
      %v3392 = vadd.f32 %v3364, %v3380
      %v3393 = vadd.f32 %v3365, %v3376
      %v3394 = vadd.f32 %v3366, %v3380
      %v3395 = vadd.f32 %v3367, %v3376
      %v3396 = vadd.f32 %v3368, %v3380
      %v3397 = vadd.f32 %v3369, %v3376
      %v3398 = vadd.f32 %v3370, %v3380
      %v3399 = vmax.f32 %v3383, 0.0
      %v3400 = vmax.f32 %v3384, 0.0
      %v3401 = vmax.f32 %v3385, 0.0
      %v3402 = vmax.f32 %v3386, 0.0
      %v3403 = vmax.f32 %v3387, 0.0
      %v3404 = vmax.f32 %v3388, 0.0
      %v3405 = vmax.f32 %v3389, 0.0
      %v3406 = vmax.f32 %v3390, 0.0
      %v3407 = vmax.f32 %v3391, 0.0
      %v3408 = vmax.f32 %v3392, 0.0
      %v3409 = vmax.f32 %v3393, 0.0
      %v3410 = vmax.f32 %v3394, 0.0
      %v3411 = vmax.f32 %v3395, 0.0
      %v3412 = vmax.f32 %v3396, 0.0
      %v3413 = vmax.f32 %v3397, 0.0
      %v3414 = vmax.f32 %v3398, 0.0
      %3415 = vst [vmem:[%s228] sm:$0xff] %v3399
      %3416 = vst [vmem:[%s228 + $0x8] sm:$0xff] %v3400
      %3417 = vst [vmem:[%s228 + $0x10] sm:$0xff] %v3401
      %3418 = vst [vmem:[%s228 + $0x18] sm:$0xff] %v3402
      %3419 = vst [vmem:[%s228 + $0x20] sm:$0xff] %v3403
      %3420 = vst [vmem:[%s228 + $0x28] sm:$0xff] %v3404
      %3421 = vst [vmem:[%s228 + $0x30] sm:$0xff] %v3405
      %3422 = vst [vmem:[%s228 + $0x38] sm:$0xff] %v3406
      %3423 = vst [vmem:[%s228 + $0x40] sm:$0xff] %v3407
      %3424 = vst [vmem:[%s228 + $0x48] sm:$0xff] %v3408
      %3425 = vst [vmem:[%s228 + $0x50] sm:$0xff] %v3409
      %3426 = vst [vmem:[%s228 + $0x58] sm:$0xff] %v3410
      %3427 = vst [vmem:[%s228 + $0x60] sm:$0xff] %v3411
      %3428 = vst [vmem:[%s228 + $0x68] sm:$0xff] %v3412
      %3429 = vst [vmem:[%s228 + $0x70] sm:$0xff] %v3413
      %3430 = vst [vmem:[%s228 + $0x78] sm:$0xff] %v3414
      %s3431 = smul.u32 8, %s16
      %p3432 = scmp.lt.s32.totalorder %s3431, 31
      %s3433 = scalar_select %p3432, %s3431, 31
      %s3434 = smul.addr %s3433, 2
      %s3435 = smul.addr %s3434, 8
      %s3436 = scalar_lea.vmem %s5, %s3435
      // Predicated region
      $region41: #{att_pooling.1} parent=39 // pred_check
        %p3437 = pneg %p144
      $region42: #{att_pooling.1} parent=39 // pred_check_branch
        %3439 = sbr.rel (%p3437) target = $region44
      $region43: #{att_pooling.1} parent=39 // pred_region
        %s3440 = smul.u32 8, %s16
      $region44: #{att_pooling.1} parent=39 // pred_fallthru
        _
    $region40: #{att_pooling.1} parent=5 // pred_fallthru
      _
    %p3441 = scmp.le.s32.totalorder 2, %s11
    // Predicated region
    $region45: #{att_pooling.1} parent=5 // pred_check
      %p3442 = pneg %p3441
    $region46: #{att_pooling.1} parent=5 // pred_check_branch
      %3444 = sbr.rel (%p3442) target = $region48
    $region47: #{att_pooling.1} parent=5 // pred_region
      %s3445 = ssub.s32 %s11, 2
      // Predicated region
      $region49: #{att_pooling.1} parent=47 // pred_check
        %p3446 = pneg %p150
      $region50: #{att_pooling.1} parent=47 // pred_check_branch
        %3448 = sbr.rel (%p3446) target = $region52
      $region51: #{att_pooling.1} parent=47 // pred_region
        %s3449 = smul.u32 8, %s17
        %p3450 = scmp.lt.s32.totalorder %s3449, 31
        %s3451 = scalar_select %p3450, %s3449, 31
        %s3452 = smul.addr %s3451, 2
        %s3453 = smul.addr %s3452, 8
        %s3454 = scalar_lea.vmem %s5, %s3453
      $region52: #{att_pooling.1} parent=47 // pred_fallthru
        _
    $region48: #{att_pooling.1} parent=5 // pred_fallthru
      _
  $region6: #{att_pooling.1} parent=0 // loop_footer
    %s15 = sadd.s32 1, %s11
  $region7: #{att_pooling.1} parent=0 // loop_footer_branch
    %10 = sbr.rel target = $region3
  $region8: #{att_pooling.1} parent=0 // loop_exit
    _

</llo_original>
